<compile_context>
chip_gen: v7x
topology: tpu7x:2x2x1
jax: 0.10.0
libtpu: 0.0.40
codegen_flags: <defaults>
</compile_context>

<pallas_src>
import functools

import jax
import jax.numpy as jnp
from jax.experimental import pallas as pl
from jax.experimental.pallas import tpu as pltpu


def _round_up(n, m):
    return ((n + m - 1) // m) * m


def _tcn_kernel(T, K, dilation, eps,
                x_ref, w1_ref, b1_ref, a1_ref, g1_ref, be1_ref,
                wd_ref, bd_ref, a2_ref, g2_ref, be2_ref,
                w3_ref, b3_ref, o_ref, hp_ref):
    # x_ref: (1, T, C_in) block for the current batch element.
    pad = dilation * (K - 1) // 2          # 'same' only for odd K (module default)
    lead = _round_up(pad, 8)               # keep the big h store sublane-aligned
    C_dw = hp_ref.shape[1]

    x = x_ref[0]                                            # (T, C_in) f32

    # ---- 1x1 conv (pointwise) C_in -> C_dw: bf16 MXU, f32 accumulation ------
    h = jnp.dot(x.astype(jnp.bfloat16), w1_ref[...],
                preferred_element_type=jnp.float32) + b1_ref[...]   # (T, C_dw)

    # ---- PReLU (single shared alpha, PyTorch default) -----------------------
    a1 = a1_ref[0, 0]
    h = jnp.where(h >= 0, h, a1 * h)

    # ---- GlobalLayerNorm over (C, T): single-pass sum / sum-of-squares ------
    n_inv = 1.0 / (T * C_dw)
    s1 = jnp.sum(h)
    ss1 = jnp.sum(h * h)
    mean1 = s1 * n_inv
    var1 = jnp.maximum(ss1 * n_inv - mean1 * mean1, 0.0)
    h = g1_ref[...] * (h - mean1) * jax.lax.rsqrt(var1 + eps) + be1_ref[...]

    # ---- depthwise conv1d (kernel K, dilation d, 'same' padding) ------------
    # h is written once into a persistent zero-padded VMEM scratch; the K taps
    # are statically-offset reads from it (no jnp.pad materialization).
    if pad > 0:
        @pl.when(pl.program_id(0) == 0)     # pad rows never overwritten -> zero once
        def _zero_pad_rows():
            zpad = jnp.zeros((pad, C_dw), jnp.float32)
            hp_ref[lead - pad:lead, :] = zpad
            hp_ref[lead + T:lead + T + pad, :] = zpad
    hp_ref[lead:lead + T, :] = h

    wd = wd_ref[...]                        # (K, C_dw) loaded once (no re-broadcast)
    base = lead - pad
    y = hp_ref[base:base + T, :] * wd[0:1, :]          # k = 0 term initializes y
    for k in range(1, K):                               # K is small & static
        s0 = base + k * dilation
        y = y + hp_ref[s0:s0 + T, :] * wd[k:k + 1, :]
    y = y + bd_ref[...]

    # ---- PReLU ---------------------------------------------------------------
    a2 = a2_ref[0, 0]
    y = jnp.where(y >= 0, y, a2 * y)

    # ---- GlobalLayerNorm (single-pass stats) ----------------------------------
    s2 = jnp.sum(y)
    ss2 = jnp.sum(y * y)
    mean2 = s2 * n_inv
    var2 = jnp.maximum(ss2 * n_inv - mean2 * mean2, 0.0)
    y = g2_ref[...] * (y - mean2) * jax.lax.rsqrt(var2 + eps) + be2_ref[...]

    # ---- 1x1 conv (pointwise) C_dw -> C_in + residual -------------------------
    out = jnp.dot(y.astype(jnp.bfloat16), w3_ref[...],
                  preferred_element_type=jnp.float32) + b3_ref[...]
    o_ref[0] = (x + out).astype(o_ref.dtype)


def tcn_block(x_btc, params, *, kernel_size, dilation, eps=1e-8):
    """x_btc: (B, T, C_in) float32 (channels-last layout)."""
    B, T, C_in = x_btc.shape
    C_dw = params["w1"].shape[1]
    pad = dilation * (kernel_size - 1) // 2
    lead = _round_up(pad, 8)

    kernel = functools.partial(_tcn_kernel, T, kernel_size, dilation, eps)

    full2d = lambda a: pl.BlockSpec(a.shape, lambda b: (0, 0))
    smem_spec = pl.BlockSpec(memory_space=pltpu.MemorySpace.SMEM)

    grid_spec = pltpu.PrefetchScalarGridSpec(
        num_scalar_prefetch=0,
        grid=(B,),
        in_specs=[
            pl.BlockSpec((1, T, C_in), lambda b: (b, 0, 0)),   # x
            full2d(params["w1"]), full2d(params["b1"]),        # conv1x1 #1 (bf16 w)
            smem_spec,                                          # prelu alpha 1
            full2d(params["g1"]), full2d(params["be1"]),       # gLN 1
            full2d(params["wd"]), full2d(params["bd"]),        # depthwise conv
            smem_spec,                                          # prelu alpha 2
            full2d(params["g2"]), full2d(params["be2"]),       # gLN 2
            full2d(params["w3"]), full2d(params["b3"]),        # conv1x1 #2 (bf16 w)
        ],
        out_specs=pl.BlockSpec((1, T, C_in), lambda b: (b, 0, 0)),
        scratch_shapes=[
            # zero-padded depthwise-conv input, persistent across grid steps
            pltpu.VMEM((lead + T + pad, C_dw), jnp.float32),
        ],
    )

    return pl.pallas_call(
        kernel,
        out_shape=jax.ShapeDtypeStruct((B, T, C_in), jnp.float32),
        grid_spec=grid_spec,
        compiler_params=pltpu.CompilerParams(
            dimension_semantics=("parallel",),
            vmem_limit_bytes=32 * 1024 * 1024),   # explicit budget, headroom on v7x
    )(x_btc,
      params["w1"], params["b1"], params["a1"], params["g1"], params["be1"],
      params["wd"], params["bd"], params["a2"], params["g2"], params["be2"],
      params["w3"], params["b3"])


def tcn_block_reference(x_btc, params, *, kernel_size, dilation, eps=1e-8):
    """Pure-JAX reference with identical semantics / mixed-precision policy."""
    B, T, C_in = x_btc.shape
    h = jnp.einsum("btc,cd->btd", x_btc.astype(jnp.bfloat16), params["w1"],
                   preferred_element_type=jnp.float32) + params["b1"]
    a1 = params["a1"][0, 0]
    h = jnp.where(h >= 0, h, a1 * h)
    mean = jnp.mean(h, axis=(1, 2), keepdims=True)
    var = jnp.mean((h - mean) ** 2, axis=(1, 2), keepdims=True)
    h = params["g1"] * (h - mean) * jax.lax.rsqrt(var + eps) + params["be1"]
    pad = dilation * (kernel_size - 1) // 2
    hp = jnp.pad(h, ((0, 0), (pad, pad), (0, 0)))
    y = jnp.zeros_like(h)
    for k in range(kernel_size):
        y = y + hp[:, k * dilation:k * dilation + T, :] * params["wd"][k]
    y = y + params["bd"]
    a2 = params["a2"][0, 0]
    y = jnp.where(y >= 0, y, a2 * y)
    mean2 = jnp.mean(y, axis=(1, 2), keepdims=True)
    var2 = jnp.mean((y - mean2) ** 2, axis=(1, 2), keepdims=True)
    y = params["g2"] * (y - mean2) * jax.lax.rsqrt(var2 + eps) + params["be2"]
    out = jnp.einsum("btd,dc->btc", y.astype(jnp.bfloat16), params["w3"],
                     preferred_element_type=jnp.float32) + params["b3"]
    return x_btc + out


def init_params(key, C_in, C_dw, K):
    ks = jax.random.split(key, 10)
    scale = 0.1
    return {
        # conv1x1 #1: PyTorch weight (C_dw, C_in, 1) -> stored transposed (C_in, C_dw), bf16 for MXU
        "w1": (scale * jax.random.normal(ks[0], (C_in, C_dw), jnp.float32)).astype(jnp.bfloat16),
        "b1": scale * jax.random.normal(ks[1], (1, C_dw), jnp.float32),
        "a1": jnp.full((1, 1), 0.25, jnp.float32),           # PReLU default init
        "g1": 1.0 + 0.1 * jax.random.normal(ks[2], (1, C_dw), jnp.float32),  # gLN gamma
        "be1": 0.1 * jax.random.normal(ks[3], (1, C_dw), jnp.float32),        # gLN beta
        # depthwise conv: PyTorch weight (C_dw, 1, K) -> stored as (K, C_dw)
        "wd": scale * jax.random.normal(ks[4], (K, C_dw), jnp.float32),
        "bd": scale * jax.random.normal(ks[5], (1, C_dw), jnp.float32),
        "a2": jnp.full((1, 1), 0.25, jnp.float32),
        "g2": 1.0 + 0.1 * jax.random.normal(ks[6], (1, C_dw), jnp.float32),
        "be2": 0.1 * jax.random.normal(ks[7], (1, C_dw), jnp.float32),
        # conv1x1 #2: PyTorch weight (C_in, C_dw, 1) -> stored transposed (C_dw, C_in), bf16 for MXU
        "w3": (scale * jax.random.normal(ks[8], (C_dw, C_in), jnp.float32)).astype(jnp.bfloat16),
        "b3": scale * jax.random.normal(ks[9], (1, C_in), jnp.float32),
    }


if __name__ == "__main__":
    # Module-default channel widths (lane-dense: multiples of 128), short sequence.
    B, C_in, C_dw, T = 2, 256, 512, 128
    K, dilation = 3, 1
    eps = 1e-8  # GlobalLayerNorm epsilon (ConvTasNet/SpEx-style gLN)

    key = jax.random.PRNGKey(0)
    kx, kp = jax.random.split(key)
    x_bct = jax.random.normal(kx, (B, C_in, T), jnp.float32)   # PyTorch NCW input
    params = init_params(kp, C_in, C_dw, K)

    # layout: kernel consumes channels-last (B, T, C_in)
    x_btc = jnp.transpose(x_bct, (0, 2, 1))

    out = tcn_block(x_btc, params, kernel_size=K, dilation=dilation, eps=eps)
    out = jax.block_until_ready(out)

    ref = tcn_block_reference(x_btc, params, kernel_size=K, dilation=dilation, eps=eps)
    ref = jax.block_until_ready(ref)

    assert out.shape == (B, T, C_in)
    err = float(jnp.max(jnp.abs(out - ref)))
    assert err < 2e-2, f"mismatch vs pure-JAX reference: {err}"

    # back to PyTorch layout if needed: (B, C_in, T)
    _ = jnp.transpose(out, (0, 2, 1))

    print("KERNEL_OK")
</pallas_src>

<mosaic_0001>
module attributes {stable_mosaic.version = 11 : i64} {
  func.func @_tcn_kernel(%arg0: i32, %arg1: memref<1x128x256xf32, #tpu.memory_space<vmem>>, %arg2: memref<256x512xbf16, #tpu.memory_space<vmem>>, %arg3: memref<1x512xf32, #tpu.memory_space<vmem>>, %arg4: memref<1x1xf32, #tpu.memory_space<smem>>, %arg5: memref<1x512xf32, #tpu.memory_space<vmem>>, %arg6: memref<1x512xf32, #tpu.memory_space<vmem>>, %arg7: memref<3x512xf32, #tpu.memory_space<vmem>>, %arg8: memref<1x512xf32, #tpu.memory_space<vmem>>, %arg9: memref<1x1xf32, #tpu.memory_space<smem>>, %arg10: memref<1x512xf32, #tpu.memory_space<vmem>>, %arg11: memref<1x512xf32, #tpu.memory_space<vmem>>, %arg12: memref<512x256xbf16, #tpu.memory_space<vmem>>, %arg13: memref<1x256xf32, #tpu.memory_space<vmem>>, %arg14: memref<1x128x256xf32, #tpu.memory_space<vmem>>, %arg15: memref<137x512xf32, #tpu.memory_space<vmem>>) attributes {dimension_semantics = [#tpu.dimension_semantics<parallel>], iteration_bounds = array<i64: 2>, scalar_prefetch = 0 : i64, scratch_operands = 1 : i64, tpu.core_type = #tpu.core_type<tc>, window_params = [{transform_indices = @transform_0, window_bounds = array<i64: 1, 128, 256>}, {pipeline_mode = #tpu.pipeline_mode<synchronous>, transform_indices = @transform_1, window_bounds = array<i64: 256, 512>}, {pipeline_mode = #tpu.pipeline_mode<synchronous>, transform_indices = @transform_2, window_bounds = array<i64: 1, 512>}, {transform_indices = @transform_3, window_bounds = array<i64: 1, 1>}, {pipeline_mode = #tpu.pipeline_mode<synchronous>, transform_indices = @transform_4, window_bounds = array<i64: 1, 512>}, {pipeline_mode = #tpu.pipeline_mode<synchronous>, transform_indices = @transform_5, window_bounds = array<i64: 1, 512>}, {pipeline_mode = #tpu.pipeline_mode<synchronous>, transform_indices = @transform_6, window_bounds = array<i64: 3, 512>}, {pipeline_mode = #tpu.pipeline_mode<synchronous>, transform_indices = @transform_7, window_bounds = array<i64: 1, 512>}, {transform_indices = @transform_8, window_bounds = array<i64: 1, 1>}, {pipeline_mode = #tpu.pipeline_mode<synchronous>, transform_indices = @transform_9, window_bounds = array<i64: 1, 512>}, {pipeline_mode = #tpu.pipeline_mode<synchronous>, transform_indices = @transform_10, window_bounds = array<i64: 1, 512>}, {pipeline_mode = #tpu.pipeline_mode<synchronous>, transform_indices = @transform_11, window_bounds = array<i64: 512, 256>}, {pipeline_mode = #tpu.pipeline_mode<synchronous>, transform_indices = @transform_12, window_bounds = array<i64: 1, 256>}, {transform_indices = @transform_13, window_bounds = array<i64: 1, 128, 256>}]} {
    %c0 = arith.constant 0 : index
    %c0_0 = arith.constant 0 : index
    %c0_1 = arith.constant 0 : index
    %0 = vector.load %arg1[%c0, %c0_0, %c0_1] : memref<1x128x256xf32, #tpu.memory_space<vmem>>, vector<1x128x256xf32>
    %1 = vector.shape_cast %0 : vector<1x128x256xf32> to vector<128x256xf32>
    %2 = arith.truncf %1 : vector<128x256xf32> to vector<128x256xbf16>
    %c0_2 = arith.constant 0 : index
    %c0_3 = arith.constant 0 : index
    %3 = vector.load %arg2[%c0_2, %c0_3] : memref<256x512xbf16, #tpu.memory_space<vmem>>, vector<256x512xbf16>
    %cst = arith.constant dense<0.000000e+00> : vector<128x512xf32>
    %4 = tpu.matmul %2, %3, %cst {dimension_numbers = #tpu.dot_dimension_numbers<[1], [0], [0], [1], [0, 0, 1, 1], [], []>} : vector<128x256xbf16>, vector<256x512xbf16>, vector<128x512xf32> -> vector<128x512xf32>
    %c0_4 = arith.constant 0 : index
    %c0_5 = arith.constant 0 : index
    %5 = vector.load %arg3[%c0_4, %c0_5] : memref<1x512xf32, #tpu.memory_space<vmem>>, vector<1x512xf32>
    %6 = vector.broadcast %5 : vector<1x512xf32> to vector<128x512xf32>
    %7 = arith.addf %4, %6 : vector<128x512xf32>
    %c0_6 = arith.constant 0 : index
    %c0_7 = arith.constant 0 : index
    %8 = memref.load %arg4[%c0_6, %c0_7] : memref<1x1xf32, #tpu.memory_space<smem>>
    %cst_8 = arith.constant 0.000000e+00 : f32
    %9 = vector.broadcast %cst_8 : f32 to vector<128x512xf32>
    %10 = arith.cmpf oge, %7, %9 : vector<128x512xf32>
    %11 = vector.broadcast %8 : f32 to vector<128x512xf32>
    %12 = arith.mulf %11, %7 : vector<128x512xf32>
    %13 = arith.select %10, %7, %12 : vector<128x512xi1>, vector<128x512xf32>
    %14 = vector.shape_cast %13 : vector<128x512xf32> to vector<1x128x512xf32>
    %cst_9 = arith.constant dense<0.000000e+00> : vector<1xf32>
    %15 = vector.multi_reduction <add>, %14, %cst_9 [1, 2] : vector<1x128x512xf32> to vector<1xf32>
    %16 = vector.shape_cast %15 : vector<1xf32> to vector<1x1x1xf32>
    %17 = vector.extract %16[0, 0, 0] : f32 from vector<1x1x1xf32>
    %18 = arith.mulf %13, %13 : vector<128x512xf32>
    %19 = vector.shape_cast %18 : vector<128x512xf32> to vector<1x128x512xf32>
    %cst_10 = arith.constant dense<0.000000e+00> : vector<1xf32>
    %20 = vector.multi_reduction <add>, %19, %cst_10 [1, 2] : vector<1x128x512xf32> to vector<1xf32>
    %21 = vector.shape_cast %20 : vector<1xf32> to vector<1x1x1xf32>
    %22 = vector.extract %21[0, 0, 0] : f32 from vector<1x1x1xf32>
    %cst_11 = arith.constant 1.52587891E-5 : f32
    %23 = arith.mulf %17, %cst_11 : f32
    %cst_12 = arith.constant 1.52587891E-5 : f32
    %24 = arith.mulf %22, %cst_12 : f32
    %25 = arith.mulf %23, %23 : f32
    %26 = arith.subf %24, %25 : f32
    %cst_13 = arith.constant 0.000000e+00 : f32
    %27 = arith.maximumf %26, %cst_13 : f32
    %c0_14 = arith.constant 0 : index
    %c0_15 = arith.constant 0 : index
    %28 = vector.load %arg5[%c0_14, %c0_15] : memref<1x512xf32, #tpu.memory_space<vmem>>, vector<1x512xf32>
    %29 = vector.broadcast %23 : f32 to vector<128x512xf32>
    %30 = arith.subf %13, %29 : vector<128x512xf32>
    %31 = vector.broadcast %28 : vector<1x512xf32> to vector<128x512xf32>
    %32 = arith.mulf %31, %30 : vector<128x512xf32>
    %cst_16 = arith.constant 9.99999993E-9 : f32
    %33 = arith.addf %27, %cst_16 : f32
    %34 = math.rsqrt %33 : f32
    %35 = vector.broadcast %34 : f32 to vector<128x512xf32>
    %36 = arith.mulf %32, %35 : vector<128x512xf32>
    %c0_17 = arith.constant 0 : index
    %c0_18 = arith.constant 0 : index
    %37 = vector.load %arg6[%c0_17, %c0_18] : memref<1x512xf32, #tpu.memory_space<vmem>>, vector<1x512xf32>
    %38 = vector.broadcast %37 : vector<1x512xf32> to vector<128x512xf32>
    %39 = arith.addf %36, %38 : vector<128x512xf32>
    %c0_i32 = arith.constant 0 : i32
    %40 = arith.cmpi eq, %arg0, %c0_i32 : i32
    %41 = arith.extui %40 : i1 to i32
    %c0_i32_19 = arith.constant 0 : i32
    %42 = arith.cmpi ne, %41, %c0_i32_19 : i32
    scf.if %42 {
      %cst_50 = arith.constant 0.000000e+00 : f32
      %104 = vector.broadcast %cst_50 : f32 to vector<1x512xf32>
      %c7_51 = arith.constant 7 : index
      %c0_52 = arith.constant 0 : index
      %105 = vector.load %arg15[%c7_51, %c0_52] : memref<137x512xf32, #tpu.memory_space<vmem>>, vector<1x512xf32>
      tpu.vector_store %arg15[%c7_51, %c0_52], %104 {strides = array<i32>} : memref<137x512xf32, #tpu.memory_space<vmem>>, vector<1x512xf32>,
      %c136 = arith.constant 136 : index
      %c0_53 = arith.constant 0 : index
      %106 = vector.load %arg15[%c136, %c0_53] : memref<137x512xf32, #tpu.memory_space<vmem>>, vector<1x512xf32>
      tpu.vector_store %arg15[%c136, %c0_53], %104 {strides = array<i32>} : memref<137x512xf32, #tpu.memory_space<vmem>>, vector<1x512xf32>,
    } else {
    }
    %c8 = arith.constant 8 : index
    %c0_20 = arith.constant 0 : index
    %43 = vector.load %arg15[%c8, %c0_20] : memref<137x512xf32, #tpu.memory_space<vmem>>, vector<128x512xf32>
    tpu.vector_store %arg15[%c8, %c0_20], %39 {strides = array<i32>} : memref<137x512xf32, #tpu.memory_space<vmem>>, vector<128x512xf32>,
    %c0_21 = arith.constant 0 : index
    %c0_22 = arith.constant 0 : index
    %44 = vector.load %arg7[%c0_21, %c0_22] : memref<3x512xf32, #tpu.memory_space<vmem>>, vector<3x512xf32>
    %c7 = arith.constant 7 : index
    %c0_23 = arith.constant 0 : index
    %45 = vector.load %arg15[%c7, %c0_23] : memref<137x512xf32, #tpu.memory_space<vmem>>, vector<128x512xf32>
    %46 = vector.extract_strided_slice %44 {offsets = [0, 0], sizes = [1, 512], strides = [1, 1]} : vector<3x512xf32> to vector<1x512xf32>
    %47 = vector.broadcast %46 : vector<1x512xf32> to vector<128x512xf32>
    %48 = arith.mulf %45, %47 : vector<128x512xf32>
    %c8_24 = arith.constant 8 : index
    %c0_25 = arith.constant 0 : index
    %49 = vector.load %arg15[%c8_24, %c0_25] : memref<137x512xf32, #tpu.memory_space<vmem>>, vector<128x512xf32>
    %50 = vector.extract_strided_slice %44 {offsets = [1, 0], sizes = [1, 512], strides = [1, 1]} : vector<3x512xf32> to vector<1x512xf32>
    %51 = vector.broadcast %50 : vector<1x512xf32> to vector<128x512xf32>
    %52 = arith.mulf %49, %51 : vector<128x512xf32>
    %53 = arith.addf %48, %52 : vector<128x512xf32>
    %c9 = arith.constant 9 : index
    %c0_26 = arith.constant 0 : index
    %54 = vector.load %arg15[%c9, %c0_26] : memref<137x512xf32, #tpu.memory_space<vmem>>, vector<128x512xf32>
    %55 = vector.extract_strided_slice %44 {offsets = [2, 0], sizes = [1, 512], strides = [1, 1]} : vector<3x512xf32> to vector<1x512xf32>
    %56 = vector.broadcast %55 : vector<1x512xf32> to vector<128x512xf32>
    %57 = arith.mulf %54, %56 : vector<128x512xf32>
    %58 = arith.addf %53, %57 : vector<128x512xf32>
    %c0_27 = arith.constant 0 : index
    %c0_28 = arith.constant 0 : index
    %59 = vector.load %arg8[%c0_27, %c0_28] : memref<1x512xf32, #tpu.memory_space<vmem>>, vector<1x512xf32>
    %60 = vector.broadcast %59 : vector<1x512xf32> to vector<128x512xf32>
    %61 = arith.addf %58, %60 : vector<128x512xf32>
    %c0_29 = arith.constant 0 : index
    %c0_30 = arith.constant 0 : index
    %62 = memref.load %arg9[%c0_29, %c0_30] : memref<1x1xf32, #tpu.memory_space<smem>>
    %cst_31 = arith.constant 0.000000e+00 : f32
    %63 = vector.broadcast %cst_31 : f32 to vector<128x512xf32>
    %64 = arith.cmpf oge, %61, %63 : vector<128x512xf32>
    %65 = vector.broadcast %62 : f32 to vector<128x512xf32>
    %66 = arith.mulf %65, %61 : vector<128x512xf32>
    %67 = arith.select %64, %61, %66 : vector<128x512xi1>, vector<128x512xf32>
    %68 = vector.shape_cast %67 : vector<128x512xf32> to vector<1x128x512xf32>
    %cst_32 = arith.constant dense<0.000000e+00> : vector<1xf32>
    %69 = vector.multi_reduction <add>, %68, %cst_32 [1, 2] : vector<1x128x512xf32> to vector<1xf32>
    %70 = vector.shape_cast %69 : vector<1xf32> to vector<1x1x1xf32>
    %71 = vector.extract %70[0, 0, 0] : f32 from vector<1x1x1xf32>
    %72 = arith.mulf %67, %67 : vector<128x512xf32>
    %73 = vector.shape_cast %72 : vector<128x512xf32> to vector<1x128x512xf32>
    %cst_33 = arith.constant dense<0.000000e+00> : vector<1xf32>
    %74 = vector.multi_reduction <add>, %73, %cst_33 [1, 2] : vector<1x128x512xf32> to vector<1xf32>
    %75 = vector.shape_cast %74 : vector<1xf32> to vector<1x1x1xf32>
    %76 = vector.extract %75[0, 0, 0] : f32 from vector<1x1x1xf32>
    %cst_34 = arith.constant 1.52587891E-5 : f32
    %77 = arith.mulf %71, %cst_34 : f32
    %cst_35 = arith.constant 1.52587891E-5 : f32
    %78 = arith.mulf %76, %cst_35 : f32
    %79 = arith.mulf %77, %77 : f32
    %80 = arith.subf %78, %79 : f32
    %cst_36 = arith.constant 0.000000e+00 : f32
    %81 = arith.maximumf %80, %cst_36 : f32
    %c0_37 = arith.constant 0 : index
    %c0_38 = arith.constant 0 : index
    %82 = vector.load %arg10[%c0_37, %c0_38] : memref<1x512xf32, #tpu.memory_space<vmem>>, vector<1x512xf32>
    %83 = vector.broadcast %77 : f32 to vector<128x512xf32>
    %84 = arith.subf %67, %83 : vector<128x512xf32>
    %85 = vector.broadcast %82 : vector<1x512xf32> to vector<128x512xf32>
    %86 = arith.mulf %85, %84 : vector<128x512xf32>
    %cst_39 = arith.constant 9.99999993E-9 : f32
    %87 = arith.addf %81, %cst_39 : f32
    %88 = math.rsqrt %87 : f32
    %89 = vector.broadcast %88 : f32 to vector<128x512xf32>
    %90 = arith.mulf %86, %89 : vector<128x512xf32>
    %c0_40 = arith.constant 0 : index
    %c0_41 = arith.constant 0 : index
    %91 = vector.load %arg11[%c0_40, %c0_41] : memref<1x512xf32, #tpu.memory_space<vmem>>, vector<1x512xf32>
    %92 = vector.broadcast %91 : vector<1x512xf32> to vector<128x512xf32>
    %93 = arith.addf %90, %92 : vector<128x512xf32>
    %94 = arith.truncf %93 : vector<128x512xf32> to vector<128x512xbf16>
    %c0_42 = arith.constant 0 : index
    %c0_43 = arith.constant 0 : index
    %95 = vector.load %arg12[%c0_42, %c0_43] : memref<512x256xbf16, #tpu.memory_space<vmem>>, vector<512x256xbf16>
    %cst_44 = arith.constant dense<0.000000e+00> : vector<128x256xf32>
    %96 = tpu.matmul %94, %95, %cst_44 {dimension_numbers = #tpu.dot_dimension_numbers<[1], [0], [0], [1], [0, 0, 1, 1], [], []>} : vector<128x512xbf16>, vector<512x256xbf16>, vector<128x256xf32> -> vector<128x256xf32>
    %c0_45 = arith.constant 0 : index
    %c0_46 = arith.constant 0 : index
    %97 = vector.load %arg13[%c0_45, %c0_46] : memref<1x256xf32, #tpu.memory_space<vmem>>, vector<1x256xf32>
    %98 = vector.broadcast %97 : vector<1x256xf32> to vector<128x256xf32>
    %99 = arith.addf %96, %98 : vector<128x256xf32>
    %100 = arith.addf %1, %99 : vector<128x256xf32>
    %c0_47 = arith.constant 0 : index
    %c0_48 = arith.constant 0 : index
    %c0_49 = arith.constant 0 : index
    %101 = vector.load %arg14[%c0_47, %c0_48, %c0_49] : memref<1x128x256xf32, #tpu.memory_space<vmem>>, vector<1x128x256xf32>
    %102 = vector.shape_cast %101 : vector<1x128x256xf32> to vector<128x256xf32>
    %103 = vector.shape_cast %100 : vector<128x256xf32> to vector<1x128x256xf32>
    tpu.vector_store %arg14[%c0_47, %c0_48, %c0_49], %103 {strides = array<i32>} : memref<1x128x256xf32, #tpu.memory_space<vmem>>, vector<1x128x256xf32>,
    return
  }
  func.func @transform_0(%arg0: i32) -> (i32, i32, i32) {
    %c0_i32 = arith.constant 0 : i32
    %c0_i32_0 = arith.constant 0 : i32
    %c0_i32_1 = arith.constant 0 : i32
    return %arg0, %c0_i32, %c0_i32_0 : i32, i32, i32
  }
  func.func @transform_1(%arg0: i32) -> (i32, i32) {
    %c0_i32 = arith.constant 0 : i32
    %c0_i32_0 = arith.constant 0 : i32
    %c0_i32_1 = arith.constant 0 : i32
    return %c0_i32, %c0_i32_0 : i32, i32
  }
  func.func @transform_2(%arg0: i32) -> (i32, i32) {
    %c0_i32 = arith.constant 0 : i32
    %c0_i32_0 = arith.constant 0 : i32
    %c0_i32_1 = arith.constant 0 : i32
    return %c0_i32, %c0_i32_0 : i32, i32
  }
  func.func @transform_3(%arg0: i32) -> (i32, i32) {
    %c0_i32 = arith.constant 0 : i32
    %c0_i32_0 = arith.constant 0 : i32
    %c0_i32_1 = arith.constant 0 : i32
    return %c0_i32, %c0_i32_0 : i32, i32
  }
  func.func @transform_4(%arg0: i32) -> (i32, i32) {
    %c0_i32 = arith.constant 0 : i32
    %c0_i32_0 = arith.constant 0 : i32
    %c0_i32_1 = arith.constant 0 : i32
    return %c0_i32, %c0_i32_0 : i32, i32
  }
  func.func @transform_5(%arg0: i32) -> (i32, i32) {
    %c0_i32 = arith.constant 0 : i32
    %c0_i32_0 = arith.constant 0 : i32
    %c0_i32_1 = arith.constant 0 : i32
    return %c0_i32, %c0_i32_0 : i32, i32
  }
  func.func @transform_6(%arg0: i32) -> (i32, i32) {
    %c0_i32 = arith.constant 0 : i32
    %c0_i32_0 = arith.constant 0 : i32
    %c0_i32_1 = arith.constant 0 : i32
    return %c0_i32, %c0_i32_0 : i32, i32
  }
  func.func @transform_7(%arg0: i32) -> (i32, i32) {
    %c0_i32 = arith.constant 0 : i32
    %c0_i32_0 = arith.constant 0 : i32
    %c0_i32_1 = arith.constant 0 : i32
    return %c0_i32, %c0_i32_0 : i32, i32
  }
  func.func @transform_8(%arg0: i32) -> (i32, i32) {
    %c0_i32 = arith.constant 0 : i32
    %c0_i32_0 = arith.constant 0 : i32
    %c0_i32_1 = arith.constant 0 : i32
    return %c0_i32, %c0_i32_0 : i32, i32
  }
  func.func @transform_9(%arg0: i32) -> (i32, i32) {
    %c0_i32 = arith.constant 0 : i32
    %c0_i32_0 = arith.constant 0 : i32
    %c0_i32_1 = arith.constant 0 : i32
    return %c0_i32, %c0_i32_0 : i32, i32
  }
  func.func @transform_10(%arg0: i32) -> (i32, i32) {
    %c0_i32 = arith.constant 0 : i32
    %c0_i32_0 = arith.constant 0 : i32
    %c0_i32_1 = arith.constant 0 : i32
    return %c0_i32, %c0_i32_0 : i32, i32
  }
  func.func @transform_11(%arg0: i32) -> (i32, i32) {
    %c0_i32 = arith.constant 0 : i32
    %c0_i32_0 = arith.constant 0 : i32
    %c0_i32_1 = arith.constant 0 : i32
    return %c0_i32, %c0_i32_0 : i32, i32
  }
  func.func @transform_12(%arg0: i32) -> (i32, i32) {
    %c0_i32 = arith.constant 0 : i32
    %c0_i32_0 = arith.constant 0 : i32
    %c0_i32_1 = arith.constant 0 : i32
    return %c0_i32, %c0_i32_0 : i32, i32
  }
  func.func @transform_13(%arg0: i32) -> (i32, i32, i32) {
    %c0_i32 = arith.constant 0 : i32
    %c0_i32_0 = arith.constant 0 : i32
    %c0_i32_1 = arith.constant 0 : i32
    return %arg0, %c0_i32, %c0_i32_0 : i32, i32, i32
  }
}

</mosaic_0001>

<llo_original>
// kernel: tpu_custom_call.1
$region0: #{tpu_custom_call.1}
  #allocation0 [shape = 'u32[]', space=smem, size = 0x4, offset = 0x4, fixed_abs, tag = 'smem constant byte address 0x4 - core index']
  #allocation1 [shape = 'u32[144,128]{1,0:T(1,128)}', space=vmem, size = 0x12000, scoped, tag = 'internal scratch']
  #allocation2 [shape = 'f32[137,512]{1,0:T(8,128)}', space=vmem, size = 0x48000, scoped, tag = 'scratch operand']
  #allocation3 [shape = 'f32[1,1]{1,0:T(1,128)S(6)}', space=smem, size = 0x200, scoped, tag = 'scoped memory for tpu_custom_call.1']
  #allocation4 [shape = 'f32[1,1]{1,0:T(1,128)S(6)}', space=smem, size = 0x200, scoped, tag = 'scoped memory for tpu_custom_call.1']
  %s0 = inlined_call_operand.hbm [shape: f32[2,128,256], index: 0, kind: input, shape index: {}]
  %s1 = inlined_call_operand.hbm [shape: bf16[256,512], index: 1, kind: input, shape index: {}]
  %s2 = inlined_call_operand.vmem [shape: f32[1,512], index: 2, kind: input, shape index: {}]
  %s3 = inlined_call_operand.<no memory space> [shape: f32[1,1], index: 3, kind: input, shape index: {}]
  %s4 = inlined_call_operand.vmem [shape: f32[1,512], index: 4, kind: input, shape index: {}]
  %s5 = inlined_call_operand.hbm [shape: f32[1,512], index: 5, kind: input, shape index: {}]
  %s6 = inlined_call_operand.vmem [shape: f32[3,512], index: 6, kind: input, shape index: {}]
  %s7 = inlined_call_operand.vmem [shape: f32[1,512], index: 7, kind: input, shape index: {}]
  %s8 = inlined_call_operand.<no memory space> [shape: f32[1,1], index: 8, kind: input, shape index: {}]
  %s9 = inlined_call_operand.vmem [shape: f32[1,512], index: 9, kind: input, shape index: {}]
  %s10 = inlined_call_operand.vmem [shape: f32[1,512], index: 10, kind: input, shape index: {}]
  %s11 = inlined_call_operand.hbm [shape: bf16[512,256], index: 11, kind: input, shape index: {}]
  %s12 = inlined_call_operand.vmem [shape: f32[1,256], index: 12, kind: input, shape index: {}]
  %s13 = inlined_call_operand.hbm [shape: f32[2,128,256], index: 13, kind: output, shape index: {}]
  %s14 = sld [smem:[#allocation0]]
  $region105: #{tpu_custom_call.1} parent=0
    _
  %s16 = ssub.s32 1, %s14
  %s17 = scalar_select 0, %s16, %s14
  %18 = sst [smem:[#allocation3]] %s3
  %19 = sst [smem:[#allocation4]] %s8
  $region1: #{tpu_custom_call.1} parent=0
    #allocation5 [shape = 'u8[262144]{0}', space=vmem, size = 0x40000, scoped, tag = 'input window, operand 0']
    #allocation6 [shape = 's32[2]{0}', space=sflag, size = 0x8, scoped, tag = 'scoped memory for tpu_custom_call.1']
    #allocation7 [shape = 's32[2]{0}', space=sflag, size = 0x8, scoped, tag = 'scoped memory for tpu_custom_call.1']
    #allocation8 [shape = 'u8[262144]{0}', space=vmem, size = 0x40000, scoped, tag = 'input window, operand 1, single buffered']
    #allocation9 [shape = 's32[1]{0}', space=sflag, size = 0x4, scoped, tag = 'scoped memory for tpu_custom_call.1']
    #allocation10 [shape = 'u8[2048]{0}', space=vmem, size = 0x800, scoped, tag = 'input window, operand 5, single buffered']
    #allocation11 [shape = 'u8[262144]{0}', space=vmem, size = 0x40000, scoped, tag = 'input window, operand 11, single buffered']
    #allocation12 [shape = 's32[1]{0}', space=sflag, size = 0x4, scoped, tag = 'scoped memory for tpu_custom_call.1']
    #allocation13 [shape = 'u8[262144]{0}', space=vmem, size = 0x40000, scoped, tag = 'output window, operand 0']
    %20 = vsyncpa [#allocation6], 0
    %s21 = scalar_lea.sflag [#allocation6], 1
    %22 = vsyncpa %s21, 0
    %23 = vsyncpa [#allocation9], 0
    %24 = vsyncpa [#allocation12], 0
    %25 = vsyncpa [#allocation7], 0
    %s26 = scalar_lea.sflag [#allocation7], 1
    %27 = vsyncpa %s26, 0
    loop: start=0, step=1, limit=4
    $region2: #{tpu_custom_call.1} parent=1 // loop_pre_header
      _
    $region3: #{tpu_custom_call.1} parent=1 // loop_header
      %s29 = sphi 0, %s33
      %p30 = scmp.ge.s32.totalorder %s29, 4
      %s39 = sphi 0, %s41
      %s42 = sphi 0, %s39
      %s43 = sphi 0, %s42
      %s59 = sphi 0, %s43
      %s63 = sphi 0, %s63
      %s65 = sphi 0, %s63
      %s66 = sphi 0, %s65
      %s80 = sphi 0, %s66
      %s84 = sphi 0, %s84
      %s86 = sphi 0, %s84
      %s87 = sphi 0, %s86
      %s101 = sphi 0, %s87
      %s105 = sphi 0, %s105
      %s107 = sphi 0, %s105
      %s108 = sphi 0, %s107
      %s122 = sphi 0, %s108
      %s126 = sphi 0, %s126
      %s128 = sphi 0, %s126
      %s129 = sphi 0, %s128
      %s143 = sphi 0, %s129
      %s147 = sphi 0, %s147
      %s149 = sphi 0, %s147
      %s150 = sphi 0, %s149
      %s164 = sphi 0, %s150
      %s168 = sphi 0, %s168
      %s170 = sphi 0, %s168
      %s171 = sphi 0, %s170
      %s185 = sphi 0, %s171
      %s189 = sphi 0, %s189
      %s191 = sphi 0, %s189
      %s192 = sphi 0, %s191
      %s206 = sphi 0, %s192
      %s210 = sphi 0, %s210
      %s212 = sphi 0, %s210
      %s213 = sphi 0, %s212
      %s227 = sphi 0, %s213
      %s231 = sphi 0, %s231
      %s233 = sphi 0, %s231
      %s234 = sphi 0, %s233
      %s248 = sphi 0, %s234
      %s252 = sphi 0, %s252
      %s254 = sphi 0, %s252
      %s255 = sphi 0, %s254
      %s269 = sphi 0, %s255
      %s273 = sphi 0, %s273
      %s275 = sphi 0, %s273
      %s276 = sphi 0, %s275
      %s290 = sphi 0, %s276
      %s294 = sphi 0, %s294
      %s296 = sphi 0, %s294
      %s297 = sphi 0, %s296
      %s311 = sphi 0, %s297
      %s317 = sphi 0, %s319
      %s320 = sphi 0, %s317
      %s321 = sphi 0, %s320
      %s337 = sphi 0, %s321
    $region4: #{tpu_custom_call.1} parent=1 // loop_header_branch
      %32 = sbr.rel (%p30) target = $region8
    $region5: #{tpu_custom_call.1} parent=1 // loop_body
      %s34 = ssub.s32 %s29, 1
      %s35 = ssub.s32 %s29, 2
      %s36 = sadd.s32 %s29, 1
      %s37 = ssub.s32 %s29, %s36
      %p38 = scmp.eq.s32.totalorder %s37, 0
      %s40 = sadd.s32 %s39, 1
      %s41 = scalar_select %p38, %s39, %s40
      %p44 = pneg %p38
      %p45 = scmp.eq.s32.totalorder %s29, 1
      %p46 = por %p44, %p45
      %p47 = scmp.ne.s32.totalorder %s39, %s42
      %p48 = scmp.eq.s32.totalorder %s29, 0
      %p49 = por %p47, %p48
      %p50 = scmp.ne.s32.totalorder %s39, %s42
      %p51 = scmp.eq.s32.totalorder %s34, 1
      %p52 = por %p50, %p51
      %p53 = scmp.ne.s32.totalorder %s42, %s43
      %p54 = scmp.eq.s32.totalorder %s34, 0
      %p55 = por %p53, %p54
      %p56 = scmp.ne.s32.totalorder %s42, %s43
      %p57 = scmp.eq.s32.totalorder %s35, 1
      %p58 = por %p56, %p57
      %p60 = scmp.ne.s32.totalorder %s43, %s59
      %p61 = scmp.eq.s32.totalorder %s35, 0
      %p62 = por %p60, %p61
      %s64 = sadd.s32 %s63, 1
      %p67 = scmp.eq.s32.totalorder %s29, 1
      %p68 = scmp.ne.s32.totalorder %s63, %s65
      %p69 = scmp.eq.s32.totalorder %s29, 0
      %p70 = por %p68, %p69
      %p71 = scmp.ne.s32.totalorder %s63, %s65
      %p72 = scmp.eq.s32.totalorder %s34, 1
      %p73 = por %p71, %p72
      %p74 = scmp.ne.s32.totalorder %s65, %s66
      %p75 = scmp.eq.s32.totalorder %s34, 0
      %p76 = por %p74, %p75
      %p77 = scmp.ne.s32.totalorder %s65, %s66
      %p78 = scmp.eq.s32.totalorder %s35, 1
      %p79 = por %p77, %p78
      %p81 = scmp.ne.s32.totalorder %s66, %s80
      %p82 = scmp.eq.s32.totalorder %s35, 0
      %p83 = por %p81, %p82
      %s85 = sadd.s32 %s84, 1
      %p88 = scmp.eq.s32.totalorder %s29, 1
      %p89 = scmp.ne.s32.totalorder %s84, %s86
      %p90 = scmp.eq.s32.totalorder %s29, 0
      %p91 = por %p89, %p90
      %p92 = scmp.ne.s32.totalorder %s84, %s86
      %p93 = scmp.eq.s32.totalorder %s34, 1
      %p94 = por %p92, %p93
      %p95 = scmp.ne.s32.totalorder %s86, %s87
      %p96 = scmp.eq.s32.totalorder %s34, 0
      %p97 = por %p95, %p96
      %p98 = scmp.ne.s32.totalorder %s86, %s87
      %p99 = scmp.eq.s32.totalorder %s35, 1
      %p100 = por %p98, %p99
      %p102 = scmp.ne.s32.totalorder %s87, %s101
      %p103 = scmp.eq.s32.totalorder %s35, 0
      %p104 = por %p102, %p103
      %s106 = sadd.s32 %s105, 1
      %p109 = scmp.eq.s32.totalorder %s29, 1
      %p110 = scmp.ne.s32.totalorder %s105, %s107
      %p111 = scmp.eq.s32.totalorder %s29, 0
      %p112 = por %p110, %p111
      %p113 = scmp.ne.s32.totalorder %s105, %s107
      %p114 = scmp.eq.s32.totalorder %s34, 1
      %p115 = por %p113, %p114
      %p116 = scmp.ne.s32.totalorder %s107, %s108
      %p117 = scmp.eq.s32.totalorder %s34, 0
      %p118 = por %p116, %p117
      %p119 = scmp.ne.s32.totalorder %s107, %s108
      %p120 = scmp.eq.s32.totalorder %s35, 1
      %p121 = por %p119, %p120
      %p123 = scmp.ne.s32.totalorder %s108, %s122
      %p124 = scmp.eq.s32.totalorder %s35, 0
      %p125 = por %p123, %p124
      %s127 = sadd.s32 %s126, 1
      %p130 = scmp.eq.s32.totalorder %s29, 1
      %p131 = scmp.ne.s32.totalorder %s126, %s128
      %p132 = scmp.eq.s32.totalorder %s29, 0
      %p133 = por %p131, %p132
      %p134 = scmp.ne.s32.totalorder %s126, %s128
      %p135 = scmp.eq.s32.totalorder %s34, 1
      %p136 = por %p134, %p135
      %p137 = scmp.ne.s32.totalorder %s128, %s129
      %p138 = scmp.eq.s32.totalorder %s34, 0
      %p139 = por %p137, %p138
      %p140 = scmp.ne.s32.totalorder %s128, %s129
      %p141 = scmp.eq.s32.totalorder %s35, 1
      %p142 = por %p140, %p141
      %p144 = scmp.ne.s32.totalorder %s129, %s143
      %p145 = scmp.eq.s32.totalorder %s35, 0
      %p146 = por %p144, %p145
      %s148 = sadd.s32 %s147, 1
      %p151 = scmp.eq.s32.totalorder %s29, 1
      %p152 = scmp.ne.s32.totalorder %s147, %s149
      %p153 = scmp.eq.s32.totalorder %s29, 0
      %p154 = por %p152, %p153
      %p155 = scmp.ne.s32.totalorder %s147, %s149
      %p156 = scmp.eq.s32.totalorder %s34, 1
      %p157 = por %p155, %p156
      %p158 = scmp.ne.s32.totalorder %s149, %s150
      %p159 = scmp.eq.s32.totalorder %s34, 0
      %p160 = por %p158, %p159
      %p161 = scmp.ne.s32.totalorder %s149, %s150
      %p162 = scmp.eq.s32.totalorder %s35, 1
      %p163 = por %p161, %p162
      %p165 = scmp.ne.s32.totalorder %s150, %s164
      %p166 = scmp.eq.s32.totalorder %s35, 0
      %p167 = por %p165, %p166
      %s169 = sadd.s32 %s168, 1
      %p172 = scmp.eq.s32.totalorder %s29, 1
      %p173 = scmp.ne.s32.totalorder %s168, %s170
      %p174 = scmp.eq.s32.totalorder %s29, 0
      %p175 = por %p173, %p174
      %p176 = scmp.ne.s32.totalorder %s168, %s170
      %p177 = scmp.eq.s32.totalorder %s34, 1
      %p178 = por %p176, %p177
      %p179 = scmp.ne.s32.totalorder %s170, %s171
      %p180 = scmp.eq.s32.totalorder %s34, 0
      %p181 = por %p179, %p180
      %p182 = scmp.ne.s32.totalorder %s170, %s171
      %p183 = scmp.eq.s32.totalorder %s35, 1
      %p184 = por %p182, %p183
      %p186 = scmp.ne.s32.totalorder %s171, %s185
      %p187 = scmp.eq.s32.totalorder %s35, 0
      %p188 = por %p186, %p187
      %s190 = sadd.s32 %s189, 1
      %p193 = scmp.eq.s32.totalorder %s29, 1
      %p194 = scmp.ne.s32.totalorder %s189, %s191
      %p195 = scmp.eq.s32.totalorder %s29, 0
      %p196 = por %p194, %p195
      %p197 = scmp.ne.s32.totalorder %s189, %s191
      %p198 = scmp.eq.s32.totalorder %s34, 1
      %p199 = por %p197, %p198
      %p200 = scmp.ne.s32.totalorder %s191, %s192
      %p201 = scmp.eq.s32.totalorder %s34, 0
      %p202 = por %p200, %p201
      %p203 = scmp.ne.s32.totalorder %s191, %s192
      %p204 = scmp.eq.s32.totalorder %s35, 1
      %p205 = por %p203, %p204
      %p207 = scmp.ne.s32.totalorder %s192, %s206
      %p208 = scmp.eq.s32.totalorder %s35, 0
      %p209 = por %p207, %p208
      %s211 = sadd.s32 %s210, 1
      %p214 = scmp.eq.s32.totalorder %s29, 1
      %p215 = scmp.ne.s32.totalorder %s210, %s212
      %p216 = scmp.eq.s32.totalorder %s29, 0
      %p217 = por %p215, %p216
      %p218 = scmp.ne.s32.totalorder %s210, %s212
      %p219 = scmp.eq.s32.totalorder %s34, 1
      %p220 = por %p218, %p219
      %p221 = scmp.ne.s32.totalorder %s212, %s213
      %p222 = scmp.eq.s32.totalorder %s34, 0
      %p223 = por %p221, %p222
      %p224 = scmp.ne.s32.totalorder %s212, %s213
      %p225 = scmp.eq.s32.totalorder %s35, 1
      %p226 = por %p224, %p225
      %p228 = scmp.ne.s32.totalorder %s213, %s227
      %p229 = scmp.eq.s32.totalorder %s35, 0
      %p230 = por %p228, %p229
      %s232 = sadd.s32 %s231, 1
      %p235 = scmp.eq.s32.totalorder %s29, 1
      %p236 = scmp.ne.s32.totalorder %s231, %s233
      %p237 = scmp.eq.s32.totalorder %s29, 0
      %p238 = por %p236, %p237
      %p239 = scmp.ne.s32.totalorder %s231, %s233
      %p240 = scmp.eq.s32.totalorder %s34, 1
      %p241 = por %p239, %p240
      %p242 = scmp.ne.s32.totalorder %s233, %s234
      %p243 = scmp.eq.s32.totalorder %s34, 0
      %p244 = por %p242, %p243
      %p245 = scmp.ne.s32.totalorder %s233, %s234
      %p246 = scmp.eq.s32.totalorder %s35, 1
      %p247 = por %p245, %p246
      %p249 = scmp.ne.s32.totalorder %s234, %s248
      %p250 = scmp.eq.s32.totalorder %s35, 0
      %p251 = por %p249, %p250
      %s253 = sadd.s32 %s252, 1
      %p256 = scmp.eq.s32.totalorder %s29, 1
      %p257 = scmp.ne.s32.totalorder %s252, %s254
      %p258 = scmp.eq.s32.totalorder %s29, 0
      %p259 = por %p257, %p258
      %p260 = scmp.ne.s32.totalorder %s252, %s254
      %p261 = scmp.eq.s32.totalorder %s34, 1
      %p262 = por %p260, %p261
      %p263 = scmp.ne.s32.totalorder %s254, %s255
      %p264 = scmp.eq.s32.totalorder %s34, 0
      %p265 = por %p263, %p264
      %p266 = scmp.ne.s32.totalorder %s254, %s255
      %p267 = scmp.eq.s32.totalorder %s35, 1
      %p268 = por %p266, %p267
      %p270 = scmp.ne.s32.totalorder %s255, %s269
      %p271 = scmp.eq.s32.totalorder %s35, 0
      %p272 = por %p270, %p271
      %s274 = sadd.s32 %s273, 1
      %p277 = scmp.eq.s32.totalorder %s29, 1
      %p278 = scmp.ne.s32.totalorder %s273, %s275
      %p279 = scmp.eq.s32.totalorder %s29, 0
      %p280 = por %p278, %p279
      %p281 = scmp.ne.s32.totalorder %s273, %s275
      %p282 = scmp.eq.s32.totalorder %s34, 1
      %p283 = por %p281, %p282
      %p284 = scmp.ne.s32.totalorder %s275, %s276
      %p285 = scmp.eq.s32.totalorder %s34, 0
      %p286 = por %p284, %p285
      %p287 = scmp.ne.s32.totalorder %s275, %s276
      %p288 = scmp.eq.s32.totalorder %s35, 1
      %p289 = por %p287, %p288
      %p291 = scmp.ne.s32.totalorder %s276, %s290
      %p292 = scmp.eq.s32.totalorder %s35, 0
      %p293 = por %p291, %p292
      %s295 = sadd.s32 %s294, 1
      %p298 = scmp.eq.s32.totalorder %s29, 1
      %p299 = scmp.ne.s32.totalorder %s294, %s296
      %p300 = scmp.eq.s32.totalorder %s29, 0
      %p301 = por %p299, %p300
      %p302 = scmp.ne.s32.totalorder %s294, %s296
      %p303 = scmp.eq.s32.totalorder %s34, 1
      %p304 = por %p302, %p303
      %p305 = scmp.ne.s32.totalorder %s296, %s297
      %p306 = scmp.eq.s32.totalorder %s34, 0
      %p307 = por %p305, %p306
      %p308 = scmp.ne.s32.totalorder %s296, %s297
      %p309 = scmp.eq.s32.totalorder %s35, 1
      %p310 = por %p308, %p309
      %p312 = scmp.ne.s32.totalorder %s297, %s311
      %p313 = scmp.eq.s32.totalorder %s35, 0
      %p314 = por %p312, %p313
      %s315 = ssub.s32 %s29, %s36
      %p316 = scmp.eq.s32.totalorder %s315, 0
      %s318 = sadd.s32 %s317, 1
      %s319 = scalar_select %p316, %s317, %s318
      %p322 = pneg %p316
      %p323 = scmp.eq.s32.totalorder %s29, 1
      %p324 = por %p322, %p323
      %p325 = scmp.ne.s32.totalorder %s317, %s320
      %p326 = scmp.eq.s32.totalorder %s29, 0
      %p327 = por %p325, %p326
      %p328 = scmp.ne.s32.totalorder %s317, %s320
      %p329 = scmp.eq.s32.totalorder %s34, 1
      %p330 = por %p328, %p329
      %p331 = scmp.ne.s32.totalorder %s320, %s321
      %p332 = scmp.eq.s32.totalorder %s34, 0
      %p333 = por %p331, %p332
      %p334 = scmp.ne.s32.totalorder %s320, %s321
      %p335 = scmp.eq.s32.totalorder %s35, 1
      %p336 = por %p334, %p335
      %p338 = scmp.ne.s32.totalorder %s321, %s337
      %p339 = scmp.eq.s32.totalorder %s35, 0
      %p340 = por %p338, %p339
      %p341 = scmp.le.s32.totalorder 1, %s29
      %p342 = scmp.lt.s32.totalorder %s29, 3
      %p343 = pnand %p341, %p342
      %p344 = pneg %p343
      // Predicated region
      $region9: #{tpu_custom_call.1} parent=5 // pred_check
        _
      $region10: #{tpu_custom_call.1} parent=5 // pred_check_branch
        %346 = sbr.rel (%p343) target = $region12
      $region11: #{tpu_custom_call.1} parent=5 // pred_region
        %s347 = ssub.s32 %s29, 1
        // Predicated region
        $region13: #{tpu_custom_call.1} parent=11 // pred_check
          %p348 = pneg %p76
        $region14: #{tpu_custom_call.1} parent=11 // pred_check_branch
          %350 = sbr.rel (%p348) target = $region16
        $region15: #{tpu_custom_call.1} parent=11 // pred_region
          %s352 = ssub.s32 8192, 8192
          %353 = vsyncadd [#allocation9], %s352
          %s354 = sshll.u32 [#allocation8], 4
          %s355 = int_to_ptr.vmem [resolvable:$true] %s354
          %360 = dma.hbm_to_vmem [thread:$0]  %s1, 8192, %s355, [#allocation9], 256, 256, 16
        $region16: #{tpu_custom_call.1} parent=11 // pred_fallthru
          _
        // Predicated region
        $region17: #{tpu_custom_call.1} parent=11 // pred_check
          %p361 = pneg %p97
        $region18: #{tpu_custom_call.1} parent=11 // pred_check_branch
          %363 = sbr.rel (%p361) target = $region20
        $region19: #{tpu_custom_call.1} parent=11 // pred_region
          _
        $region20: #{tpu_custom_call.1} parent=11 // pred_fallthru
          _
        // Predicated region
        $region21: #{tpu_custom_call.1} parent=11 // pred_check
          %p364 = pneg %p118
        $region22: #{tpu_custom_call.1} parent=11 // pred_check_branch
          %366 = sbr.rel (%p364) target = $region24
        $region23: #{tpu_custom_call.1} parent=11 // pred_region
          _
        $region24: #{tpu_custom_call.1} parent=11 // pred_fallthru
          _
        // Predicated region
        $region25: #{tpu_custom_call.1} parent=11 // pred_check
          %p367 = pneg %p139
        $region26: #{tpu_custom_call.1} parent=11 // pred_check_branch
          %369 = sbr.rel (%p367) target = $region28
        $region27: #{tpu_custom_call.1} parent=11 // pred_region
          _
        $region28: #{tpu_custom_call.1} parent=11 // pred_fallthru
          _
        // Predicated region
        $region29: #{tpu_custom_call.1} parent=11 // pred_check
          %p370 = pneg %p160
        $region30: #{tpu_custom_call.1} parent=11 // pred_check_branch
          %372 = sbr.rel (%p370) target = $region32
        $region31: #{tpu_custom_call.1} parent=11 // pred_region
          %s374 = ssub.s32 64, 64
          %375 = vsyncadd [#allocation9], %s374
          %s377 = sshll.u32 [#allocation10], 4
          %s378 = int_to_ptr.vmem [resolvable:$true] %s377
          %380 = dma.hbm_to_vmem [thread:$0]  %s5, 64, %s378, [#allocation9]
        $region32: #{tpu_custom_call.1} parent=11 // pred_fallthru
          _
        // Predicated region
        $region33: #{tpu_custom_call.1} parent=11 // pred_check
          %p381 = pneg %p181
        $region34: #{tpu_custom_call.1} parent=11 // pred_check_branch
          %383 = sbr.rel (%p381) target = $region36
        $region35: #{tpu_custom_call.1} parent=11 // pred_region
          _
        $region36: #{tpu_custom_call.1} parent=11 // pred_fallthru
          _
        // Predicated region
        $region37: #{tpu_custom_call.1} parent=11 // pred_check
          %p384 = pneg %p202
        $region38: #{tpu_custom_call.1} parent=11 // pred_check_branch
          %386 = sbr.rel (%p384) target = $region40
        $region39: #{tpu_custom_call.1} parent=11 // pred_region
          _
        $region40: #{tpu_custom_call.1} parent=11 // pred_fallthru
          _
        // Predicated region
        $region41: #{tpu_custom_call.1} parent=11 // pred_check
          %p387 = pneg %p223
        $region42: #{tpu_custom_call.1} parent=11 // pred_check_branch
          %389 = sbr.rel (%p387) target = $region44
        $region43: #{tpu_custom_call.1} parent=11 // pred_region
          _
        $region44: #{tpu_custom_call.1} parent=11 // pred_fallthru
          _
        // Predicated region
        $region45: #{tpu_custom_call.1} parent=11 // pred_check
          %p390 = pneg %p244
        $region46: #{tpu_custom_call.1} parent=11 // pred_check_branch
          %392 = sbr.rel (%p390) target = $region48
        $region47: #{tpu_custom_call.1} parent=11 // pred_region
          _
        $region48: #{tpu_custom_call.1} parent=11 // pred_fallthru
          _
        // Predicated region
        $region49: #{tpu_custom_call.1} parent=11 // pred_check
          %p393 = pneg %p265
        $region50: #{tpu_custom_call.1} parent=11 // pred_check_branch
          %395 = sbr.rel (%p393) target = $region52
        $region51: #{tpu_custom_call.1} parent=11 // pred_region
          _
        $region52: #{tpu_custom_call.1} parent=11 // pred_fallthru
          _
        // Predicated region
        $region53: #{tpu_custom_call.1} parent=11 // pred_check
          %p396 = pneg %p286
        $region54: #{tpu_custom_call.1} parent=11 // pred_check_branch
          %398 = sbr.rel (%p396) target = $region56
        $region55: #{tpu_custom_call.1} parent=11 // pred_region
          %s400 = ssub.s32 8192, 8192
          %401 = vsyncadd [#allocation12], %s400
          %s402 = sshll.u32 [#allocation11], 4
          %s403 = int_to_ptr.vmem [resolvable:$true] %s402
          %408 = dma.hbm_to_vmem [thread:$0]  %s11, 8192, %s403, [#allocation12], 128, 128, 8
        $region56: #{tpu_custom_call.1} parent=11 // pred_fallthru
          _
        // Predicated region
        $region57: #{tpu_custom_call.1} parent=11 // pred_check
          %p409 = pneg %p307
        $region58: #{tpu_custom_call.1} parent=11 // pred_check_branch
          %411 = sbr.rel (%p409) target = $region60
        $region59: #{tpu_custom_call.1} parent=11 // pred_region
          _
        $region60: #{tpu_custom_call.1} parent=11 // pred_fallthru
          _
      $region12: #{tpu_custom_call.1} parent=5 // pred_fallthru
        _
      %p412 = scmp.lt.s32.totalorder %s29, 2
      // Predicated region
      $region61: #{tpu_custom_call.1} parent=5 // pred_check
        %p413 = pneg %p412
      $region62: #{tpu_custom_call.1} parent=5 // pred_check_branch
        %415 = sbr.rel (%p413) target = $region64
      $region63: #{tpu_custom_call.1} parent=5 // pred_region
        // Predicated region
        $region65: #{tpu_custom_call.1} parent=63 // pred_check
          %p416 = pneg %p49
        $region66: #{tpu_custom_call.1} parent=63 // pred_check_branch
          %418 = sbr.rel (%p416) target = $region68
        $region67: #{tpu_custom_call.1} parent=63 // pred_region
          %s419 = sand.u32 %s39, 1
          %s420 = scalar_lea.sflag [#allocation6], %s419
          %s421 = sand.u32 %s39, 1
          %s422 = smul.addr %s421, 256
          %s423 = scalar_lea.vmem [#allocation5], %s422
          %s425 = ssub.s32 4096, 4096
          %426 = vsyncadd %s420, %s425
          %s427 = smul.addr %s29, 32
          %s428 = smul.addr %s427, 128
          %s429 = scalar_lea.hbm %s0, %s428
          %s430 = sshll.u32 %s423, 4
          %s431 = int_to_ptr.vmem [resolvable:$true] %s430
          %436 = dma.hbm_to_vmem [thread:$0]  %s429, 4096, %s431, %s420, 256, 256, 16
        $region68: #{tpu_custom_call.1} parent=63 // pred_fallthru
          _
      $region64: #{tpu_custom_call.1} parent=5 // pred_fallthru
        _
      %p437 = scmp.le.s32.totalorder 1, %s29
      %p438 = scmp.lt.s32.totalorder %s29, 3
      %p439 = pnand %p437, %p438
      %p440 = pneg %p439
      // Predicated region
      $region69: #{tpu_custom_call.1} parent=5 // pred_check
        _
      $region70: #{tpu_custom_call.1} parent=5 // pred_check_branch
        %442 = sbr.rel (%p439) target = $region72
      $region71: #{tpu_custom_call.1} parent=5 // pred_region
        %s443 = ssub.s32 %s29, 1
        %s444 = sand.u32 %s42, 1
        %s445 = scalar_lea.sflag [#allocation6], %s444
        %s446 = sand.u32 %s42, 1
        %s447 = smul.addr %s446, 256
        %s448 = scalar_lea.vmem [#allocation5], %s447
        // Predicated region
        $region73: #{tpu_custom_call.1} parent=71 // pred_check
          %p449 = pneg %p55
        $region74: #{tpu_custom_call.1} parent=71 // pred_check_branch
          %451 = sbr.rel (%p449) target = $region76
        $region75: #{tpu_custom_call.1} parent=71 // pred_region
          %452 = dma.done %s445, 4096
        $region76: #{tpu_custom_call.1} parent=71 // pred_fallthru
          _
        // Predicated region
        $region77: #{tpu_custom_call.1} parent=71 // pred_check
          %p453 = pneg %p76
        $region78: #{tpu_custom_call.1} parent=71 // pred_check_branch
          %455 = sbr.rel (%p453) target = $region80
        $region79: #{tpu_custom_call.1} parent=71 // pred_region
          %456 = dma.done [#allocation9], 8192
        $region80: #{tpu_custom_call.1} parent=71 // pred_fallthru
          _
        // Predicated region
        $region81: #{tpu_custom_call.1} parent=71 // pred_check
          %p457 = pneg %p160
        $region82: #{tpu_custom_call.1} parent=71 // pred_check_branch
          %459 = sbr.rel (%p457) target = $region84
        $region83: #{tpu_custom_call.1} parent=71 // pred_region
          %460 = dma.done [#allocation9], 64
        $region84: #{tpu_custom_call.1} parent=71 // pred_fallthru
          _
        // Predicated region
        $region85: #{tpu_custom_call.1} parent=71 // pred_check
          %p461 = pneg %p286
        $region86: #{tpu_custom_call.1} parent=71 // pred_check_branch
          %463 = sbr.rel (%p461) target = $region88
        $region87: #{tpu_custom_call.1} parent=71 // pred_region
          %464 = dma.done [#allocation12], 8192
        $region88: #{tpu_custom_call.1} parent=71 // pred_fallthru
          _
        %s465 = sand.u32 %s42, 1
        %s466 = scalar_lea.sflag [#allocation6], %s465
        %s467 = sand.u32 %s42, 1
        %s468 = smul.addr %s467, 256
        %s469 = scalar_lea.vmem [#allocation5], %s468
        %p470 = pneg %p55
        %p471 = pneg %p52
        %p472 = pneg %p76
        %p473 = pneg %p73
        %p474 = pneg %p97
        %p475 = pneg %p94
        %p476 = pneg %p118
        %p477 = pneg %p115
        %p478 = pneg %p139
        %p479 = pneg %p136
        %p480 = pneg %p160
        %p481 = pneg %p157
        %p482 = pneg %p181
        %p483 = pneg %p178
        %p484 = pneg %p202
        %p485 = pneg %p199
        %p486 = pneg %p223
        %p487 = pneg %p220
        %p488 = pneg %p244
        %p489 = pneg %p241
        %p490 = pneg %p265
        %p491 = pneg %p262
        %p492 = pneg %p286
        %p493 = pneg %p283
        %p494 = pneg %p307
        %p495 = pneg %p304
        %p496 = pneg %p333
        %p497 = pneg %p330
        %s498 = sand.u32 %s320, 1
        %s499 = scalar_lea.sflag [#allocation7], %s498
        %s500 = sand.u32 %s320, 1
        %s501 = smul.addr %s500, 256
        %s502 = scalar_lea.vmem [#allocation13], %s501
        %v503 = vld [vmem:[%s448] sm:$0xff]
        %v504 = vld [vmem:[%s448 + $0x8] sm:$0xff]
        %v505 = vld [vmem:[%s448 + $0x10] sm:$0xff]
        %v506 = vld [vmem:[%s448 + $0x18] sm:$0xff]
        %v507 = vld [vmem:[%s448 + $0x20] sm:$0xff]
        %v508 = vld [vmem:[%s448 + $0x28] sm:$0xff]
        %v509 = vld [vmem:[%s448 + $0x30] sm:$0xff]
        %v510 = vld [vmem:[%s448 + $0x38] sm:$0xff]
        %v511 = vld [vmem:[%s448 + $0x40] sm:$0xff]
        %v512 = vld [vmem:[%s448 + $0x48] sm:$0xff]
        %v513 = vld [vmem:[%s448 + $0x50] sm:$0xff]
        %v514 = vld [vmem:[%s448 + $0x58] sm:$0xff]
        %v515 = vld [vmem:[%s448 + $0x60] sm:$0xff]
        %v516 = vld [vmem:[%s448 + $0x68] sm:$0xff]
        %v517 = vld [vmem:[%s448 + $0x70] sm:$0xff]
        %v518 = vld [vmem:[%s448 + $0x78] sm:$0xff]
        %v519 = vld [vmem:[%s448 + $0x80] sm:$0xff]
        %v520 = vld [vmem:[%s448 + $0x88] sm:$0xff]
        %v521 = vld [vmem:[%s448 + $0x90] sm:$0xff]
        %v522 = vld [vmem:[%s448 + $0x98] sm:$0xff]
        %v523 = vld [vmem:[%s448 + $0xa0] sm:$0xff]
        %v524 = vld [vmem:[%s448 + $0xa8] sm:$0xff]
        %v525 = vld [vmem:[%s448 + $0xb0] sm:$0xff]
        %v526 = vld [vmem:[%s448 + $0xb8] sm:$0xff]
        %v527 = vld [vmem:[%s448 + $0xc0] sm:$0xff]
        %v528 = vld [vmem:[%s448 + $0xc8] sm:$0xff]
        %v529 = vld [vmem:[%s448 + $0xd0] sm:$0xff]
        %v530 = vld [vmem:[%s448 + $0xd8] sm:$0xff]
        %v531 = vld [vmem:[%s448 + $0xe0] sm:$0xff]
        %v532 = vld [vmem:[%s448 + $0xe8] sm:$0xff]
        %v533 = vld [vmem:[%s448 + $0xf0] sm:$0xff]
        %v534 = vld [vmem:[%s448 + $0xf8] sm:$0xff]
        %v535 = vpack.c.bf16 %v505, %v503
        %v536 = vpack.c.bf16 %v506, %v504
        %v537 = vpack.c.bf16 %v509, %v507
        %v538 = vpack.c.bf16 %v510, %v508
        %v539 = vpack.c.bf16 %v513, %v511
        %v540 = vpack.c.bf16 %v514, %v512
        %v541 = vpack.c.bf16 %v517, %v515
        %v542 = vpack.c.bf16 %v518, %v516
        %v543 = vpack.c.bf16 %v521, %v519
        %v544 = vpack.c.bf16 %v522, %v520
        %v545 = vpack.c.bf16 %v525, %v523
        %v546 = vpack.c.bf16 %v526, %v524
        %v547 = vpack.c.bf16 %v529, %v527
        %v548 = vpack.c.bf16 %v530, %v528
        %v549 = vpack.c.bf16 %v533, %v531
        %v550 = vpack.c.bf16 %v534, %v532
        %v551 = vld [vmem:[#allocation8] sm:$0xff]
        %v552 = vld [vmem:[#allocation8 + $0x8] sm:$0xff]
        %v553 = vld [vmem:[#allocation8 + $0x10] sm:$0xff]
        %v554 = vld [vmem:[#allocation8 + $0x18] sm:$0xff]
        %v555 = vld [vmem:[#allocation8 + $0x20] sm:$0xff]
        %v556 = vld [vmem:[#allocation8 + $0x28] sm:$0xff]
        %v557 = vld [vmem:[#allocation8 + $0x30] sm:$0xff]
        %v558 = vld [vmem:[#allocation8 + $0x38] sm:$0xff]
        %v559 = vld [vmem:[#allocation8 + $0x40] sm:$0xff]
        %v560 = vld [vmem:[#allocation8 + $0x48] sm:$0xff]
        %v561 = vld [vmem:[#allocation8 + $0x50] sm:$0xff]
        %v562 = vld [vmem:[#allocation8 + $0x58] sm:$0xff]
        %v563 = vld [vmem:[#allocation8 + $0x60] sm:$0xff]
        %v564 = vld [vmem:[#allocation8 + $0x68] sm:$0xff]
        %v565 = vld [vmem:[#allocation8 + $0x70] sm:$0xff]
        %v566 = vld [vmem:[#allocation8 + $0x78] sm:$0xff]
        %v567 = vld [vmem:[#allocation8 + $0x80] sm:$0xff]
        %v568 = vld [vmem:[#allocation8 + $0x88] sm:$0xff]
        %v569 = vld [vmem:[#allocation8 + $0x90] sm:$0xff]
        %v570 = vld [vmem:[#allocation8 + $0x98] sm:$0xff]
        %v571 = vld [vmem:[#allocation8 + $0xa0] sm:$0xff]
        %v572 = vld [vmem:[#allocation8 + $0xa8] sm:$0xff]
        %v573 = vld [vmem:[#allocation8 + $0xb0] sm:$0xff]
        %v574 = vld [vmem:[#allocation8 + $0xb8] sm:$0xff]
        %v575 = vld [vmem:[#allocation8 + $0xc0] sm:$0xff]
        %v576 = vld [vmem:[#allocation8 + $0xc8] sm:$0xff]
        %v577 = vld [vmem:[#allocation8 + $0xd0] sm:$0xff]
        %v578 = vld [vmem:[#allocation8 + $0xd8] sm:$0xff]
        %v579 = vld [vmem:[#allocation8 + $0xe0] sm:$0xff]
        %v580 = vld [vmem:[#allocation8 + $0xe8] sm:$0xff]
        %v581 = vld [vmem:[#allocation8 + $0xf0] sm:$0xff]
        %v582 = vld [vmem:[#allocation8 + $0xf8] sm:$0xff]
        %v583 = vld [vmem:[#allocation8 + $0x100] sm:$0xff]
        %v584 = vld [vmem:[#allocation8 + $0x108] sm:$0xff]
        %v585 = vld [vmem:[#allocation8 + $0x110] sm:$0xff]
        %v586 = vld [vmem:[#allocation8 + $0x118] sm:$0xff]
        %v587 = vld [vmem:[#allocation8 + $0x120] sm:$0xff]
        %v588 = vld [vmem:[#allocation8 + $0x128] sm:$0xff]
        %v589 = vld [vmem:[#allocation8 + $0x130] sm:$0xff]
        %v590 = vld [vmem:[#allocation8 + $0x138] sm:$0xff]
        %v591 = vld [vmem:[#allocation8 + $0x140] sm:$0xff]
        %v592 = vld [vmem:[#allocation8 + $0x148] sm:$0xff]
        %v593 = vld [vmem:[#allocation8 + $0x150] sm:$0xff]
        %v594 = vld [vmem:[#allocation8 + $0x158] sm:$0xff]
        %v595 = vld [vmem:[#allocation8 + $0x160] sm:$0xff]
        %v596 = vld [vmem:[#allocation8 + $0x168] sm:$0xff]
        %v597 = vld [vmem:[#allocation8 + $0x170] sm:$0xff]
        %v598 = vld [vmem:[#allocation8 + $0x178] sm:$0xff]
        %v599 = vld [vmem:[#allocation8 + $0x180] sm:$0xff]
        %v600 = vld [vmem:[#allocation8 + $0x188] sm:$0xff]
        %v601 = vld [vmem:[#allocation8 + $0x190] sm:$0xff]
        %v602 = vld [vmem:[#allocation8 + $0x198] sm:$0xff]
        %v603 = vld [vmem:[#allocation8 + $0x1a0] sm:$0xff]
        %v604 = vld [vmem:[#allocation8 + $0x1a8] sm:$0xff]
        %v605 = vld [vmem:[#allocation8 + $0x1b0] sm:$0xff]
        %v606 = vld [vmem:[#allocation8 + $0x1b8] sm:$0xff]
        %v607 = vld [vmem:[#allocation8 + $0x1c0] sm:$0xff]
        %v608 = vld [vmem:[#allocation8 + $0x1c8] sm:$0xff]
        %v609 = vld [vmem:[#allocation8 + $0x1d0] sm:$0xff]
        %v610 = vld [vmem:[#allocation8 + $0x1d8] sm:$0xff]
        %v611 = vld [vmem:[#allocation8 + $0x1e0] sm:$0xff]
        %v612 = vld [vmem:[#allocation8 + $0x1e8] sm:$0xff]
        %v613 = vld [vmem:[#allocation8 + $0x1f0] sm:$0xff]
        %v614 = vld [vmem:[#allocation8 + $0x1f8] sm:$0xff]
        %v615 = vld [vmem:[%s2] sm:$0xf]
        %v617 = vlaneseq
        %v618 = vshrl.u32 %v617, 7
        %v619 = vsub.s32 0, %v618
        %v620 = vrot.slane %v615, %v619
        %v621 = vlaneseq
        %v622 = vshrl.u32 %v621, 7
        %v623 = vsub.s32 1, %v622
        %v624 = vrot.slane %v615, %v623
        %v625 = vlaneseq
        %v626 = vshrl.u32 %v625, 7
        %v627 = vsub.s32 2, %v626
        %v628 = vrot.slane %v615, %v627
        %v629 = vlaneseq
        %v630 = vshrl.u32 %v629, 7
        %v631 = vsub.s32 3, %v630
        %v632 = vrot.slane %v615, %v631
        %v701 = vunpack.c.l.b16 %v551
        %v702 = vunpack.c.h.b16 %v551
        %v703 = vunpack.c.l.b16 %v552
        %v704 = vunpack.c.h.b16 %v552
        %v705 = vunpack.c.l.b16 %v553
        %v706 = vunpack.c.h.b16 %v553
        %v707 = vunpack.c.l.b16 %v554
        %v708 = vunpack.c.h.b16 %v554
        %v709 = vunpack.c.l.b16 %v555
        %v710 = vunpack.c.h.b16 %v555
        %v711 = vunpack.c.l.b16 %v556
        %v712 = vunpack.c.h.b16 %v556
        %v713 = vunpack.c.l.b16 %v557
        %v714 = vunpack.c.h.b16 %v557
        %v715 = vunpack.c.l.b16 %v558
        %v716 = vunpack.c.h.b16 %v558
        %v717 = vunpack.c.l.b16 %v559
        %v718 = vunpack.c.h.b16 %v559
        %v719 = vunpack.c.l.b16 %v560
        %v720 = vunpack.c.h.b16 %v560
        %v721 = vunpack.c.l.b16 %v561
        %v722 = vunpack.c.h.b16 %v561
        %v723 = vunpack.c.l.b16 %v562
        %v724 = vunpack.c.h.b16 %v562
        %v725 = vunpack.c.l.b16 %v563
        %v726 = vunpack.c.h.b16 %v563
        %v727 = vunpack.c.l.b16 %v564
        %v728 = vunpack.c.h.b16 %v564
        %v729 = vunpack.c.l.b16 %v565
        %v730 = vunpack.c.h.b16 %v565
        %v731 = vunpack.c.l.b16 %v566
        %v732 = vunpack.c.h.b16 %v566
        %v733 = vunpack.c.l.b16 %v567
        %v734 = vunpack.c.h.b16 %v567
        %v735 = vunpack.c.l.b16 %v568
        %v736 = vunpack.c.h.b16 %v568
        %v737 = vunpack.c.l.b16 %v569
        %v738 = vunpack.c.h.b16 %v569
        %v739 = vunpack.c.l.b16 %v570
        %v740 = vunpack.c.h.b16 %v570
        %v741 = vunpack.c.l.b16 %v571
        %v742 = vunpack.c.h.b16 %v571
        %v743 = vunpack.c.l.b16 %v572
        %v744 = vunpack.c.h.b16 %v572
        %v745 = vunpack.c.l.b16 %v573
        %v746 = vunpack.c.h.b16 %v573
        %v747 = vunpack.c.l.b16 %v574
        %v748 = vunpack.c.h.b16 %v574
        %v749 = vunpack.c.l.b16 %v575
        %v750 = vunpack.c.h.b16 %v575
        %v751 = vunpack.c.l.b16 %v576
        %v752 = vunpack.c.h.b16 %v576
        %v753 = vunpack.c.l.b16 %v577
        %v754 = vunpack.c.h.b16 %v577
        %v755 = vunpack.c.l.b16 %v578
        %v756 = vunpack.c.h.b16 %v578
        %v757 = vunpack.c.l.b16 %v579
        %v758 = vunpack.c.h.b16 %v579
        %v759 = vunpack.c.l.b16 %v580
        %v760 = vunpack.c.h.b16 %v580
        %v761 = vunpack.c.l.b16 %v581
        %v762 = vunpack.c.h.b16 %v581
        %v763 = vunpack.c.l.b16 %v582
        %v764 = vunpack.c.h.b16 %v582
        %v765 = vunpack.c.l.b16 %v583
        %v766 = vunpack.c.h.b16 %v583
        %v767 = vunpack.c.l.b16 %v584
        %v768 = vunpack.c.h.b16 %v584
        %v769 = vunpack.c.l.b16 %v585
        %v770 = vunpack.c.h.b16 %v585
        %v771 = vunpack.c.l.b16 %v586
        %v772 = vunpack.c.h.b16 %v586
        %v773 = vunpack.c.l.b16 %v587
        %v774 = vunpack.c.h.b16 %v587
        %v775 = vunpack.c.l.b16 %v588
        %v776 = vunpack.c.h.b16 %v588
        %v777 = vunpack.c.l.b16 %v589
        %v778 = vunpack.c.h.b16 %v589
        %v779 = vunpack.c.l.b16 %v590
        %v780 = vunpack.c.h.b16 %v590
        %v781 = vunpack.c.l.b16 %v591
        %v782 = vunpack.c.h.b16 %v591
        %v783 = vunpack.c.l.b16 %v592
        %v784 = vunpack.c.h.b16 %v592
        %v785 = vunpack.c.l.b16 %v593
        %v786 = vunpack.c.h.b16 %v593
        %v787 = vunpack.c.l.b16 %v594
        %v788 = vunpack.c.h.b16 %v594
        %v789 = vunpack.c.l.b16 %v595
        %v790 = vunpack.c.h.b16 %v595
        %v791 = vunpack.c.l.b16 %v596
        %v792 = vunpack.c.h.b16 %v596
        %v793 = vunpack.c.l.b16 %v597
        %v794 = vunpack.c.h.b16 %v597
        %v795 = vunpack.c.l.b16 %v598
        %v796 = vunpack.c.h.b16 %v598
        %v797 = vunpack.c.l.b16 %v599
        %v798 = vunpack.c.h.b16 %v599
        %v799 = vunpack.c.l.b16 %v600
        %v800 = vunpack.c.h.b16 %v600
        %v801 = vunpack.c.l.b16 %v601
        %v802 = vunpack.c.h.b16 %v601
        %v803 = vunpack.c.l.b16 %v602
        %v804 = vunpack.c.h.b16 %v602
        %v805 = vunpack.c.l.b16 %v603
        %v806 = vunpack.c.h.b16 %v603
        %v807 = vunpack.c.l.b16 %v604
        %v808 = vunpack.c.h.b16 %v604
        %v809 = vunpack.c.l.b16 %v605
        %v810 = vunpack.c.h.b16 %v605
        %v811 = vunpack.c.l.b16 %v606
        %v812 = vunpack.c.h.b16 %v606
        %v813 = vunpack.c.l.b16 %v607
        %v814 = vunpack.c.h.b16 %v607
        %v815 = vunpack.c.l.b16 %v608
        %v816 = vunpack.c.h.b16 %v608
        %v817 = vunpack.c.l.b16 %v609
        %v818 = vunpack.c.h.b16 %v609
        %v819 = vunpack.c.l.b16 %v610
        %v820 = vunpack.c.h.b16 %v610
        %v821 = vunpack.c.l.b16 %v611
        %v822 = vunpack.c.h.b16 %v611
        %v823 = vunpack.c.l.b16 %v612
        %v824 = vunpack.c.h.b16 %v612
        %v825 = vunpack.c.l.b16 %v613
        %v826 = vunpack.c.h.b16 %v613
        %v827 = vunpack.c.l.b16 %v614
        %v828 = vunpack.c.h.b16 %v614
        %v829 = vpack.c.b16 %v705, %v701
        %v830 = vpack.c.b16 %v706, %v702
        %v831 = vpack.c.b16 %v707, %v703
        %v832 = vpack.c.b16 %v708, %v704
        %v833 = vpack.c.b16 %v713, %v709
        %v834 = vpack.c.b16 %v714, %v710
        %v835 = vpack.c.b16 %v715, %v711
        %v836 = vpack.c.b16 %v716, %v712
        %v837 = vpack.c.b16 %v721, %v717
        %v838 = vpack.c.b16 %v722, %v718
        %v839 = vpack.c.b16 %v723, %v719
        %v840 = vpack.c.b16 %v724, %v720
        %v841 = vpack.c.b16 %v729, %v725
        %v842 = vpack.c.b16 %v730, %v726
        %v843 = vpack.c.b16 %v731, %v727
        %v844 = vpack.c.b16 %v732, %v728
        %v845 = vpack.c.b16 %v737, %v733
        %v846 = vpack.c.b16 %v738, %v734
        %v847 = vpack.c.b16 %v739, %v735
        %v848 = vpack.c.b16 %v740, %v736
        %v849 = vpack.c.b16 %v745, %v741
        %v850 = vpack.c.b16 %v746, %v742
        %v851 = vpack.c.b16 %v747, %v743
        %v852 = vpack.c.b16 %v748, %v744
        %v853 = vpack.c.b16 %v753, %v749
        %v854 = vpack.c.b16 %v754, %v750
        %v855 = vpack.c.b16 %v755, %v751
        %v856 = vpack.c.b16 %v756, %v752
        %v857 = vpack.c.b16 %v761, %v757
        %v858 = vpack.c.b16 %v762, %v758
        %v859 = vpack.c.b16 %v763, %v759
        %v860 = vpack.c.b16 %v764, %v760
        %v861 = vpack.c.b16 %v769, %v765
        %v862 = vpack.c.b16 %v770, %v766
        %v863 = vpack.c.b16 %v771, %v767
        %v864 = vpack.c.b16 %v772, %v768
        %v865 = vpack.c.b16 %v777, %v773
        %v866 = vpack.c.b16 %v778, %v774
        %v867 = vpack.c.b16 %v779, %v775
        %v868 = vpack.c.b16 %v780, %v776
        %v869 = vpack.c.b16 %v785, %v781
        %v870 = vpack.c.b16 %v786, %v782
        %v871 = vpack.c.b16 %v787, %v783
        %v872 = vpack.c.b16 %v788, %v784
        %v873 = vpack.c.b16 %v793, %v789
        %v874 = vpack.c.b16 %v794, %v790
        %v875 = vpack.c.b16 %v795, %v791
        %v876 = vpack.c.b16 %v796, %v792
        %v877 = vpack.c.b16 %v801, %v797
        %v878 = vpack.c.b16 %v802, %v798
        %v879 = vpack.c.b16 %v803, %v799
        %v880 = vpack.c.b16 %v804, %v800
        %v881 = vpack.c.b16 %v809, %v805
        %v882 = vpack.c.b16 %v810, %v806
        %v883 = vpack.c.b16 %v811, %v807
        %v884 = vpack.c.b16 %v812, %v808
        %v885 = vpack.c.b16 %v817, %v813
        %v886 = vpack.c.b16 %v818, %v814
        %v887 = vpack.c.b16 %v819, %v815
        %v888 = vpack.c.b16 %v820, %v816
        %v889 = vpack.c.b16 %v825, %v821
        %v890 = vpack.c.b16 %v826, %v822
        %v891 = vpack.c.b16 %v827, %v823
        %v892 = vpack.c.b16 %v828, %v824
        %957 = vmatprep.subr.bf16.mxu0 %v830
        %958 = vmatpush1.bf16.msra.mxu0 %v829
        %959 = vmatprep.subr.bf16.mxu0 %v834
        %960 = vmatpush1.bf16.msra.mxu0 %v833
        %961 = vmatprep.subr.bf16.mxu0 %v838
        %962 = vmatpush1.bf16.msra.mxu0 %v837
        %963 = vmatprep.subr.bf16.mxu0 %v842
        %964 = vmatpush1.bf16.msra.mxu0 %v841
        %965 = vmatprep.subr.bf16.mxu0 %v846
        %966 = vmatpush1.bf16.msra.mxu0 %v845
        %967 = vmatprep.subr.bf16.mxu0 %v850
        %968 = vmatpush1.bf16.msra.mxu0 %v849
        %969 = vmatprep.subr.bf16.mxu0 %v854
        %970 = vmatpush1.bf16.msra.mxu0 %v853
        %971 = vmatprep.subr.bf16.mxu0 %v858
        %972 = vmatpush1.bf16.msra.mxu0 %v857
        %973 = vmatprep.subr.bf16.mxu0 %v862
        %974 = vmatpush1.bf16.msra.mxu0 %v861
        %975 = vmatprep.subr.bf16.mxu0 %v866
        %976 = vmatpush1.bf16.msra.mxu0 %v865
        %977 = vmatprep.subr.bf16.mxu0 %v870
        %978 = vmatpush1.bf16.msra.mxu0 %v869
        %979 = vmatprep.subr.bf16.mxu0 %v874
        %980 = vmatpush1.bf16.msra.mxu0 %v873
        %981 = vmatprep.subr.bf16.mxu0 %v878
        %982 = vmatpush1.bf16.msra.mxu0 %v877
        %983 = vmatprep.subr.bf16.mxu0 %v882
        %984 = vmatpush1.bf16.msra.mxu0 %v881
        %985 = vmatprep.subr.bf16.mxu0 %v886
        %986 = vmatpush1.bf16.msra.mxu0 %v885
        %987 = vmatprep.subr.bf16.mxu0 %v890
        %988 = vmatpush1.bf16.msra.mxu0 %v889
        %989 = vmatprep.mubr.bf16.mxu0 %v536
        %990 = vmatmul.mubr.bf16.gmra.mrb[0].mxu0 %v535
        %v991 = vpop.f32.mrb[0].mxu0
        %v992 = vadd.f32 %v620, %v991
        %v993 = vpop.f32.mrb[0].mxu0
        %v994 = vadd.f32 %v624, %v993
        %v995 = vpop.f32.mrb[0].mxu0
        %v996 = vadd.f32 %v620, %v995
        %v997 = vpop.f32.mrb[0].mxu0
        %v998 = vadd.f32 %v624, %v997
        %999 = vmatprep.mubr.bf16.mxu0 %v538
        %1000 = vmatmul.mubr.bf16.gmra.mrb[0].mxu0 %v537
        %v1001 = vpop.f32.mrb[0].mxu0
        %v1002 = vadd.f32 %v620, %v1001
        %v1003 = vpop.f32.mrb[0].mxu0
        %v1004 = vadd.f32 %v624, %v1003
        %v1005 = vpop.f32.mrb[0].mxu0
        %v1006 = vadd.f32 %v620, %v1005
        %v1007 = vpop.f32.mrb[0].mxu0
        %v1008 = vadd.f32 %v624, %v1007
        %1009 = vmatprep.mubr.bf16.mxu0 %v540
        %1010 = vmatmul.mubr.bf16.gmra.mrb[0].mxu0 %v539
        %v1011 = vpop.f32.mrb[0].mxu0
        %v1012 = vadd.f32 %v620, %v1011
        %v1013 = vpop.f32.mrb[0].mxu0
        %v1014 = vadd.f32 %v624, %v1013
        %v1015 = vpop.f32.mrb[0].mxu0
        %v1016 = vadd.f32 %v620, %v1015
        %v1017 = vpop.f32.mrb[0].mxu0
        %v1018 = vadd.f32 %v624, %v1017
        %1019 = vmatprep.mubr.bf16.mxu0 %v542
        %1020 = vmatmul.mubr.bf16.gmra.mrb[0].mxu0 %v541
        %v1021 = vpop.f32.mrb[0].mxu0
        %v1022 = vadd.f32 %v620, %v1021
        %v1023 = vpop.f32.mrb[0].mxu0
        %v1024 = vadd.f32 %v624, %v1023
        %v1025 = vpop.f32.mrb[0].mxu0
        %v1026 = vadd.f32 %v620, %v1025
        %v1027 = vpop.f32.mrb[0].mxu0
        %v1028 = vadd.f32 %v624, %v1027
        %1029 = vmatprep.mubr.bf16.mxu0 %v544
        %1030 = vmatmul.mubr.bf16.gmra.mrb[0].mxu0 %v543
        %v1031 = vpop.f32.mrb[0].mxu0
        %v1032 = vadd.f32 %v620, %v1031
        %v1033 = vpop.f32.mrb[0].mxu0
        %v1034 = vadd.f32 %v624, %v1033
        %v1035 = vpop.f32.mrb[0].mxu0
        %v1036 = vadd.f32 %v620, %v1035
        %v1037 = vpop.f32.mrb[0].mxu0
        %v1038 = vadd.f32 %v624, %v1037
        %1039 = vmatprep.mubr.bf16.mxu0 %v546
        %1040 = vmatmul.mubr.bf16.gmra.mrb[0].mxu0 %v545
        %v1041 = vpop.f32.mrb[0].mxu0
        %v1042 = vadd.f32 %v620, %v1041
        %v1043 = vpop.f32.mrb[0].mxu0
        %v1044 = vadd.f32 %v624, %v1043
        %v1045 = vpop.f32.mrb[0].mxu0
        %v1046 = vadd.f32 %v620, %v1045
        %v1047 = vpop.f32.mrb[0].mxu0
        %v1048 = vadd.f32 %v624, %v1047
        %1049 = vmatprep.mubr.bf16.mxu0 %v548
        %1050 = vmatmul.mubr.bf16.gmra.mrb[0].mxu0 %v547
        %v1051 = vpop.f32.mrb[0].mxu0
        %v1052 = vadd.f32 %v620, %v1051
        %v1053 = vpop.f32.mrb[0].mxu0
        %v1054 = vadd.f32 %v624, %v1053
        %v1055 = vpop.f32.mrb[0].mxu0
        %v1056 = vadd.f32 %v620, %v1055
        %v1057 = vpop.f32.mrb[0].mxu0
        %v1058 = vadd.f32 %v624, %v1057
        %1059 = vmatprep.mubr.bf16.mxu0 %v550
        %1060 = vmatmul.mubr.bf16.gmra.mrb[0].mxu0 %v549
        %v1061 = vpop.f32.mrb[0].mxu0
        %v1062 = vadd.f32 %v620, %v1061
        %v1063 = vpop.f32.mrb[0].mxu0
        %v1064 = vadd.f32 %v624, %v1063
        %v1065 = vpop.f32.mrb[0].mxu0
        %v1066 = vadd.f32 %v620, %v1065
        %v1067 = vpop.f32.mrb[0].mxu0
        %v1068 = vadd.f32 %v624, %v1067
        %1069 = vdwg.mxu0
        %1070 = vmatprep.subr.bf16.mxu0 %v832
        %1071 = vmatpush1.bf16.msra.mxu0 %v831
        %1072 = vmatprep.subr.bf16.mxu0 %v836
        %1073 = vmatpush1.bf16.msra.mxu0 %v835
        %1074 = vmatprep.subr.bf16.mxu0 %v840
        %1075 = vmatpush1.bf16.msra.mxu0 %v839
        %1076 = vmatprep.subr.bf16.mxu0 %v844
        %1077 = vmatpush1.bf16.msra.mxu0 %v843
        %1078 = vmatprep.subr.bf16.mxu0 %v848
        %1079 = vmatpush1.bf16.msra.mxu0 %v847
        %1080 = vmatprep.subr.bf16.mxu0 %v852
        %1081 = vmatpush1.bf16.msra.mxu0 %v851
        %1082 = vmatprep.subr.bf16.mxu0 %v856
        %1083 = vmatpush1.bf16.msra.mxu0 %v855
        %1084 = vmatprep.subr.bf16.mxu0 %v860
        %1085 = vmatpush1.bf16.msra.mxu0 %v859
        %1086 = vmatprep.subr.bf16.mxu0 %v864
        %1087 = vmatpush1.bf16.msra.mxu0 %v863
        %1088 = vmatprep.subr.bf16.mxu0 %v868
        %1089 = vmatpush1.bf16.msra.mxu0 %v867
        %1090 = vmatprep.subr.bf16.mxu0 %v872
        %1091 = vmatpush1.bf16.msra.mxu0 %v871
        %1092 = vmatprep.subr.bf16.mxu0 %v876
        %1093 = vmatpush1.bf16.msra.mxu0 %v875
        %1094 = vmatprep.subr.bf16.mxu0 %v880
        %1095 = vmatpush1.bf16.msra.mxu0 %v879
        %1096 = vmatprep.subr.bf16.mxu0 %v884
        %1097 = vmatpush1.bf16.msra.mxu0 %v883
        %1098 = vmatprep.subr.bf16.mxu0 %v888
        %1099 = vmatpush1.bf16.msra.mxu0 %v887
        %1100 = vmatprep.subr.bf16.mxu0 %v892
        %1101 = vmatpush1.bf16.msra.mxu0 %v891
        %1102 = vmatprep.mubr.bf16.mxu0 %v536
        %1103 = vmatmul.mubr.bf16.gmra.mrb[0].mxu0 %v535
        %v1104 = vpop.f32.mrb[0].mxu0
        %v1105 = vadd.f32 %v628, %v1104
        %v1106 = vpop.f32.mrb[0].mxu0
        %v1107 = vadd.f32 %v632, %v1106
        %v1108 = vpop.f32.mrb[0].mxu0
        %v1109 = vadd.f32 %v628, %v1108
        %v1110 = vpop.f32.mrb[0].mxu0
        %v1111 = vadd.f32 %v632, %v1110
        %1112 = vmatprep.mubr.bf16.mxu0 %v538
        %1113 = vmatmul.mubr.bf16.gmra.mrb[0].mxu0 %v537
        %v1114 = vpop.f32.mrb[0].mxu0
        %v1115 = vadd.f32 %v628, %v1114
        %v1116 = vpop.f32.mrb[0].mxu0
        %v1117 = vadd.f32 %v632, %v1116
        %v1118 = vpop.f32.mrb[0].mxu0
        %v1119 = vadd.f32 %v628, %v1118
        %v1120 = vpop.f32.mrb[0].mxu0
        %v1121 = vadd.f32 %v632, %v1120
        %1122 = vmatprep.mubr.bf16.mxu0 %v540
        %1123 = vmatmul.mubr.bf16.gmra.mrb[0].mxu0 %v539
        %v1124 = vpop.f32.mrb[0].mxu0
        %v1125 = vadd.f32 %v628, %v1124
        %v1126 = vpop.f32.mrb[0].mxu0
        %v1127 = vadd.f32 %v632, %v1126
        %v1128 = vpop.f32.mrb[0].mxu0
        %v1129 = vadd.f32 %v628, %v1128
        %v1130 = vpop.f32.mrb[0].mxu0
        %v1131 = vadd.f32 %v632, %v1130
        %1132 = vmatprep.mubr.bf16.mxu0 %v542
        %1133 = vmatmul.mubr.bf16.gmra.mrb[0].mxu0 %v541
        %v1134 = vpop.f32.mrb[0].mxu0
        %v1135 = vadd.f32 %v628, %v1134
        %v1136 = vpop.f32.mrb[0].mxu0
        %v1137 = vadd.f32 %v632, %v1136
        %v1138 = vpop.f32.mrb[0].mxu0
        %v1139 = vadd.f32 %v628, %v1138
        %v1140 = vpop.f32.mrb[0].mxu0
        %v1141 = vadd.f32 %v632, %v1140
        %1142 = vmatprep.mubr.bf16.mxu0 %v544
        %1143 = vmatmul.mubr.bf16.gmra.mrb[0].mxu0 %v543
        %v1144 = vpop.f32.mrb[0].mxu0
        %v1145 = vadd.f32 %v628, %v1144
        %v1146 = vpop.f32.mrb[0].mxu0
        %v1147 = vadd.f32 %v632, %v1146
        %v1148 = vpop.f32.mrb[0].mxu0
        %v1149 = vadd.f32 %v628, %v1148
        %v1150 = vpop.f32.mrb[0].mxu0
        %v1151 = vadd.f32 %v632, %v1150
        %1152 = vmatprep.mubr.bf16.mxu0 %v546
        %1153 = vmatmul.mubr.bf16.gmra.mrb[0].mxu0 %v545
        %v1154 = vpop.f32.mrb[0].mxu0
        %v1155 = vadd.f32 %v628, %v1154
        %v1156 = vpop.f32.mrb[0].mxu0
        %v1157 = vadd.f32 %v632, %v1156
        %v1158 = vpop.f32.mrb[0].mxu0
        %v1159 = vadd.f32 %v628, %v1158
        %v1160 = vpop.f32.mrb[0].mxu0
        %v1161 = vadd.f32 %v632, %v1160
        %1162 = vmatprep.mubr.bf16.mxu0 %v548
        %1163 = vmatmul.mubr.bf16.gmra.mrb[0].mxu0 %v547
        %v1164 = vpop.f32.mrb[0].mxu0
        %v1165 = vadd.f32 %v628, %v1164
        %v1166 = vpop.f32.mrb[0].mxu0
        %v1167 = vadd.f32 %v632, %v1166
        %v1168 = vpop.f32.mrb[0].mxu0
        %v1169 = vadd.f32 %v628, %v1168
        %v1170 = vpop.f32.mrb[0].mxu0
        %v1171 = vadd.f32 %v632, %v1170
        %1172 = vmatprep.mubr.bf16.mxu0 %v550
        %1173 = vmatmul.mubr.bf16.gmra.mrb[0].mxu0 %v549
        %v1174 = vpop.f32.mrb[0].mxu0
        %v1175 = vadd.f32 %v628, %v1174
        %v1176 = vpop.f32.mrb[0].mxu0
        %v1177 = vadd.f32 %v632, %v1176
        %v1178 = vpop.f32.mrb[0].mxu0
        %v1179 = vadd.f32 %v628, %v1178
        %v1180 = vpop.f32.mrb[0].mxu0
        %v1181 = vadd.f32 %v632, %v1180
        %1182 = vdwg.mxu0
        %s1183 = sld [smem:[#allocation3]]
        %vm1184 = vcmp.ge.f32.partialorder %v992, 0.0
        %vm1185 = vcmp.ge.f32.partialorder %v994, 0.0
        %vm1186 = vcmp.ge.f32.partialorder %v1105, 0.0
        %vm1187 = vcmp.ge.f32.partialorder %v1107, 0.0
        %vm1188 = vcmp.ge.f32.partialorder %v996, 0.0
        %vm1189 = vcmp.ge.f32.partialorder %v998, 0.0
        %vm1190 = vcmp.ge.f32.partialorder %v1109, 0.0
        %vm1191 = vcmp.ge.f32.partialorder %v1111, 0.0
        %vm1192 = vcmp.ge.f32.partialorder %v1002, 0.0
        %vm1193 = vcmp.ge.f32.partialorder %v1004, 0.0
        %vm1194 = vcmp.ge.f32.partialorder %v1115, 0.0
        %vm1195 = vcmp.ge.f32.partialorder %v1117, 0.0
        %vm1196 = vcmp.ge.f32.partialorder %v1006, 0.0
        %vm1197 = vcmp.ge.f32.partialorder %v1008, 0.0
        %vm1198 = vcmp.ge.f32.partialorder %v1119, 0.0
        %vm1199 = vcmp.ge.f32.partialorder %v1121, 0.0
        %vm1200 = vcmp.ge.f32.partialorder %v1012, 0.0
        %vm1201 = vcmp.ge.f32.partialorder %v1014, 0.0
        %vm1202 = vcmp.ge.f32.partialorder %v1125, 0.0
        %vm1203 = vcmp.ge.f32.partialorder %v1127, 0.0
        %vm1204 = vcmp.ge.f32.partialorder %v1016, 0.0
        %vm1205 = vcmp.ge.f32.partialorder %v1018, 0.0
        %vm1206 = vcmp.ge.f32.partialorder %v1129, 0.0
        %vm1207 = vcmp.ge.f32.partialorder %v1131, 0.0
        %vm1208 = vcmp.ge.f32.partialorder %v1022, 0.0
        %vm1209 = vcmp.ge.f32.partialorder %v1024, 0.0
        %vm1210 = vcmp.ge.f32.partialorder %v1135, 0.0
        %vm1211 = vcmp.ge.f32.partialorder %v1137, 0.0
        %vm1212 = vcmp.ge.f32.partialorder %v1026, 0.0
        %vm1213 = vcmp.ge.f32.partialorder %v1028, 0.0
        %vm1214 = vcmp.ge.f32.partialorder %v1139, 0.0
        %vm1215 = vcmp.ge.f32.partialorder %v1141, 0.0
        %vm1216 = vcmp.ge.f32.partialorder %v1032, 0.0
        %vm1217 = vcmp.ge.f32.partialorder %v1034, 0.0
        %vm1218 = vcmp.ge.f32.partialorder %v1145, 0.0
        %vm1219 = vcmp.ge.f32.partialorder %v1147, 0.0
        %vm1220 = vcmp.ge.f32.partialorder %v1036, 0.0
        %vm1221 = vcmp.ge.f32.partialorder %v1038, 0.0
        %vm1222 = vcmp.ge.f32.partialorder %v1149, 0.0
        %vm1223 = vcmp.ge.f32.partialorder %v1151, 0.0
        %vm1224 = vcmp.ge.f32.partialorder %v1042, 0.0
        %vm1225 = vcmp.ge.f32.partialorder %v1044, 0.0
        %vm1226 = vcmp.ge.f32.partialorder %v1155, 0.0
        %vm1227 = vcmp.ge.f32.partialorder %v1157, 0.0
        %vm1228 = vcmp.ge.f32.partialorder %v1046, 0.0
        %vm1229 = vcmp.ge.f32.partialorder %v1048, 0.0
        %vm1230 = vcmp.ge.f32.partialorder %v1159, 0.0
        %vm1231 = vcmp.ge.f32.partialorder %v1161, 0.0
        %vm1232 = vcmp.ge.f32.partialorder %v1052, 0.0
        %vm1233 = vcmp.ge.f32.partialorder %v1054, 0.0
        %vm1234 = vcmp.ge.f32.partialorder %v1165, 0.0
        %vm1235 = vcmp.ge.f32.partialorder %v1167, 0.0
        %vm1236 = vcmp.ge.f32.partialorder %v1056, 0.0
        %vm1237 = vcmp.ge.f32.partialorder %v1058, 0.0
        %vm1238 = vcmp.ge.f32.partialorder %v1169, 0.0
        %vm1239 = vcmp.ge.f32.partialorder %v1171, 0.0
        %vm1240 = vcmp.ge.f32.partialorder %v1062, 0.0
        %vm1241 = vcmp.ge.f32.partialorder %v1064, 0.0
        %vm1242 = vcmp.ge.f32.partialorder %v1175, 0.0
        %vm1243 = vcmp.ge.f32.partialorder %v1177, 0.0
        %vm1244 = vcmp.ge.f32.partialorder %v1066, 0.0
        %vm1245 = vcmp.ge.f32.partialorder %v1068, 0.0
        %vm1246 = vcmp.ge.f32.partialorder %v1179, 0.0
        %vm1247 = vcmp.ge.f32.partialorder %v1181, 0.0
        %v1248 = vstv %s1183
        %v1249 = vmul.f32 %v1248, %v992
        %v1250 = vmul.f32 %v1248, %v994
        %v1251 = vmul.f32 %v1248, %v1105
        %v1252 = vmul.f32 %v1248, %v1107
        %v1253 = vmul.f32 %v1248, %v996
        %v1254 = vmul.f32 %v1248, %v998
        %v1255 = vmul.f32 %v1248, %v1109
        %v1256 = vmul.f32 %v1248, %v1111
        %v1257 = vmul.f32 %v1248, %v1002
        %v1258 = vmul.f32 %v1248, %v1004
        %v1259 = vmul.f32 %v1248, %v1115
        %v1260 = vmul.f32 %v1248, %v1117
        %v1261 = vmul.f32 %v1248, %v1006
        %v1262 = vmul.f32 %v1248, %v1008
        %v1263 = vmul.f32 %v1248, %v1119
        %v1264 = vmul.f32 %v1248, %v1121
        %v1265 = vmul.f32 %v1248, %v1012
        %v1266 = vmul.f32 %v1248, %v1014
        %v1267 = vmul.f32 %v1248, %v1125
        %v1268 = vmul.f32 %v1248, %v1127
        %v1269 = vmul.f32 %v1248, %v1016
        %v1270 = vmul.f32 %v1248, %v1018
        %v1271 = vmul.f32 %v1248, %v1129
        %v1272 = vmul.f32 %v1248, %v1131
        %v1273 = vmul.f32 %v1248, %v1022
        %v1274 = vmul.f32 %v1248, %v1024
        %v1275 = vmul.f32 %v1248, %v1135
        %v1276 = vmul.f32 %v1248, %v1137
        %v1277 = vmul.f32 %v1248, %v1026
        %v1278 = vmul.f32 %v1248, %v1028
        %v1279 = vmul.f32 %v1248, %v1139
        %v1280 = vmul.f32 %v1248, %v1141
        %v1281 = vmul.f32 %v1248, %v1032
        %v1282 = vmul.f32 %v1248, %v1034
        %v1283 = vmul.f32 %v1248, %v1145
        %v1284 = vmul.f32 %v1248, %v1147
        %v1285 = vmul.f32 %v1248, %v1036
        %v1286 = vmul.f32 %v1248, %v1038
        %v1287 = vmul.f32 %v1248, %v1149
        %v1288 = vmul.f32 %v1248, %v1151
        %v1289 = vmul.f32 %v1248, %v1042
        %v1290 = vmul.f32 %v1248, %v1044
        %v1291 = vmul.f32 %v1248, %v1155
        %v1292 = vmul.f32 %v1248, %v1157
        %v1293 = vmul.f32 %v1248, %v1046
        %v1294 = vmul.f32 %v1248, %v1048
        %v1295 = vmul.f32 %v1248, %v1159
        %v1296 = vmul.f32 %v1248, %v1161
        %v1297 = vmul.f32 %v1248, %v1052
        %v1298 = vmul.f32 %v1248, %v1054
        %v1299 = vmul.f32 %v1248, %v1165
        %v1300 = vmul.f32 %v1248, %v1167
        %v1301 = vmul.f32 %v1248, %v1056
        %v1302 = vmul.f32 %v1248, %v1058
        %v1303 = vmul.f32 %v1248, %v1169
        %v1304 = vmul.f32 %v1248, %v1171
        %v1305 = vmul.f32 %v1248, %v1062
        %v1306 = vmul.f32 %v1248, %v1064
        %v1307 = vmul.f32 %v1248, %v1175
        %v1308 = vmul.f32 %v1248, %v1177
        %v1309 = vmul.f32 %v1248, %v1066
        %v1310 = vmul.f32 %v1248, %v1068
        %v1311 = vmul.f32 %v1248, %v1179
        %v1312 = vmul.f32 %v1248, %v1181
        %v1313 = vsel %vm1184, %v992, %v1249
        %v1314 = vsel %vm1185, %v994, %v1250
        %v1315 = vsel %vm1186, %v1105, %v1251
        %v1316 = vsel %vm1187, %v1107, %v1252
        %v1317 = vsel %vm1188, %v996, %v1253
        %v1318 = vsel %vm1189, %v998, %v1254
        %v1319 = vsel %vm1190, %v1109, %v1255
        %v1320 = vsel %vm1191, %v1111, %v1256
        %v1321 = vsel %vm1192, %v1002, %v1257
        %v1322 = vsel %vm1193, %v1004, %v1258
        %v1323 = vsel %vm1194, %v1115, %v1259
        %v1324 = vsel %vm1195, %v1117, %v1260
        %v1325 = vsel %vm1196, %v1006, %v1261
        %v1326 = vsel %vm1197, %v1008, %v1262
        %v1327 = vsel %vm1198, %v1119, %v1263
        %v1328 = vsel %vm1199, %v1121, %v1264
        %v1329 = vsel %vm1200, %v1012, %v1265
        %v1330 = vsel %vm1201, %v1014, %v1266
        %v1331 = vsel %vm1202, %v1125, %v1267
        %v1332 = vsel %vm1203, %v1127, %v1268
        %v1333 = vsel %vm1204, %v1016, %v1269
        %v1334 = vsel %vm1205, %v1018, %v1270
        %v1335 = vsel %vm1206, %v1129, %v1271
        %v1336 = vsel %vm1207, %v1131, %v1272
        %v1337 = vsel %vm1208, %v1022, %v1273
        %v1338 = vsel %vm1209, %v1024, %v1274
        %v1339 = vsel %vm1210, %v1135, %v1275
        %v1340 = vsel %vm1211, %v1137, %v1276
        %v1341 = vsel %vm1212, %v1026, %v1277
        %v1342 = vsel %vm1213, %v1028, %v1278
        %v1343 = vsel %vm1214, %v1139, %v1279
        %v1344 = vsel %vm1215, %v1141, %v1280
        %v1345 = vsel %vm1216, %v1032, %v1281
        %v1346 = vsel %vm1217, %v1034, %v1282
        %v1347 = vsel %vm1218, %v1145, %v1283
        %v1348 = vsel %vm1219, %v1147, %v1284
        %v1349 = vsel %vm1220, %v1036, %v1285
        %v1350 = vsel %vm1221, %v1038, %v1286
        %v1351 = vsel %vm1222, %v1149, %v1287
        %v1352 = vsel %vm1223, %v1151, %v1288
        %v1353 = vsel %vm1224, %v1042, %v1289
        %v1354 = vsel %vm1225, %v1044, %v1290
        %v1355 = vsel %vm1226, %v1155, %v1291
        %v1356 = vsel %vm1227, %v1157, %v1292
        %v1357 = vsel %vm1228, %v1046, %v1293
        %v1358 = vsel %vm1229, %v1048, %v1294
        %v1359 = vsel %vm1230, %v1159, %v1295
        %v1360 = vsel %vm1231, %v1161, %v1296
        %v1361 = vsel %vm1232, %v1052, %v1297
        %v1362 = vsel %vm1233, %v1054, %v1298
        %v1363 = vsel %vm1234, %v1165, %v1299
        %v1364 = vsel %vm1235, %v1167, %v1300
        %v1365 = vsel %vm1236, %v1056, %v1301
        %v1366 = vsel %vm1237, %v1058, %v1302
        %v1367 = vsel %vm1238, %v1169, %v1303
        %v1368 = vsel %vm1239, %v1171, %v1304
        %v1369 = vsel %vm1240, %v1062, %v1305
        %v1370 = vsel %vm1241, %v1064, %v1306
        %v1371 = vsel %vm1242, %v1175, %v1307
        %v1372 = vsel %vm1243, %v1177, %v1308
        %v1373 = vsel %vm1244, %v1066, %v1309
        %v1374 = vsel %vm1245, %v1068, %v1310
        %v1375 = vsel %vm1246, %v1179, %v1311
        %v1376 = vsel %vm1247, %v1181, %v1312
        %v1377 = vadd.f32 %v1313, %v1314
        %v1378 = vadd.f32 %v1377, %v1315
        %v1379 = vadd.f32 %v1378, %v1316
        %v1380 = vadd.f32 %v1379, %v1317
        %v1381 = vadd.f32 %v1380, %v1318
        %v1382 = vadd.f32 %v1381, %v1319
        %v1383 = vadd.f32 %v1382, %v1320
        %v1384 = vadd.f32 %v1383, %v1321
        %v1385 = vadd.f32 %v1384, %v1322
        %v1386 = vadd.f32 %v1385, %v1323
        %v1387 = vadd.f32 %v1386, %v1324
        %v1388 = vadd.f32 %v1387, %v1325
        %v1389 = vadd.f32 %v1388, %v1326
        %v1390 = vadd.f32 %v1389, %v1327
        %v1391 = vadd.f32 %v1390, %v1328
        %v1392 = vadd.f32 %v1391, %v1329
        %v1393 = vadd.f32 %v1392, %v1330
        %v1394 = vadd.f32 %v1393, %v1331
        %v1395 = vadd.f32 %v1394, %v1332
        %v1396 = vadd.f32 %v1395, %v1333
        %v1397 = vadd.f32 %v1396, %v1334
        %v1398 = vadd.f32 %v1397, %v1335
        %v1399 = vadd.f32 %v1398, %v1336
        %v1400 = vadd.f32 %v1399, %v1337
        %v1401 = vadd.f32 %v1400, %v1338
        %v1402 = vadd.f32 %v1401, %v1339
        %v1403 = vadd.f32 %v1402, %v1340
        %v1404 = vadd.f32 %v1403, %v1341
        %v1405 = vadd.f32 %v1404, %v1342
        %v1406 = vadd.f32 %v1405, %v1343
        %v1407 = vadd.f32 %v1406, %v1344
        %v1408 = vadd.f32 %v1407, %v1345
        %v1409 = vadd.f32 %v1408, %v1346
        %v1410 = vadd.f32 %v1409, %v1347
        %v1411 = vadd.f32 %v1410, %v1348
        %v1412 = vadd.f32 %v1411, %v1349
        %v1413 = vadd.f32 %v1412, %v1350
        %v1414 = vadd.f32 %v1413, %v1351
        %v1415 = vadd.f32 %v1414, %v1352
        %v1416 = vadd.f32 %v1415, %v1353
        %v1417 = vadd.f32 %v1416, %v1354
        %v1418 = vadd.f32 %v1417, %v1355
        %v1419 = vadd.f32 %v1418, %v1356
        %v1420 = vadd.f32 %v1419, %v1357
        %v1421 = vadd.f32 %v1420, %v1358
        %v1422 = vadd.f32 %v1421, %v1359
        %v1423 = vadd.f32 %v1422, %v1360
        %v1424 = vadd.f32 %v1423, %v1361
        %v1425 = vadd.f32 %v1424, %v1362
        %v1426 = vadd.f32 %v1425, %v1363
        %v1427 = vadd.f32 %v1426, %v1364
        %v1428 = vadd.f32 %v1427, %v1365
        %v1429 = vadd.f32 %v1428, %v1366
        %v1430 = vadd.f32 %v1429, %v1367
        %v1431 = vadd.f32 %v1430, %v1368
        %v1432 = vadd.f32 %v1431, %v1369
        %v1433 = vadd.f32 %v1432, %v1370
        %v1434 = vadd.f32 %v1433, %v1371
        %v1435 = vadd.f32 %v1434, %v1372
        %v1436 = vadd.f32 %v1435, %v1373
        %v1437 = vadd.f32 %v1436, %v1374
        %v1438 = vadd.f32 %v1437, %v1375
        %v1439 = vadd.f32 %v1438, %v1376
        %1440 = vadd.xlane.f32.xlu0 %v1439
        %v1441 = vpop.xlane.xlu0 %1440
        %v1442 = vrot.slane %v1441, 4
        %v1443 = vadd.f32 %v1441, %v1442
        %v1444 = vrot.slane %v1443, 2
        %v1445 = vadd.f32 %v1443, %v1444
        %v1446 = vrot.slane %v1445, 1
        %v1447 = vadd.f32 %v1445, %v1446
        %s1448 = vtos %v1447
        %v1449 = vmul.f32 %v1313, %v1313
        %v1450 = vmul.f32 %v1314, %v1314
        %v1451 = vmul.f32 %v1315, %v1315
        %v1452 = vmul.f32 %v1316, %v1316
        %v1453 = vmul.f32 %v1317, %v1317
        %v1454 = vmul.f32 %v1318, %v1318
        %v1455 = vmul.f32 %v1319, %v1319
        %v1456 = vmul.f32 %v1320, %v1320
        %v1457 = vmul.f32 %v1321, %v1321
        %v1458 = vmul.f32 %v1322, %v1322
        %v1459 = vmul.f32 %v1323, %v1323
        %v1460 = vmul.f32 %v1324, %v1324
        %v1461 = vmul.f32 %v1325, %v1325
        %v1462 = vmul.f32 %v1326, %v1326
        %v1463 = vmul.f32 %v1327, %v1327
        %v1464 = vmul.f32 %v1328, %v1328
        %v1465 = vmul.f32 %v1329, %v1329
        %v1466 = vmul.f32 %v1330, %v1330
        %v1467 = vmul.f32 %v1331, %v1331
        %v1468 = vmul.f32 %v1332, %v1332
        %v1469 = vmul.f32 %v1333, %v1333
        %v1470 = vmul.f32 %v1334, %v1334
        %v1471 = vmul.f32 %v1335, %v1335
        %v1472 = vmul.f32 %v1336, %v1336
        %v1473 = vmul.f32 %v1337, %v1337
        %v1474 = vmul.f32 %v1338, %v1338
        %v1475 = vmul.f32 %v1339, %v1339
        %v1476 = vmul.f32 %v1340, %v1340
        %v1477 = vmul.f32 %v1341, %v1341
        %v1478 = vmul.f32 %v1342, %v1342
        %v1479 = vmul.f32 %v1343, %v1343
        %v1480 = vmul.f32 %v1344, %v1344
        %v1481 = vmul.f32 %v1345, %v1345
        %v1482 = vmul.f32 %v1346, %v1346
        %v1483 = vmul.f32 %v1347, %v1347
        %v1484 = vmul.f32 %v1348, %v1348
        %v1485 = vmul.f32 %v1349, %v1349
        %v1486 = vmul.f32 %v1350, %v1350
        %v1487 = vmul.f32 %v1351, %v1351
        %v1488 = vmul.f32 %v1352, %v1352
        %v1489 = vmul.f32 %v1353, %v1353
        %v1490 = vmul.f32 %v1354, %v1354
        %v1491 = vmul.f32 %v1355, %v1355
        %v1492 = vmul.f32 %v1356, %v1356
        %v1493 = vmul.f32 %v1357, %v1357
        %v1494 = vmul.f32 %v1358, %v1358
        %v1495 = vmul.f32 %v1359, %v1359
        %v1496 = vmul.f32 %v1360, %v1360
        %v1497 = vmul.f32 %v1361, %v1361
        %v1498 = vmul.f32 %v1362, %v1362
        %v1499 = vmul.f32 %v1363, %v1363
        %v1500 = vmul.f32 %v1364, %v1364
        %v1501 = vmul.f32 %v1365, %v1365
        %v1502 = vmul.f32 %v1366, %v1366
        %v1503 = vmul.f32 %v1367, %v1367
        %v1504 = vmul.f32 %v1368, %v1368
        %v1505 = vmul.f32 %v1369, %v1369
        %v1506 = vmul.f32 %v1370, %v1370
        %v1507 = vmul.f32 %v1371, %v1371
        %v1508 = vmul.f32 %v1372, %v1372
        %v1509 = vmul.f32 %v1373, %v1373
        %v1510 = vmul.f32 %v1374, %v1374
        %v1511 = vmul.f32 %v1375, %v1375
        %v1512 = vmul.f32 %v1376, %v1376
        %v1513 = vadd.f32 %v1449, %v1450
        %v1514 = vadd.f32 %v1513, %v1451
        %v1515 = vadd.f32 %v1514, %v1452
        %v1516 = vadd.f32 %v1515, %v1453
        %v1517 = vadd.f32 %v1516, %v1454
        %v1518 = vadd.f32 %v1517, %v1455
        %v1519 = vadd.f32 %v1518, %v1456
        %v1520 = vadd.f32 %v1519, %v1457
        %v1521 = vadd.f32 %v1520, %v1458
        %v1522 = vadd.f32 %v1521, %v1459
        %v1523 = vadd.f32 %v1522, %v1460
        %v1524 = vadd.f32 %v1523, %v1461
        %v1525 = vadd.f32 %v1524, %v1462
        %v1526 = vadd.f32 %v1525, %v1463
        %v1527 = vadd.f32 %v1526, %v1464
        %v1528 = vadd.f32 %v1527, %v1465
        %v1529 = vadd.f32 %v1528, %v1466
        %v1530 = vadd.f32 %v1529, %v1467
        %v1531 = vadd.f32 %v1530, %v1468
        %v1532 = vadd.f32 %v1531, %v1469
        %v1533 = vadd.f32 %v1532, %v1470
        %v1534 = vadd.f32 %v1533, %v1471
        %v1535 = vadd.f32 %v1534, %v1472
        %v1536 = vadd.f32 %v1535, %v1473
        %v1537 = vadd.f32 %v1536, %v1474
        %v1538 = vadd.f32 %v1537, %v1475
        %v1539 = vadd.f32 %v1538, %v1476
        %v1540 = vadd.f32 %v1539, %v1477
        %v1541 = vadd.f32 %v1540, %v1478
        %v1542 = vadd.f32 %v1541, %v1479
        %v1543 = vadd.f32 %v1542, %v1480
        %v1544 = vadd.f32 %v1543, %v1481
        %v1545 = vadd.f32 %v1544, %v1482
        %v1546 = vadd.f32 %v1545, %v1483
        %v1547 = vadd.f32 %v1546, %v1484
        %v1548 = vadd.f32 %v1547, %v1485
        %v1549 = vadd.f32 %v1548, %v1486
        %v1550 = vadd.f32 %v1549, %v1487
        %v1551 = vadd.f32 %v1550, %v1488
        %v1552 = vadd.f32 %v1551, %v1489
        %v1553 = vadd.f32 %v1552, %v1490
        %v1554 = vadd.f32 %v1553, %v1491
        %v1555 = vadd.f32 %v1554, %v1492
        %v1556 = vadd.f32 %v1555, %v1493
        %v1557 = vadd.f32 %v1556, %v1494
        %v1558 = vadd.f32 %v1557, %v1495
        %v1559 = vadd.f32 %v1558, %v1496
        %v1560 = vadd.f32 %v1559, %v1497
        %v1561 = vadd.f32 %v1560, %v1498
        %v1562 = vadd.f32 %v1561, %v1499
        %v1563 = vadd.f32 %v1562, %v1500
        %v1564 = vadd.f32 %v1563, %v1501
        %v1565 = vadd.f32 %v1564, %v1502
        %v1566 = vadd.f32 %v1565, %v1503
        %v1567 = vadd.f32 %v1566, %v1504
        %v1568 = vadd.f32 %v1567, %v1505
        %v1569 = vadd.f32 %v1568, %v1506
        %v1570 = vadd.f32 %v1569, %v1507
        %v1571 = vadd.f32 %v1570, %v1508
        %v1572 = vadd.f32 %v1571, %v1509
        %v1573 = vadd.f32 %v1572, %v1510
        %v1574 = vadd.f32 %v1573, %v1511
        %v1575 = vadd.f32 %v1574, %v1512
        %1576 = vadd.xlane.f32.xlu0 %v1575
        %v1577 = vpop.xlane.xlu0 %1576
        %v1578 = vrot.slane %v1577, 4
        %v1579 = vadd.f32 %v1577, %v1578
        %v1580 = vrot.slane %v1579, 2
        %v1581 = vadd.f32 %v1579, %v1580
        %v1582 = vrot.slane %v1581, 1
        %v1583 = vadd.f32 %v1581, %v1582
        %s1584 = vtos %v1583
        %s1585 = smul.f32 %s1448, 1.5258789e-05
        %s1586 = smul.f32 %s1584, 1.5258789e-05
        %s1587 = smul.f32 %s1585, %s1585
        %s1588 = ssub.f32 %s1586, %s1587
        %s1589 = smax.f32 %s1588, 0.0
        %v1590 = vld [vmem:[%s4] sm:$0xf]
        %v1591 = vstv %s1585
        %v1592 = vsub.f32 %v1313, %v1591
        %v1593 = vsub.f32 %v1314, %v1591
        %v1594 = vsub.f32 %v1315, %v1591
        %v1595 = vsub.f32 %v1316, %v1591
        %v1596 = vsub.f32 %v1317, %v1591
        %v1597 = vsub.f32 %v1318, %v1591
        %v1598 = vsub.f32 %v1319, %v1591
        %v1599 = vsub.f32 %v1320, %v1591
        %v1600 = vsub.f32 %v1321, %v1591
        %v1601 = vsub.f32 %v1322, %v1591
        %v1602 = vsub.f32 %v1323, %v1591
        %v1603 = vsub.f32 %v1324, %v1591
        %v1604 = vsub.f32 %v1325, %v1591
        %v1605 = vsub.f32 %v1326, %v1591
        %v1606 = vsub.f32 %v1327, %v1591
        %v1607 = vsub.f32 %v1328, %v1591
        %v1608 = vsub.f32 %v1329, %v1591
        %v1609 = vsub.f32 %v1330, %v1591
        %v1610 = vsub.f32 %v1331, %v1591
        %v1611 = vsub.f32 %v1332, %v1591
        %v1612 = vsub.f32 %v1333, %v1591
        %v1613 = vsub.f32 %v1334, %v1591
        %v1614 = vsub.f32 %v1335, %v1591
        %v1615 = vsub.f32 %v1336, %v1591
        %v1616 = vsub.f32 %v1337, %v1591
        %v1617 = vsub.f32 %v1338, %v1591
        %v1618 = vsub.f32 %v1339, %v1591
        %v1619 = vsub.f32 %v1340, %v1591
        %v1620 = vsub.f32 %v1341, %v1591
        %v1621 = vsub.f32 %v1342, %v1591
        %v1622 = vsub.f32 %v1343, %v1591
        %v1623 = vsub.f32 %v1344, %v1591
        %v1624 = vsub.f32 %v1345, %v1591
        %v1625 = vsub.f32 %v1346, %v1591
        %v1626 = vsub.f32 %v1347, %v1591
        %v1627 = vsub.f32 %v1348, %v1591
        %v1628 = vsub.f32 %v1349, %v1591
        %v1629 = vsub.f32 %v1350, %v1591
        %v1630 = vsub.f32 %v1351, %v1591
        %v1631 = vsub.f32 %v1352, %v1591
        %v1632 = vsub.f32 %v1353, %v1591
        %v1633 = vsub.f32 %v1354, %v1591
        %v1634 = vsub.f32 %v1355, %v1591
        %v1635 = vsub.f32 %v1356, %v1591
        %v1636 = vsub.f32 %v1357, %v1591
        %v1637 = vsub.f32 %v1358, %v1591
        %v1638 = vsub.f32 %v1359, %v1591
        %v1639 = vsub.f32 %v1360, %v1591
        %v1640 = vsub.f32 %v1361, %v1591
        %v1641 = vsub.f32 %v1362, %v1591
        %v1642 = vsub.f32 %v1363, %v1591
        %v1643 = vsub.f32 %v1364, %v1591
        %v1644 = vsub.f32 %v1365, %v1591
        %v1645 = vsub.f32 %v1366, %v1591
        %v1646 = vsub.f32 %v1367, %v1591
        %v1647 = vsub.f32 %v1368, %v1591
        %v1648 = vsub.f32 %v1369, %v1591
        %v1649 = vsub.f32 %v1370, %v1591
        %v1650 = vsub.f32 %v1371, %v1591
        %v1651 = vsub.f32 %v1372, %v1591
        %v1652 = vsub.f32 %v1373, %v1591
        %v1653 = vsub.f32 %v1374, %v1591
        %v1654 = vsub.f32 %v1375, %v1591
        %v1655 = vsub.f32 %v1376, %v1591
        %v1657 = vlaneseq
        %v1658 = vshrl.u32 %v1657, 7
        %v1659 = vsub.s32 0, %v1658
        %v1660 = vrot.slane %v1590, %v1659
        %v1661 = vlaneseq
        %v1662 = vshrl.u32 %v1661, 7
        %v1663 = vsub.s32 1, %v1662
        %v1664 = vrot.slane %v1590, %v1663
        %v1665 = vlaneseq
        %v1666 = vshrl.u32 %v1665, 7
        %v1667 = vsub.s32 2, %v1666
        %v1668 = vrot.slane %v1590, %v1667
        %v1669 = vlaneseq
        %v1670 = vshrl.u32 %v1669, 7
        %v1671 = vsub.s32 3, %v1670
        %v1672 = vrot.slane %v1590, %v1671
        %v1677 = vmul.f32 %v1660, %v1592
        %v1678 = vmul.f32 %v1664, %v1593
        %v1679 = vmul.f32 %v1668, %v1594
        %v1680 = vmul.f32 %v1672, %v1595
        %v1681 = vmul.f32 %v1660, %v1596
        %v1682 = vmul.f32 %v1664, %v1597
        %v1683 = vmul.f32 %v1668, %v1598
        %v1684 = vmul.f32 %v1672, %v1599
        %v1685 = vmul.f32 %v1660, %v1600
        %v1686 = vmul.f32 %v1664, %v1601
        %v1687 = vmul.f32 %v1668, %v1602
        %v1688 = vmul.f32 %v1672, %v1603
        %v1689 = vmul.f32 %v1660, %v1604
        %v1690 = vmul.f32 %v1664, %v1605
        %v1691 = vmul.f32 %v1668, %v1606
        %v1692 = vmul.f32 %v1672, %v1607
        %v1693 = vmul.f32 %v1660, %v1608
        %v1694 = vmul.f32 %v1664, %v1609
        %v1695 = vmul.f32 %v1668, %v1610
        %v1696 = vmul.f32 %v1672, %v1611
        %v1697 = vmul.f32 %v1660, %v1612
        %v1698 = vmul.f32 %v1664, %v1613
        %v1699 = vmul.f32 %v1668, %v1614
        %v1700 = vmul.f32 %v1672, %v1615
        %v1701 = vmul.f32 %v1660, %v1616
        %v1702 = vmul.f32 %v1664, %v1617
        %v1703 = vmul.f32 %v1668, %v1618
        %v1704 = vmul.f32 %v1672, %v1619
        %v1705 = vmul.f32 %v1660, %v1620
        %v1706 = vmul.f32 %v1664, %v1621
        %v1707 = vmul.f32 %v1668, %v1622
        %v1708 = vmul.f32 %v1672, %v1623
        %v1709 = vmul.f32 %v1660, %v1624
        %v1710 = vmul.f32 %v1664, %v1625
        %v1711 = vmul.f32 %v1668, %v1626
        %v1712 = vmul.f32 %v1672, %v1627
        %v1713 = vmul.f32 %v1660, %v1628
        %v1714 = vmul.f32 %v1664, %v1629
        %v1715 = vmul.f32 %v1668, %v1630
        %v1716 = vmul.f32 %v1672, %v1631
        %v1717 = vmul.f32 %v1660, %v1632
        %v1718 = vmul.f32 %v1664, %v1633
        %v1719 = vmul.f32 %v1668, %v1634
        %v1720 = vmul.f32 %v1672, %v1635
        %v1721 = vmul.f32 %v1660, %v1636
        %v1722 = vmul.f32 %v1664, %v1637
        %v1723 = vmul.f32 %v1668, %v1638
        %v1724 = vmul.f32 %v1672, %v1639
        %v1725 = vmul.f32 %v1660, %v1640
        %v1726 = vmul.f32 %v1664, %v1641
        %v1727 = vmul.f32 %v1668, %v1642
        %v1728 = vmul.f32 %v1672, %v1643
        %v1729 = vmul.f32 %v1660, %v1644
        %v1730 = vmul.f32 %v1664, %v1645
        %v1731 = vmul.f32 %v1668, %v1646
        %v1732 = vmul.f32 %v1672, %v1647
        %v1733 = vmul.f32 %v1660, %v1648
        %v1734 = vmul.f32 %v1664, %v1649
        %v1735 = vmul.f32 %v1668, %v1650
        %v1736 = vmul.f32 %v1672, %v1651
        %v1737 = vmul.f32 %v1660, %v1652
        %v1738 = vmul.f32 %v1664, %v1653
        %v1739 = vmul.f32 %v1668, %v1654
        %v1740 = vmul.f32 %v1672, %v1655
        %s1741 = sadd.f32 %s1589, 1e-08
        %v1742 = vstv %s1741
        %v1743 = vrsqrt.pop %v1742
        %s1744 = vtos %v1743
        %v1745 = vstv %s1744
        %v1746 = vmul.f32 %v1677, %v1745
        %v1747 = vmul.f32 %v1678, %v1745
        %v1748 = vmul.f32 %v1679, %v1745
        %v1749 = vmul.f32 %v1680, %v1745
        %v1750 = vmul.f32 %v1681, %v1745
        %v1751 = vmul.f32 %v1682, %v1745
        %v1752 = vmul.f32 %v1683, %v1745
        %v1753 = vmul.f32 %v1684, %v1745
        %v1754 = vmul.f32 %v1685, %v1745
        %v1755 = vmul.f32 %v1686, %v1745
        %v1756 = vmul.f32 %v1687, %v1745
        %v1757 = vmul.f32 %v1688, %v1745
        %v1758 = vmul.f32 %v1689, %v1745
        %v1759 = vmul.f32 %v1690, %v1745
        %v1760 = vmul.f32 %v1691, %v1745
        %v1761 = vmul.f32 %v1692, %v1745
        %v1762 = vmul.f32 %v1693, %v1745
        %v1763 = vmul.f32 %v1694, %v1745
        %v1764 = vmul.f32 %v1695, %v1745
        %v1765 = vmul.f32 %v1696, %v1745
        %v1766 = vmul.f32 %v1697, %v1745
        %v1767 = vmul.f32 %v1698, %v1745
        %v1768 = vmul.f32 %v1699, %v1745
        %v1769 = vmul.f32 %v1700, %v1745
        %v1770 = vmul.f32 %v1701, %v1745
        %v1771 = vmul.f32 %v1702, %v1745
        %v1772 = vmul.f32 %v1703, %v1745
        %v1773 = vmul.f32 %v1704, %v1745
        %v1774 = vmul.f32 %v1705, %v1745
        %v1775 = vmul.f32 %v1706, %v1745
        %v1776 = vmul.f32 %v1707, %v1745
        %v1777 = vmul.f32 %v1708, %v1745
        %v1778 = vmul.f32 %v1709, %v1745
        %v1779 = vmul.f32 %v1710, %v1745
        %v1780 = vmul.f32 %v1711, %v1745
        %v1781 = vmul.f32 %v1712, %v1745
        %v1782 = vmul.f32 %v1713, %v1745
        %v1783 = vmul.f32 %v1714, %v1745
        %v1784 = vmul.f32 %v1715, %v1745
        %v1785 = vmul.f32 %v1716, %v1745
        %v1786 = vmul.f32 %v1717, %v1745
        %v1787 = vmul.f32 %v1718, %v1745
        %v1788 = vmul.f32 %v1719, %v1745
        %v1789 = vmul.f32 %v1720, %v1745
        %v1790 = vmul.f32 %v1721, %v1745
        %v1791 = vmul.f32 %v1722, %v1745
        %v1792 = vmul.f32 %v1723, %v1745
        %v1793 = vmul.f32 %v1724, %v1745
        %v1794 = vmul.f32 %v1725, %v1745
        %v1795 = vmul.f32 %v1726, %v1745
        %v1796 = vmul.f32 %v1727, %v1745
        %v1797 = vmul.f32 %v1728, %v1745
        %v1798 = vmul.f32 %v1729, %v1745
        %v1799 = vmul.f32 %v1730, %v1745
        %v1800 = vmul.f32 %v1731, %v1745
        %v1801 = vmul.f32 %v1732, %v1745
        %v1802 = vmul.f32 %v1733, %v1745
        %v1803 = vmul.f32 %v1734, %v1745
        %v1804 = vmul.f32 %v1735, %v1745
        %v1805 = vmul.f32 %v1736, %v1745
        %v1806 = vmul.f32 %v1737, %v1745
        %v1807 = vmul.f32 %v1738, %v1745
        %v1808 = vmul.f32 %v1739, %v1745
        %v1809 = vmul.f32 %v1740, %v1745
        %v1810 = vld [vmem:[#allocation10] sm:$0xf]
        %v1812 = vlaneseq
        %v1813 = vshrl.u32 %v1812, 7
        %v1814 = vsub.s32 0, %v1813
        %v1815 = vrot.slane %v1810, %v1814
        %v1816 = vlaneseq
        %v1817 = vshrl.u32 %v1816, 7
        %v1818 = vsub.s32 1, %v1817
        %v1819 = vrot.slane %v1810, %v1818
        %v1820 = vlaneseq
        %v1821 = vshrl.u32 %v1820, 7
        %v1822 = vsub.s32 2, %v1821
        %v1823 = vrot.slane %v1810, %v1822
        %v1824 = vlaneseq
        %v1825 = vshrl.u32 %v1824, 7
        %v1826 = vsub.s32 3, %v1825
        %v1827 = vrot.slane %v1810, %v1826
        %v1832 = vadd.f32 %v1746, %v1815
        %v1833 = vadd.f32 %v1747, %v1819
        %v1834 = vadd.f32 %v1748, %v1823
        %v1835 = vadd.f32 %v1749, %v1827
        %v1836 = vadd.f32 %v1750, %v1815
        %v1837 = vadd.f32 %v1751, %v1819
        %v1838 = vadd.f32 %v1752, %v1823
        %v1839 = vadd.f32 %v1753, %v1827
        %v1840 = vadd.f32 %v1754, %v1815
        %v1841 = vadd.f32 %v1755, %v1819
        %v1842 = vadd.f32 %v1756, %v1823
        %v1843 = vadd.f32 %v1757, %v1827
        %v1844 = vadd.f32 %v1758, %v1815
        %v1845 = vadd.f32 %v1759, %v1819
        %v1846 = vadd.f32 %v1760, %v1823
        %v1847 = vadd.f32 %v1761, %v1827
        %v1848 = vadd.f32 %v1762, %v1815
        %v1849 = vadd.f32 %v1763, %v1819
        %v1850 = vadd.f32 %v1764, %v1823
        %v1851 = vadd.f32 %v1765, %v1827
        %v1852 = vadd.f32 %v1766, %v1815
        %v1853 = vadd.f32 %v1767, %v1819
        %v1854 = vadd.f32 %v1768, %v1823
        %v1855 = vadd.f32 %v1769, %v1827
        %v1856 = vadd.f32 %v1770, %v1815
        %v1857 = vadd.f32 %v1771, %v1819
        %v1858 = vadd.f32 %v1772, %v1823
        %v1859 = vadd.f32 %v1773, %v1827
        %v1860 = vadd.f32 %v1774, %v1815
        %v1861 = vadd.f32 %v1775, %v1819
        %v1862 = vadd.f32 %v1776, %v1823
        %v1863 = vadd.f32 %v1777, %v1827
        %v1864 = vadd.f32 %v1778, %v1815
        %v1865 = vadd.f32 %v1779, %v1819
        %v1866 = vadd.f32 %v1780, %v1823
        %v1867 = vadd.f32 %v1781, %v1827
        %v1868 = vadd.f32 %v1782, %v1815
        %v1869 = vadd.f32 %v1783, %v1819
        %v1870 = vadd.f32 %v1784, %v1823
        %v1871 = vadd.f32 %v1785, %v1827
        %v1872 = vadd.f32 %v1786, %v1815
        %v1873 = vadd.f32 %v1787, %v1819
        %v1874 = vadd.f32 %v1788, %v1823
        %v1875 = vadd.f32 %v1789, %v1827
        %v1876 = vadd.f32 %v1790, %v1815
        %v1877 = vadd.f32 %v1791, %v1819
        %v1878 = vadd.f32 %v1792, %v1823
        %v1879 = vadd.f32 %v1793, %v1827
        %v1880 = vadd.f32 %v1794, %v1815
        %v1881 = vadd.f32 %v1795, %v1819
        %v1882 = vadd.f32 %v1796, %v1823
        %v1883 = vadd.f32 %v1797, %v1827
        %v1884 = vadd.f32 %v1798, %v1815
        %v1885 = vadd.f32 %v1799, %v1819
        %v1886 = vadd.f32 %v1800, %v1823
        %v1887 = vadd.f32 %v1801, %v1827
        %v1888 = vadd.f32 %v1802, %v1815
        %v1889 = vadd.f32 %v1803, %v1819
        %v1890 = vadd.f32 %v1804, %v1823
        %v1891 = vadd.f32 %v1805, %v1827
        %v1892 = vadd.f32 %v1806, %v1815
        %v1893 = vadd.f32 %v1807, %v1819
        %v1894 = vadd.f32 %v1808, %v1823
        %v1895 = vadd.f32 %v1809, %v1827
        %p1896 = scmp.eq.s32.totalorder %s34, 0
        // Predicated region
        $region89: #{tpu_custom_call.1} parent=71 // pred_check
          %p1897 = pneg %p1896
        $region90: #{tpu_custom_call.1} parent=71 // pred_check_branch
          %1899 = sbr.rel (%p1897) target = $region92
        $region91: #{tpu_custom_call.1} parent=71 // pred_region
          %v1900 = vlaneseq
          %vm1901 = vcmp.ge.s32.totalorder %v1900, 0
          %vm1902 = vcmp.lt.s32.totalorder %v1900, 512
          %vm1903 = vmand %vm1901, %vm1902
          %s1904 = scalar_lea.vmem [#allocation2], 7
          %1905 = vst.msk [vmem:[%s1904] ss:$8 sm:$0xf] %vm1903, 0.0
          %1906 = vst.msk [vmem:[%s1904] ss:$8 sm:$0x0] %vm1903, 0.0
          %s1907 = scalar_lea.vmem [#allocation2], 544
          %1908 = vst.msk [vmem:[%s1907] ss:$8 sm:$0xf] %vm1903, 0.0
          %1909 = vst.msk [vmem:[%s1907] ss:$8 sm:$0x0] %vm1903, 0.0
        $region92: #{tpu_custom_call.1} parent=71 // pred_fallthru
          _
        %1910 = vst [vmem:[#allocation2 + $0x20] sm:$0xff] %v1832
        %1911 = vst [vmem:[#allocation2 + $0x28] sm:$0xff] %v1833
        %1912 = vst [vmem:[#allocation2 + $0x30] sm:$0xff] %v1834
        %1913 = vst [vmem:[#allocation2 + $0x38] sm:$0xff] %v1835
        %1914 = vst [vmem:[#allocation2 + $0x40] sm:$0xff] %v1836
        %1915 = vst [vmem:[#allocation2 + $0x48] sm:$0xff] %v1837
        %1916 = vst [vmem:[#allocation2 + $0x50] sm:$0xff] %v1838
        %1917 = vst [vmem:[#allocation2 + $0x58] sm:$0xff] %v1839
        %1918 = vst [vmem:[#allocation2 + $0x60] sm:$0xff] %v1840
        %1919 = vst [vmem:[#allocation2 + $0x68] sm:$0xff] %v1841
        %1920 = vst [vmem:[#allocation2 + $0x70] sm:$0xff] %v1842
        %1921 = vst [vmem:[#allocation2 + $0x78] sm:$0xff] %v1843
        %1922 = vst [vmem:[#allocation2 + $0x80] sm:$0xff] %v1844
        %1923 = vst [vmem:[#allocation2 + $0x88] sm:$0xff] %v1845
        %1924 = vst [vmem:[#allocation2 + $0x90] sm:$0xff] %v1846
        %1925 = vst [vmem:[#allocation2 + $0x98] sm:$0xff] %v1847
        %1926 = vst [vmem:[#allocation2 + $0xa0] sm:$0xff] %v1848
        %1927 = vst [vmem:[#allocation2 + $0xa8] sm:$0xff] %v1849
        %1928 = vst [vmem:[#allocation2 + $0xb0] sm:$0xff] %v1850
        %1929 = vst [vmem:[#allocation2 + $0xb8] sm:$0xff] %v1851
        %1930 = vst [vmem:[#allocation2 + $0xc0] sm:$0xff] %v1852
        %1931 = vst [vmem:[#allocation2 + $0xc8] sm:$0xff] %v1853
        %1932 = vst [vmem:[#allocation2 + $0xd0] sm:$0xff] %v1854
        %1933 = vst [vmem:[#allocation2 + $0xd8] sm:$0xff] %v1855
        %1934 = vst [vmem:[#allocation2 + $0xe0] sm:$0xff] %v1856
        %1935 = vst [vmem:[#allocation2 + $0xe8] sm:$0xff] %v1857
        %1936 = vst [vmem:[#allocation2 + $0xf0] sm:$0xff] %v1858
        %1937 = vst [vmem:[#allocation2 + $0xf8] sm:$0xff] %v1859
        %1938 = vst [vmem:[#allocation2 + $0x100] sm:$0xff] %v1860
        %1939 = vst [vmem:[#allocation2 + $0x108] sm:$0xff] %v1861
        %1940 = vst [vmem:[#allocation2 + $0x110] sm:$0xff] %v1862
        %1941 = vst [vmem:[#allocation2 + $0x118] sm:$0xff] %v1863
        %1942 = vst [vmem:[#allocation2 + $0x120] sm:$0xff] %v1864
        %1943 = vst [vmem:[#allocation2 + $0x128] sm:$0xff] %v1865
        %1944 = vst [vmem:[#allocation2 + $0x130] sm:$0xff] %v1866
        %1945 = vst [vmem:[#allocation2 + $0x138] sm:$0xff] %v1867
        %1946 = vst [vmem:[#allocation2 + $0x140] sm:$0xff] %v1868
        %1947 = vst [vmem:[#allocation2 + $0x148] sm:$0xff] %v1869
        %1948 = vst [vmem:[#allocation2 + $0x150] sm:$0xff] %v1870
        %1949 = vst [vmem:[#allocation2 + $0x158] sm:$0xff] %v1871
        %1950 = vst [vmem:[#allocation2 + $0x160] sm:$0xff] %v1872
        %1951 = vst [vmem:[#allocation2 + $0x168] sm:$0xff] %v1873
        %1952 = vst [vmem:[#allocation2 + $0x170] sm:$0xff] %v1874
        %1953 = vst [vmem:[#allocation2 + $0x178] sm:$0xff] %v1875
        %1954 = vst [vmem:[#allocation2 + $0x180] sm:$0xff] %v1876
        %1955 = vst [vmem:[#allocation2 + $0x188] sm:$0xff] %v1877
        %1956 = vst [vmem:[#allocation2 + $0x190] sm:$0xff] %v1878
        %1957 = vst [vmem:[#allocation2 + $0x198] sm:$0xff] %v1879
        %1958 = vst [vmem:[#allocation2 + $0x1a0] sm:$0xff] %v1880
        %1959 = vst [vmem:[#allocation2 + $0x1a8] sm:$0xff] %v1881
        %1960 = vst [vmem:[#allocation2 + $0x1b0] sm:$0xff] %v1882
        %1961 = vst [vmem:[#allocation2 + $0x1b8] sm:$0xff] %v1883
        %1962 = vst [vmem:[#allocation2 + $0x1c0] sm:$0xff] %v1884
        %1963 = vst [vmem:[#allocation2 + $0x1c8] sm:$0xff] %v1885
        %1964 = vst [vmem:[#allocation2 + $0x1d0] sm:$0xff] %v1886
        %1965 = vst [vmem:[#allocation2 + $0x1d8] sm:$0xff] %v1887
        %1966 = vst [vmem:[#allocation2 + $0x1e0] sm:$0xff] %v1888
        %1967 = vst [vmem:[#allocation2 + $0x1e8] sm:$0xff] %v1889
        %1968 = vst [vmem:[#allocation2 + $0x1f0] sm:$0xff] %v1890
        %1969 = vst [vmem:[#allocation2 + $0x1f8] sm:$0xff] %v1891
        %1970 = vst [vmem:[#allocation2 + $0x200] sm:$0xff] %v1892
        %1971 = vst [vmem:[#allocation2 + $0x208] sm:$0xff] %v1893
        %1972 = vst [vmem:[#allocation2 + $0x210] sm:$0xff] %v1894
        %1973 = vst [vmem:[#allocation2 + $0x218] sm:$0xff] %v1895
        %v1974 = vld [vmem:[%s6] sm:$0x77]
        %v1975 = vld [vmem:[%s6 + $0x8] sm:$0x77]
        %v1976 = vld [vmem:[#allocation2] sm:$0x80]
        %v1977 = vld [vmem:[#allocation2 + $0x8] sm:$0x80]
        %v1978 = vld [vmem:[#allocation2 + $0x10] sm:$0x80]
        %v1979 = vld [vmem:[#allocation2 + $0x18] sm:$0x80]
        %v1980 = vld [vmem:[#allocation2 + $0x20] sm:$0xff]
        %v1981 = vld [vmem:[#allocation2 + $0x28] sm:$0xff]
        %v1982 = vld [vmem:[#allocation2 + $0x30] sm:$0xff]
        %v1983 = vld [vmem:[#allocation2 + $0x38] sm:$0xff]
        %v1984 = vld [vmem:[#allocation2 + $0x40] sm:$0xff]
        %v1985 = vld [vmem:[#allocation2 + $0x48] sm:$0xff]
        %v1986 = vld [vmem:[#allocation2 + $0x50] sm:$0xff]
        %v1987 = vld [vmem:[#allocation2 + $0x58] sm:$0xff]
        %v1988 = vld [vmem:[#allocation2 + $0x60] sm:$0xff]
        %v1989 = vld [vmem:[#allocation2 + $0x68] sm:$0xff]
        %v1990 = vld [vmem:[#allocation2 + $0x70] sm:$0xff]
        %v1991 = vld [vmem:[#allocation2 + $0x78] sm:$0xff]
        %v1992 = vld [vmem:[#allocation2 + $0x80] sm:$0xff]
        %v1993 = vld [vmem:[#allocation2 + $0x88] sm:$0xff]
        %v1994 = vld [vmem:[#allocation2 + $0x90] sm:$0xff]
        %v1995 = vld [vmem:[#allocation2 + $0x98] sm:$0xff]
        %v1996 = vld [vmem:[#allocation2 + $0xa0] sm:$0xff]
        %v1997 = vld [vmem:[#allocation2 + $0xa8] sm:$0xff]
        %v1998 = vld [vmem:[#allocation2 + $0xb0] sm:$0xff]
        %v1999 = vld [vmem:[#allocation2 + $0xb8] sm:$0xff]
        %v2000 = vld [vmem:[#allocation2 + $0xc0] sm:$0xff]
        %v2001 = vld [vmem:[#allocation2 + $0xc8] sm:$0xff]
        %v2002 = vld [vmem:[#allocation2 + $0xd0] sm:$0xff]
        %v2003 = vld [vmem:[#allocation2 + $0xd8] sm:$0xff]
        %v2004 = vld [vmem:[#allocation2 + $0xe0] sm:$0xff]
        %v2005 = vld [vmem:[#allocation2 + $0xe8] sm:$0xff]
        %v2006 = vld [vmem:[#allocation2 + $0xf0] sm:$0xff]
        %v2007 = vld [vmem:[#allocation2 + $0xf8] sm:$0xff]
        %v2008 = vld [vmem:[#allocation2 + $0x100] sm:$0xff]
        %v2009 = vld [vmem:[#allocation2 + $0x108] sm:$0xff]
        %v2010 = vld [vmem:[#allocation2 + $0x110] sm:$0xff]
        %v2011 = vld [vmem:[#allocation2 + $0x118] sm:$0xff]
        %v2012 = vld [vmem:[#allocation2 + $0x120] sm:$0xff]
        %v2013 = vld [vmem:[#allocation2 + $0x128] sm:$0xff]
        %v2014 = vld [vmem:[#allocation2 + $0x130] sm:$0xff]
        %v2015 = vld [vmem:[#allocation2 + $0x138] sm:$0xff]
        %v2016 = vld [vmem:[#allocation2 + $0x140] sm:$0xff]
        %v2017 = vld [vmem:[#allocation2 + $0x148] sm:$0xff]
        %v2018 = vld [vmem:[#allocation2 + $0x150] sm:$0xff]
        %v2019 = vld [vmem:[#allocation2 + $0x158] sm:$0xff]
        %v2020 = vld [vmem:[#allocation2 + $0x160] sm:$0xff]
        %v2021 = vld [vmem:[#allocation2 + $0x168] sm:$0xff]
        %v2022 = vld [vmem:[#allocation2 + $0x170] sm:$0xff]
        %v2023 = vld [vmem:[#allocation2 + $0x178] sm:$0xff]
        %v2024 = vld [vmem:[#allocation2 + $0x180] sm:$0xff]
        %v2025 = vld [vmem:[#allocation2 + $0x188] sm:$0xff]
        %v2026 = vld [vmem:[#allocation2 + $0x190] sm:$0xff]
        %v2027 = vld [vmem:[#allocation2 + $0x198] sm:$0xff]
        %v2028 = vld [vmem:[#allocation2 + $0x1a0] sm:$0xff]
        %v2029 = vld [vmem:[#allocation2 + $0x1a8] sm:$0xff]
        %v2030 = vld [vmem:[#allocation2 + $0x1b0] sm:$0xff]
        %v2031 = vld [vmem:[#allocation2 + $0x1b8] sm:$0xff]
        %v2032 = vld [vmem:[#allocation2 + $0x1c0] sm:$0xff]
        %v2033 = vld [vmem:[#allocation2 + $0x1c8] sm:$0xff]
        %v2034 = vld [vmem:[#allocation2 + $0x1d0] sm:$0xff]
        %v2035 = vld [vmem:[#allocation2 + $0x1d8] sm:$0xff]
        %v2036 = vld [vmem:[#allocation2 + $0x1e0] sm:$0xff]
        %v2037 = vld [vmem:[#allocation2 + $0x1e8] sm:$0xff]
        %v2038 = vld [vmem:[#allocation2 + $0x1f0] sm:$0xff]
        %v2039 = vld [vmem:[#allocation2 + $0x1f8] sm:$0xff]
        %v2040 = vld [vmem:[#allocation2 + $0x200] sm:$0x7f]
        %v2041 = vld [vmem:[#allocation2 + $0x208] sm:$0x7f]
        %v2042 = vld [vmem:[#allocation2 + $0x210] sm:$0x7f]
        %v2043 = vld [vmem:[#allocation2 + $0x218] sm:$0x7f]
        %v2046 = vlaneseq
        %v2047 = vshrl.u32 %v2046, 7
        %v2048 = vsub.s32 0, %v2047
        %v2049 = vrot.slane %v1974, %v2048
        %v2050 = vlaneseq
        %v2051 = vshrl.u32 %v2050, 7
        %v2052 = vsub.s32 4, %v2051
        %v2053 = vrot.slane %v1974, %v2052
        %v2054 = vlaneseq
        %v2055 = vshrl.u32 %v2054, 7
        %v2056 = vsub.s32 0, %v2055
        %v2057 = vrot.slane %v1975, %v2056
        %v2058 = vlaneseq
        %v2059 = vshrl.u32 %v2058, 7
        %v2060 = vsub.s32 4, %v2059
        %v2061 = vrot.slane %v1975, %v2060
        %v2066 = vlaneseq
        %v2067 = vshrl.u32 %v2066, 7
        %v2068 = vsub.s32 0, %v2067
        %v2069 = vrot.slane %v2049, %v2068
        %v2070 = vlaneseq
        %v2071 = vshrl.u32 %v2070, 7
        %v2072 = vsub.s32 0, %v2071
        %v2073 = vrot.slane %v2053, %v2072
        %v2074 = vlaneseq
        %v2075 = vshrl.u32 %v2074, 7
        %v2076 = vsub.s32 0, %v2075
        %v2077 = vrot.slane %v2057, %v2076
        %v2078 = vlaneseq
        %v2079 = vshrl.u32 %v2078, 7
        %v2080 = vsub.s32 0, %v2079
        %v2081 = vrot.slane %v2061, %v2080
        %v2082 = vmul.f32 %v1976, %v2069
        %v2083 = vmul.f32 %v1977, %v2073
        %v2084 = vmul.f32 %v1978, %v2077
        %v2085 = vmul.f32 %v1979, %v2081
        %v2086 = vmul.f32 %v1980, %v2069
        %v2087 = vmul.f32 %v1981, %v2073
        %v2088 = vmul.f32 %v1982, %v2077
        %v2089 = vmul.f32 %v1983, %v2081
        %v2090 = vmul.f32 %v1984, %v2069
        %v2091 = vmul.f32 %v1985, %v2073
        %v2092 = vmul.f32 %v1986, %v2077
        %v2093 = vmul.f32 %v1987, %v2081
        %v2094 = vmul.f32 %v1988, %v2069
        %v2095 = vmul.f32 %v1989, %v2073
        %v2096 = vmul.f32 %v1990, %v2077
        %v2097 = vmul.f32 %v1991, %v2081
        %v2098 = vmul.f32 %v1992, %v2069
        %v2099 = vmul.f32 %v1993, %v2073
        %v2100 = vmul.f32 %v1994, %v2077
        %v2101 = vmul.f32 %v1995, %v2081
        %v2102 = vmul.f32 %v1996, %v2069
        %v2103 = vmul.f32 %v1997, %v2073
        %v2104 = vmul.f32 %v1998, %v2077
        %v2105 = vmul.f32 %v1999, %v2081
        %v2106 = vmul.f32 %v2000, %v2069
        %v2107 = vmul.f32 %v2001, %v2073
        %v2108 = vmul.f32 %v2002, %v2077
        %v2109 = vmul.f32 %v2003, %v2081
        %v2110 = vmul.f32 %v2004, %v2069
        %v2111 = vmul.f32 %v2005, %v2073
        %v2112 = vmul.f32 %v2006, %v2077
        %v2113 = vmul.f32 %v2007, %v2081
        %v2114 = vmul.f32 %v2008, %v2069
        %v2115 = vmul.f32 %v2009, %v2073
        %v2116 = vmul.f32 %v2010, %v2077
        %v2117 = vmul.f32 %v2011, %v2081
        %v2118 = vmul.f32 %v2012, %v2069
        %v2119 = vmul.f32 %v2013, %v2073
        %v2120 = vmul.f32 %v2014, %v2077
        %v2121 = vmul.f32 %v2015, %v2081
        %v2122 = vmul.f32 %v2016, %v2069
        %v2123 = vmul.f32 %v2017, %v2073
        %v2124 = vmul.f32 %v2018, %v2077
        %v2125 = vmul.f32 %v2019, %v2081
        %v2126 = vmul.f32 %v2020, %v2069
        %v2127 = vmul.f32 %v2021, %v2073
        %v2128 = vmul.f32 %v2022, %v2077
        %v2129 = vmul.f32 %v2023, %v2081
        %v2130 = vmul.f32 %v2024, %v2069
        %v2131 = vmul.f32 %v2025, %v2073
        %v2132 = vmul.f32 %v2026, %v2077
        %v2133 = vmul.f32 %v2027, %v2081
        %v2134 = vmul.f32 %v2028, %v2069
        %v2135 = vmul.f32 %v2029, %v2073
        %v2136 = vmul.f32 %v2030, %v2077
        %v2137 = vmul.f32 %v2031, %v2081
        %v2138 = vmul.f32 %v2032, %v2069
        %v2139 = vmul.f32 %v2033, %v2073
        %v2140 = vmul.f32 %v2034, %v2077
        %v2141 = vmul.f32 %v2035, %v2081
        %v2142 = vmul.f32 %v2036, %v2069
        %v2143 = vmul.f32 %v2037, %v2073
        %v2144 = vmul.f32 %v2038, %v2077
        %v2145 = vmul.f32 %v2039, %v2081
        %v2146 = vmul.f32 %v2040, %v2069
        %v2147 = vmul.f32 %v2041, %v2073
        %v2148 = vmul.f32 %v2042, %v2077
        %v2149 = vmul.f32 %v2043, %v2081
        %v2150 = vld [vmem:[#allocation2 + $0x200] sm:$0xff]
        %v2151 = vld [vmem:[#allocation2 + $0x208] sm:$0xff]
        %v2152 = vld [vmem:[#allocation2 + $0x210] sm:$0xff]
        %v2153 = vld [vmem:[#allocation2 + $0x218] sm:$0xff]
        %v2154 = vlaneseq
        %v2155 = vshrl.u32 %v2154, 7
        %v2156 = vsub.s32 1, %v2155
        %v2157 = vrot.slane %v1974, %v2156
        %v2158 = vlaneseq
        %v2159 = vshrl.u32 %v2158, 7
        %v2160 = vsub.s32 5, %v2159
        %v2161 = vrot.slane %v1974, %v2160
        %v2162 = vlaneseq
        %v2163 = vshrl.u32 %v2162, 7
        %v2164 = vsub.s32 1, %v2163
        %v2165 = vrot.slane %v1975, %v2164
        %v2166 = vlaneseq
        %v2167 = vshrl.u32 %v2166, 7
        %v2168 = vsub.s32 5, %v2167
        %v2169 = vrot.slane %v1975, %v2168
        %v2174 = vlaneseq
        %v2175 = vshrl.u32 %v2174, 7
        %v2176 = vsub.s32 1, %v2175
        %v2177 = vrot.slane %v2157, %v2176
        %v2178 = vlaneseq
        %v2179 = vshrl.u32 %v2178, 7
        %v2180 = vsub.s32 1, %v2179
        %v2181 = vrot.slane %v2161, %v2180
        %v2182 = vlaneseq
        %v2183 = vshrl.u32 %v2182, 7
        %v2184 = vsub.s32 1, %v2183
        %v2185 = vrot.slane %v2165, %v2184
        %v2186 = vlaneseq
        %v2187 = vshrl.u32 %v2186, 7
        %v2188 = vsub.s32 1, %v2187
        %v2189 = vrot.slane %v2169, %v2188
        %v2190 = vmul.f32 %v1980, %v2177
        %v2191 = vmul.f32 %v1981, %v2181
        %v2192 = vmul.f32 %v1982, %v2185
        %v2193 = vmul.f32 %v1983, %v2189
        %v2194 = vmul.f32 %v1984, %v2177
        %v2195 = vmul.f32 %v1985, %v2181
        %v2196 = vmul.f32 %v1986, %v2185
        %v2197 = vmul.f32 %v1987, %v2189
        %v2198 = vmul.f32 %v1988, %v2177
        %v2199 = vmul.f32 %v1989, %v2181
        %v2200 = vmul.f32 %v1990, %v2185
        %v2201 = vmul.f32 %v1991, %v2189
        %v2202 = vmul.f32 %v1992, %v2177
        %v2203 = vmul.f32 %v1993, %v2181
        %v2204 = vmul.f32 %v1994, %v2185
        %v2205 = vmul.f32 %v1995, %v2189
        %v2206 = vmul.f32 %v1996, %v2177
        %v2207 = vmul.f32 %v1997, %v2181
        %v2208 = vmul.f32 %v1998, %v2185
        %v2209 = vmul.f32 %v1999, %v2189
        %v2210 = vmul.f32 %v2000, %v2177
        %v2211 = vmul.f32 %v2001, %v2181
        %v2212 = vmul.f32 %v2002, %v2185
        %v2213 = vmul.f32 %v2003, %v2189
        %v2214 = vmul.f32 %v2004, %v2177
        %v2215 = vmul.f32 %v2005, %v2181
        %v2216 = vmul.f32 %v2006, %v2185
        %v2217 = vmul.f32 %v2007, %v2189
        %v2218 = vmul.f32 %v2008, %v2177
        %v2219 = vmul.f32 %v2009, %v2181
        %v2220 = vmul.f32 %v2010, %v2185
        %v2221 = vmul.f32 %v2011, %v2189
        %v2222 = vmul.f32 %v2012, %v2177
        %v2223 = vmul.f32 %v2013, %v2181
        %v2224 = vmul.f32 %v2014, %v2185
        %v2225 = vmul.f32 %v2015, %v2189
        %v2226 = vmul.f32 %v2016, %v2177
        %v2227 = vmul.f32 %v2017, %v2181
        %v2228 = vmul.f32 %v2018, %v2185
        %v2229 = vmul.f32 %v2019, %v2189
        %v2230 = vmul.f32 %v2020, %v2177
        %v2231 = vmul.f32 %v2021, %v2181
        %v2232 = vmul.f32 %v2022, %v2185
        %v2233 = vmul.f32 %v2023, %v2189
        %v2234 = vmul.f32 %v2024, %v2177
        %v2235 = vmul.f32 %v2025, %v2181
        %v2236 = vmul.f32 %v2026, %v2185
        %v2237 = vmul.f32 %v2027, %v2189
        %v2238 = vmul.f32 %v2028, %v2177
        %v2239 = vmul.f32 %v2029, %v2181
        %v2240 = vmul.f32 %v2030, %v2185
        %v2241 = vmul.f32 %v2031, %v2189
        %v2242 = vmul.f32 %v2032, %v2177
        %v2243 = vmul.f32 %v2033, %v2181
        %v2244 = vmul.f32 %v2034, %v2185
        %v2245 = vmul.f32 %v2035, %v2189
        %v2246 = vmul.f32 %v2036, %v2177
        %v2247 = vmul.f32 %v2037, %v2181
        %v2248 = vmul.f32 %v2038, %v2185
        %v2249 = vmul.f32 %v2039, %v2189
        %v2250 = vmul.f32 %v2150, %v2177
        %v2251 = vmul.f32 %v2151, %v2181
        %v2252 = vmul.f32 %v2152, %v2185
        %v2253 = vmul.f32 %v2153, %v2189
        %vm2318 = vcmask 1046528
        %v2319 = vrot.slane %v2190, 1
        %v2320 = vrot.slane %v2191, 1
        %v2321 = vrot.slane %v2192, 1
        %v2322 = vrot.slane %v2193, 1
        %v2323 = vrot.slane %v2194, 1
        %v2324 = vsel %vm2318, %v2319, %v2323
        %v2325 = vrot.slane %v2195, 1
        %v2326 = vsel %vm2318, %v2320, %v2325
        %v2327 = vrot.slane %v2196, 1
        %v2328 = vsel %vm2318, %v2321, %v2327
        %v2329 = vrot.slane %v2197, 1
        %v2330 = vsel %vm2318, %v2322, %v2329
        %v2331 = vrot.slane %v2198, 1
        %v2332 = vsel %vm2318, %v2323, %v2331
        %v2333 = vrot.slane %v2199, 1
        %v2334 = vsel %vm2318, %v2325, %v2333
        %v2335 = vrot.slane %v2200, 1
        %v2336 = vsel %vm2318, %v2327, %v2335
        %v2337 = vrot.slane %v2201, 1
        %v2338 = vsel %vm2318, %v2329, %v2337
        %v2339 = vrot.slane %v2202, 1
        %v2340 = vsel %vm2318, %v2331, %v2339
        %v2341 = vrot.slane %v2203, 1
        %v2342 = vsel %vm2318, %v2333, %v2341
        %v2343 = vrot.slane %v2204, 1
        %v2344 = vsel %vm2318, %v2335, %v2343
        %v2345 = vrot.slane %v2205, 1
        %v2346 = vsel %vm2318, %v2337, %v2345
        %v2347 = vrot.slane %v2206, 1
        %v2348 = vsel %vm2318, %v2339, %v2347
        %v2349 = vrot.slane %v2207, 1
        %v2350 = vsel %vm2318, %v2341, %v2349
        %v2351 = vrot.slane %v2208, 1
        %v2352 = vsel %vm2318, %v2343, %v2351
        %v2353 = vrot.slane %v2209, 1
        %v2354 = vsel %vm2318, %v2345, %v2353
        %v2355 = vrot.slane %v2210, 1
        %v2356 = vsel %vm2318, %v2347, %v2355
        %v2357 = vrot.slane %v2211, 1
        %v2358 = vsel %vm2318, %v2349, %v2357
        %v2359 = vrot.slane %v2212, 1
        %v2360 = vsel %vm2318, %v2351, %v2359
        %v2361 = vrot.slane %v2213, 1
        %v2362 = vsel %vm2318, %v2353, %v2361
        %v2363 = vrot.slane %v2214, 1
        %v2364 = vsel %vm2318, %v2355, %v2363
        %v2365 = vrot.slane %v2215, 1
        %v2366 = vsel %vm2318, %v2357, %v2365
        %v2367 = vrot.slane %v2216, 1
        %v2368 = vsel %vm2318, %v2359, %v2367
        %v2369 = vrot.slane %v2217, 1
        %v2370 = vsel %vm2318, %v2361, %v2369
        %v2371 = vrot.slane %v2218, 1
        %v2372 = vsel %vm2318, %v2363, %v2371
        %v2373 = vrot.slane %v2219, 1
        %v2374 = vsel %vm2318, %v2365, %v2373
        %v2375 = vrot.slane %v2220, 1
        %v2376 = vsel %vm2318, %v2367, %v2375
        %v2377 = vrot.slane %v2221, 1
        %v2378 = vsel %vm2318, %v2369, %v2377
        %v2379 = vrot.slane %v2222, 1
        %v2380 = vsel %vm2318, %v2371, %v2379
        %v2381 = vrot.slane %v2223, 1
        %v2382 = vsel %vm2318, %v2373, %v2381
        %v2383 = vrot.slane %v2224, 1
        %v2384 = vsel %vm2318, %v2375, %v2383
        %v2385 = vrot.slane %v2225, 1
        %v2386 = vsel %vm2318, %v2377, %v2385
        %v2387 = vrot.slane %v2226, 1
        %v2388 = vsel %vm2318, %v2379, %v2387
        %v2389 = vrot.slane %v2227, 1
        %v2390 = vsel %vm2318, %v2381, %v2389
        %v2391 = vrot.slane %v2228, 1
        %v2392 = vsel %vm2318, %v2383, %v2391
        %v2393 = vrot.slane %v2229, 1
        %v2394 = vsel %vm2318, %v2385, %v2393
        %v2395 = vrot.slane %v2230, 1
        %v2396 = vsel %vm2318, %v2387, %v2395
        %v2397 = vrot.slane %v2231, 1
        %v2398 = vsel %vm2318, %v2389, %v2397
        %v2399 = vrot.slane %v2232, 1
        %v2400 = vsel %vm2318, %v2391, %v2399
        %v2401 = vrot.slane %v2233, 1
        %v2402 = vsel %vm2318, %v2393, %v2401
        %v2403 = vrot.slane %v2234, 1
        %v2404 = vsel %vm2318, %v2395, %v2403
        %v2405 = vrot.slane %v2235, 1
        %v2406 = vsel %vm2318, %v2397, %v2405
        %v2407 = vrot.slane %v2236, 1
        %v2408 = vsel %vm2318, %v2399, %v2407
        %v2409 = vrot.slane %v2237, 1
        %v2410 = vsel %vm2318, %v2401, %v2409
        %v2411 = vrot.slane %v2238, 1
        %v2412 = vsel %vm2318, %v2403, %v2411
        %v2413 = vrot.slane %v2239, 1
        %v2414 = vsel %vm2318, %v2405, %v2413
        %v2415 = vrot.slane %v2240, 1
        %v2416 = vsel %vm2318, %v2407, %v2415
        %v2417 = vrot.slane %v2241, 1
        %v2418 = vsel %vm2318, %v2409, %v2417
        %v2419 = vrot.slane %v2242, 1
        %v2420 = vsel %vm2318, %v2411, %v2419
        %v2421 = vrot.slane %v2243, 1
        %v2422 = vsel %vm2318, %v2413, %v2421
        %v2423 = vrot.slane %v2244, 1
        %v2424 = vsel %vm2318, %v2415, %v2423
        %v2425 = vrot.slane %v2245, 1
        %v2426 = vsel %vm2318, %v2417, %v2425
        %v2427 = vrot.slane %v2246, 1
        %v2428 = vsel %vm2318, %v2419, %v2427
        %v2429 = vrot.slane %v2247, 1
        %v2430 = vsel %vm2318, %v2421, %v2429
        %v2431 = vrot.slane %v2248, 1
        %v2432 = vsel %vm2318, %v2423, %v2431
        %v2433 = vrot.slane %v2249, 1
        %v2434 = vsel %vm2318, %v2425, %v2433
        %v2435 = vrot.slane %v2250, 1
        %v2436 = vsel %vm2318, %v2427, %v2435
        %v2437 = vrot.slane %v2251, 1
        %v2438 = vsel %vm2318, %v2429, %v2437
        %v2439 = vrot.slane %v2252, 1
        %v2440 = vsel %vm2318, %v2431, %v2439
        %v2441 = vrot.slane %v2253, 1
        %v2442 = vsel %vm2318, %v2433, %v2441
        %v2511 = vadd.f32 %v2082, %v2319
        %v2512 = vadd.f32 %v2083, %v2320
        %v2513 = vadd.f32 %v2084, %v2321
        %v2514 = vadd.f32 %v2085, %v2322
        %v2515 = vadd.f32 %v2086, %v2324
        %v2516 = vadd.f32 %v2087, %v2326
        %v2517 = vadd.f32 %v2088, %v2328
        %v2518 = vadd.f32 %v2089, %v2330
        %v2519 = vadd.f32 %v2090, %v2332
        %v2520 = vadd.f32 %v2091, %v2334
        %v2521 = vadd.f32 %v2092, %v2336
        %v2522 = vadd.f32 %v2093, %v2338
        %v2523 = vadd.f32 %v2094, %v2340
        %v2524 = vadd.f32 %v2095, %v2342
        %v2525 = vadd.f32 %v2096, %v2344
        %v2526 = vadd.f32 %v2097, %v2346
        %v2527 = vadd.f32 %v2098, %v2348
        %v2528 = vadd.f32 %v2099, %v2350
        %v2529 = vadd.f32 %v2100, %v2352
        %v2530 = vadd.f32 %v2101, %v2354
        %v2531 = vadd.f32 %v2102, %v2356
        %v2532 = vadd.f32 %v2103, %v2358
        %v2533 = vadd.f32 %v2104, %v2360
        %v2534 = vadd.f32 %v2105, %v2362
        %v2535 = vadd.f32 %v2106, %v2364
        %v2536 = vadd.f32 %v2107, %v2366
        %v2537 = vadd.f32 %v2108, %v2368
        %v2538 = vadd.f32 %v2109, %v2370
        %v2539 = vadd.f32 %v2110, %v2372
        %v2540 = vadd.f32 %v2111, %v2374
        %v2541 = vadd.f32 %v2112, %v2376
        %v2542 = vadd.f32 %v2113, %v2378
        %v2543 = vadd.f32 %v2114, %v2380
        %v2544 = vadd.f32 %v2115, %v2382
        %v2545 = vadd.f32 %v2116, %v2384
        %v2546 = vadd.f32 %v2117, %v2386
        %v2547 = vadd.f32 %v2118, %v2388
        %v2548 = vadd.f32 %v2119, %v2390
        %v2549 = vadd.f32 %v2120, %v2392
        %v2550 = vadd.f32 %v2121, %v2394
        %v2551 = vadd.f32 %v2122, %v2396
        %v2552 = vadd.f32 %v2123, %v2398
        %v2553 = vadd.f32 %v2124, %v2400
        %v2554 = vadd.f32 %v2125, %v2402
        %v2555 = vadd.f32 %v2126, %v2404
        %v2556 = vadd.f32 %v2127, %v2406
        %v2557 = vadd.f32 %v2128, %v2408
        %v2558 = vadd.f32 %v2129, %v2410
        %v2559 = vadd.f32 %v2130, %v2412
        %v2560 = vadd.f32 %v2131, %v2414
        %v2561 = vadd.f32 %v2132, %v2416
        %v2562 = vadd.f32 %v2133, %v2418
        %v2563 = vadd.f32 %v2134, %v2420
        %v2564 = vadd.f32 %v2135, %v2422
        %v2565 = vadd.f32 %v2136, %v2424
        %v2566 = vadd.f32 %v2137, %v2426
        %v2567 = vadd.f32 %v2138, %v2428
        %v2568 = vadd.f32 %v2139, %v2430
        %v2569 = vadd.f32 %v2140, %v2432
        %v2570 = vadd.f32 %v2141, %v2434
        %v2571 = vadd.f32 %v2142, %v2436
        %v2572 = vadd.f32 %v2143, %v2438
        %v2573 = vadd.f32 %v2144, %v2440
        %v2574 = vadd.f32 %v2145, %v2442
        %v2575 = vadd.f32 %v2146, %v2435
        %v2576 = vadd.f32 %v2147, %v2437
        %v2577 = vadd.f32 %v2148, %v2439
        %v2578 = vadd.f32 %v2149, %v2441
        %v2579 = vld [vmem:[#allocation2 + $0x20] sm:$0xfe]
        %v2580 = vld [vmem:[#allocation2 + $0x28] sm:$0xfe]
        %v2581 = vld [vmem:[#allocation2 + $0x30] sm:$0xfe]
        %v2582 = vld [vmem:[#allocation2 + $0x38] sm:$0xfe]
        %v2583 = vld [vmem:[#allocation2 + $0x220] sm:$0x1]
        %v2584 = vld [vmem:[#allocation2 + $0x228] sm:$0x1]
        %v2585 = vld [vmem:[#allocation2 + $0x230] sm:$0x1]
        %v2586 = vld [vmem:[#allocation2 + $0x238] sm:$0x1]
        %v2587 = vlaneseq
        %v2588 = vshrl.u32 %v2587, 7
        %v2589 = vsub.s32 2, %v2588
        %v2590 = vrot.slane %v1974, %v2589
        %v2591 = vlaneseq
        %v2592 = vshrl.u32 %v2591, 7
        %v2593 = vsub.s32 6, %v2592
        %v2594 = vrot.slane %v1974, %v2593
        %v2595 = vlaneseq
        %v2596 = vshrl.u32 %v2595, 7
        %v2597 = vsub.s32 2, %v2596
        %v2598 = vrot.slane %v1975, %v2597
        %v2599 = vlaneseq
        %v2600 = vshrl.u32 %v2599, 7
        %v2601 = vsub.s32 6, %v2600
        %v2602 = vrot.slane %v1975, %v2601
        %v2607 = vlaneseq
        %v2608 = vshrl.u32 %v2607, 7
        %v2609 = vsub.s32 2, %v2608
        %v2610 = vrot.slane %v2590, %v2609
        %v2611 = vlaneseq
        %v2612 = vshrl.u32 %v2611, 7
        %v2613 = vsub.s32 2, %v2612
        %v2614 = vrot.slane %v2594, %v2613
        %v2615 = vlaneseq
        %v2616 = vshrl.u32 %v2615, 7
        %v2617 = vsub.s32 2, %v2616
        %v2618 = vrot.slane %v2598, %v2617
        %v2619 = vlaneseq
        %v2620 = vshrl.u32 %v2619, 7
        %v2621 = vsub.s32 2, %v2620
        %v2622 = vrot.slane %v2602, %v2621
        %v2623 = vmul.f32 %v2579, %v2610
        %v2624 = vmul.f32 %v2580, %v2614
        %v2625 = vmul.f32 %v2581, %v2618
        %v2626 = vmul.f32 %v2582, %v2622
        %v2627 = vmul.f32 %v1984, %v2610
        %v2628 = vmul.f32 %v1985, %v2614
        %v2629 = vmul.f32 %v1986, %v2618
        %v2630 = vmul.f32 %v1987, %v2622
        %v2631 = vmul.f32 %v1988, %v2610
        %v2632 = vmul.f32 %v1989, %v2614
        %v2633 = vmul.f32 %v1990, %v2618
        %v2634 = vmul.f32 %v1991, %v2622
        %v2635 = vmul.f32 %v1992, %v2610
        %v2636 = vmul.f32 %v1993, %v2614
        %v2637 = vmul.f32 %v1994, %v2618
        %v2638 = vmul.f32 %v1995, %v2622
        %v2639 = vmul.f32 %v1996, %v2610
        %v2640 = vmul.f32 %v1997, %v2614
        %v2641 = vmul.f32 %v1998, %v2618
        %v2642 = vmul.f32 %v1999, %v2622
        %v2643 = vmul.f32 %v2000, %v2610
        %v2644 = vmul.f32 %v2001, %v2614
        %v2645 = vmul.f32 %v2002, %v2618
        %v2646 = vmul.f32 %v2003, %v2622
        %v2647 = vmul.f32 %v2004, %v2610
        %v2648 = vmul.f32 %v2005, %v2614
        %v2649 = vmul.f32 %v2006, %v2618
        %v2650 = vmul.f32 %v2007, %v2622
        %v2651 = vmul.f32 %v2008, %v2610
        %v2652 = vmul.f32 %v2009, %v2614
        %v2653 = vmul.f32 %v2010, %v2618
        %v2654 = vmul.f32 %v2011, %v2622
        %v2655 = vmul.f32 %v2012, %v2610
        %v2656 = vmul.f32 %v2013, %v2614
        %v2657 = vmul.f32 %v2014, %v2618
        %v2658 = vmul.f32 %v2015, %v2622
        %v2659 = vmul.f32 %v2016, %v2610
        %v2660 = vmul.f32 %v2017, %v2614
        %v2661 = vmul.f32 %v2018, %v2618
        %v2662 = vmul.f32 %v2019, %v2622
        %v2663 = vmul.f32 %v2020, %v2610
        %v2664 = vmul.f32 %v2021, %v2614
        %v2665 = vmul.f32 %v2022, %v2618
        %v2666 = vmul.f32 %v2023, %v2622
        %v2667 = vmul.f32 %v2024, %v2610
        %v2668 = vmul.f32 %v2025, %v2614
        %v2669 = vmul.f32 %v2026, %v2618
        %v2670 = vmul.f32 %v2027, %v2622
        %v2671 = vmul.f32 %v2028, %v2610
        %v2672 = vmul.f32 %v2029, %v2614
        %v2673 = vmul.f32 %v2030, %v2618
        %v2674 = vmul.f32 %v2031, %v2622
        %v2675 = vmul.f32 %v2032, %v2610
        %v2676 = vmul.f32 %v2033, %v2614
        %v2677 = vmul.f32 %v2034, %v2618
        %v2678 = vmul.f32 %v2035, %v2622
        %v2679 = vmul.f32 %v2036, %v2610
        %v2680 = vmul.f32 %v2037, %v2614
        %v2681 = vmul.f32 %v2038, %v2618
        %v2682 = vmul.f32 %v2039, %v2622
        %v2683 = vmul.f32 %v2150, %v2610
        %v2684 = vmul.f32 %v2151, %v2614
        %v2685 = vmul.f32 %v2152, %v2618
        %v2686 = vmul.f32 %v2153, %v2622
        %v2687 = vmul.f32 %v2583, %v2610
        %v2688 = vmul.f32 %v2584, %v2614
        %v2689 = vmul.f32 %v2585, %v2618
        %v2690 = vmul.f32 %v2586, %v2622
        %vm2759 = vcmask 1045504
        %v2760 = vrot.slane %v2623, 2
        %v2761 = vrot.slane %v2624, 2
        %v2762 = vrot.slane %v2625, 2
        %v2763 = vrot.slane %v2626, 2
        %v2764 = vrot.slane %v2627, 2
        %v2765 = vsel %vm2759, %v2760, %v2764
        %v2766 = vrot.slane %v2628, 2
        %v2767 = vsel %vm2759, %v2761, %v2766
        %v2768 = vrot.slane %v2629, 2
        %v2769 = vsel %vm2759, %v2762, %v2768
        %v2770 = vrot.slane %v2630, 2
        %v2771 = vsel %vm2759, %v2763, %v2770
        %v2772 = vrot.slane %v2631, 2
        %v2773 = vsel %vm2759, %v2764, %v2772
        %v2774 = vrot.slane %v2632, 2
        %v2775 = vsel %vm2759, %v2766, %v2774
        %v2776 = vrot.slane %v2633, 2
        %v2777 = vsel %vm2759, %v2768, %v2776
        %v2778 = vrot.slane %v2634, 2
        %v2779 = vsel %vm2759, %v2770, %v2778
        %v2780 = vrot.slane %v2635, 2
        %v2781 = vsel %vm2759, %v2772, %v2780
        %v2782 = vrot.slane %v2636, 2
        %v2783 = vsel %vm2759, %v2774, %v2782
        %v2784 = vrot.slane %v2637, 2
        %v2785 = vsel %vm2759, %v2776, %v2784
        %v2786 = vrot.slane %v2638, 2
        %v2787 = vsel %vm2759, %v2778, %v2786
        %v2788 = vrot.slane %v2639, 2
        %v2789 = vsel %vm2759, %v2780, %v2788
        %v2790 = vrot.slane %v2640, 2
        %v2791 = vsel %vm2759, %v2782, %v2790
        %v2792 = vrot.slane %v2641, 2
        %v2793 = vsel %vm2759, %v2784, %v2792
        %v2794 = vrot.slane %v2642, 2
        %v2795 = vsel %vm2759, %v2786, %v2794
        %v2796 = vrot.slane %v2643, 2
        %v2797 = vsel %vm2759, %v2788, %v2796
        %v2798 = vrot.slane %v2644, 2
        %v2799 = vsel %vm2759, %v2790, %v2798
        %v2800 = vrot.slane %v2645, 2
        %v2801 = vsel %vm2759, %v2792, %v2800
        %v2802 = vrot.slane %v2646, 2
        %v2803 = vsel %vm2759, %v2794, %v2802
        %v2804 = vrot.slane %v2647, 2
        %v2805 = vsel %vm2759, %v2796, %v2804
        %v2806 = vrot.slane %v2648, 2
        %v2807 = vsel %vm2759, %v2798, %v2806
        %v2808 = vrot.slane %v2649, 2
        %v2809 = vsel %vm2759, %v2800, %v2808
        %v2810 = vrot.slane %v2650, 2
        %v2811 = vsel %vm2759, %v2802, %v2810
        %v2812 = vrot.slane %v2651, 2
        %v2813 = vsel %vm2759, %v2804, %v2812
        %v2814 = vrot.slane %v2652, 2
        %v2815 = vsel %vm2759, %v2806, %v2814
        %v2816 = vrot.slane %v2653, 2
        %v2817 = vsel %vm2759, %v2808, %v2816
        %v2818 = vrot.slane %v2654, 2
        %v2819 = vsel %vm2759, %v2810, %v2818
        %v2820 = vrot.slane %v2655, 2
        %v2821 = vsel %vm2759, %v2812, %v2820
        %v2822 = vrot.slane %v2656, 2
        %v2823 = vsel %vm2759, %v2814, %v2822
        %v2824 = vrot.slane %v2657, 2
        %v2825 = vsel %vm2759, %v2816, %v2824
        %v2826 = vrot.slane %v2658, 2
        %v2827 = vsel %vm2759, %v2818, %v2826
        %v2828 = vrot.slane %v2659, 2
        %v2829 = vsel %vm2759, %v2820, %v2828
        %v2830 = vrot.slane %v2660, 2
        %v2831 = vsel %vm2759, %v2822, %v2830
        %v2832 = vrot.slane %v2661, 2
        %v2833 = vsel %vm2759, %v2824, %v2832
        %v2834 = vrot.slane %v2662, 2
        %v2835 = vsel %vm2759, %v2826, %v2834
        %v2836 = vrot.slane %v2663, 2
        %v2837 = vsel %vm2759, %v2828, %v2836
        %v2838 = vrot.slane %v2664, 2
        %v2839 = vsel %vm2759, %v2830, %v2838
        %v2840 = vrot.slane %v2665, 2
        %v2841 = vsel %vm2759, %v2832, %v2840
        %v2842 = vrot.slane %v2666, 2
        %v2843 = vsel %vm2759, %v2834, %v2842
        %v2844 = vrot.slane %v2667, 2
        %v2845 = vsel %vm2759, %v2836, %v2844
        %v2846 = vrot.slane %v2668, 2
        %v2847 = vsel %vm2759, %v2838, %v2846
        %v2848 = vrot.slane %v2669, 2
        %v2849 = vsel %vm2759, %v2840, %v2848
        %v2850 = vrot.slane %v2670, 2
        %v2851 = vsel %vm2759, %v2842, %v2850
        %v2852 = vrot.slane %v2671, 2
        %v2853 = vsel %vm2759, %v2844, %v2852
        %v2854 = vrot.slane %v2672, 2
        %v2855 = vsel %vm2759, %v2846, %v2854
        %v2856 = vrot.slane %v2673, 2
        %v2857 = vsel %vm2759, %v2848, %v2856
        %v2858 = vrot.slane %v2674, 2
        %v2859 = vsel %vm2759, %v2850, %v2858
        %v2860 = vrot.slane %v2675, 2
        %v2861 = vsel %vm2759, %v2852, %v2860
        %v2862 = vrot.slane %v2676, 2
        %v2863 = vsel %vm2759, %v2854, %v2862
        %v2864 = vrot.slane %v2677, 2
        %v2865 = vsel %vm2759, %v2856, %v2864
        %v2866 = vrot.slane %v2678, 2
        %v2867 = vsel %vm2759, %v2858, %v2866
        %v2868 = vrot.slane %v2679, 2
        %v2869 = vsel %vm2759, %v2860, %v2868
        %v2870 = vrot.slane %v2680, 2
        %v2871 = vsel %vm2759, %v2862, %v2870
        %v2872 = vrot.slane %v2681, 2
        %v2873 = vsel %vm2759, %v2864, %v2872
        %v2874 = vrot.slane %v2682, 2
        %v2875 = vsel %vm2759, %v2866, %v2874
        %v2876 = vrot.slane %v2683, 2
        %v2877 = vsel %vm2759, %v2868, %v2876
        %v2878 = vrot.slane %v2684, 2
        %v2879 = vsel %vm2759, %v2870, %v2878
        %v2880 = vrot.slane %v2685, 2
        %v2881 = vsel %vm2759, %v2872, %v2880
        %v2882 = vrot.slane %v2686, 2
        %v2883 = vsel %vm2759, %v2874, %v2882
        %v2884 = vrot.slane %v2687, 2
        %v2885 = vsel %vm2759, %v2876, %v2884
        %v2886 = vrot.slane %v2688, 2
        %v2887 = vsel %vm2759, %v2878, %v2886
        %v2888 = vrot.slane %v2689, 2
        %v2889 = vsel %vm2759, %v2880, %v2888
        %v2890 = vrot.slane %v2690, 2
        %v2891 = vsel %vm2759, %v2882, %v2890
        %v2960 = vadd.f32 %v2511, %v2760
        %v2961 = vadd.f32 %v2512, %v2761
        %v2962 = vadd.f32 %v2513, %v2762
        %v2963 = vadd.f32 %v2514, %v2763
        %v2964 = vadd.f32 %v2515, %v2765
        %v2965 = vadd.f32 %v2516, %v2767
        %v2966 = vadd.f32 %v2517, %v2769
        %v2967 = vadd.f32 %v2518, %v2771
        %v2968 = vadd.f32 %v2519, %v2773
        %v2969 = vadd.f32 %v2520, %v2775
        %v2970 = vadd.f32 %v2521, %v2777
        %v2971 = vadd.f32 %v2522, %v2779
        %v2972 = vadd.f32 %v2523, %v2781
        %v2973 = vadd.f32 %v2524, %v2783
        %v2974 = vadd.f32 %v2525, %v2785
        %v2975 = vadd.f32 %v2526, %v2787
        %v2976 = vadd.f32 %v2527, %v2789
        %v2977 = vadd.f32 %v2528, %v2791
        %v2978 = vadd.f32 %v2529, %v2793
        %v2979 = vadd.f32 %v2530, %v2795
        %v2980 = vadd.f32 %v2531, %v2797
        %v2981 = vadd.f32 %v2532, %v2799
        %v2982 = vadd.f32 %v2533, %v2801
        %v2983 = vadd.f32 %v2534, %v2803
        %v2984 = vadd.f32 %v2535, %v2805
        %v2985 = vadd.f32 %v2536, %v2807
        %v2986 = vadd.f32 %v2537, %v2809
        %v2987 = vadd.f32 %v2538, %v2811
        %v2988 = vadd.f32 %v2539, %v2813
        %v2989 = vadd.f32 %v2540, %v2815
        %v2990 = vadd.f32 %v2541, %v2817
        %v2991 = vadd.f32 %v2542, %v2819
        %v2992 = vadd.f32 %v2543, %v2821
        %v2993 = vadd.f32 %v2544, %v2823
        %v2994 = vadd.f32 %v2545, %v2825
        %v2995 = vadd.f32 %v2546, %v2827
        %v2996 = vadd.f32 %v2547, %v2829
        %v2997 = vadd.f32 %v2548, %v2831
        %v2998 = vadd.f32 %v2549, %v2833
        %v2999 = vadd.f32 %v2550, %v2835
        %v3000 = vadd.f32 %v2551, %v2837
        %v3001 = vadd.f32 %v2552, %v2839
        %v3002 = vadd.f32 %v2553, %v2841
        %v3003 = vadd.f32 %v2554, %v2843
        %v3004 = vadd.f32 %v2555, %v2845
        %v3005 = vadd.f32 %v2556, %v2847
        %v3006 = vadd.f32 %v2557, %v2849
        %v3007 = vadd.f32 %v2558, %v2851
        %v3008 = vadd.f32 %v2559, %v2853
        %v3009 = vadd.f32 %v2560, %v2855
        %v3010 = vadd.f32 %v2561, %v2857
        %v3011 = vadd.f32 %v2562, %v2859
        %v3012 = vadd.f32 %v2563, %v2861
        %v3013 = vadd.f32 %v2564, %v2863
        %v3014 = vadd.f32 %v2565, %v2865
        %v3015 = vadd.f32 %v2566, %v2867
        %v3016 = vadd.f32 %v2567, %v2869
        %v3017 = vadd.f32 %v2568, %v2871
        %v3018 = vadd.f32 %v2569, %v2873
        %v3019 = vadd.f32 %v2570, %v2875
        %v3020 = vadd.f32 %v2571, %v2877
        %v3021 = vadd.f32 %v2572, %v2879
        %v3022 = vadd.f32 %v2573, %v2881
        %v3023 = vadd.f32 %v2574, %v2883
        %v3024 = vadd.f32 %v2575, %v2885
        %v3025 = vadd.f32 %v2576, %v2887
        %v3026 = vadd.f32 %v2577, %v2889
        %v3027 = vadd.f32 %v2578, %v2891
        %v3028 = vld [vmem:[%s7] sm:$0xf]
        %v3030 = vlaneseq
        %v3031 = vshrl.u32 %v3030, 7
        %v3032 = vsub.s32 0, %v3031
        %v3033 = vrot.slane %v3028, %v3032
        %v3034 = vlaneseq
        %v3035 = vshrl.u32 %v3034, 7
        %v3036 = vsub.s32 1, %v3035
        %v3037 = vrot.slane %v3028, %v3036
        %v3038 = vlaneseq
        %v3039 = vshrl.u32 %v3038, 7
        %v3040 = vsub.s32 2, %v3039
        %v3041 = vrot.slane %v3028, %v3040
        %v3042 = vlaneseq
        %v3043 = vshrl.u32 %v3042, 7
        %v3044 = vsub.s32 3, %v3043
        %v3045 = vrot.slane %v3028, %v3044
        %v3050 = vadd.f32 %v2960, %v3033
        %v3051 = vadd.f32 %v2961, %v3037
        %v3052 = vadd.f32 %v2962, %v3041
        %v3053 = vadd.f32 %v2963, %v3045
        %v3054 = vadd.f32 %v2964, %v3033
        %v3055 = vadd.f32 %v2965, %v3037
        %v3056 = vadd.f32 %v2966, %v3041
        %v3057 = vadd.f32 %v2967, %v3045
        %v3058 = vadd.f32 %v2968, %v3033
        %v3059 = vadd.f32 %v2969, %v3037
        %v3060 = vadd.f32 %v2970, %v3041
        %v3061 = vadd.f32 %v2971, %v3045
        %v3062 = vadd.f32 %v2972, %v3033
        %v3063 = vadd.f32 %v2973, %v3037
        %v3064 = vadd.f32 %v2974, %v3041
        %v3065 = vadd.f32 %v2975, %v3045
        %v3066 = vadd.f32 %v2976, %v3033
        %v3067 = vadd.f32 %v2977, %v3037
        %v3068 = vadd.f32 %v2978, %v3041
        %v3069 = vadd.f32 %v2979, %v3045
        %v3070 = vadd.f32 %v2980, %v3033
        %v3071 = vadd.f32 %v2981, %v3037
        %v3072 = vadd.f32 %v2982, %v3041
        %v3073 = vadd.f32 %v2983, %v3045
        %v3074 = vadd.f32 %v2984, %v3033
        %v3075 = vadd.f32 %v2985, %v3037
        %v3076 = vadd.f32 %v2986, %v3041
        %v3077 = vadd.f32 %v2987, %v3045
        %v3078 = vadd.f32 %v2988, %v3033
        %v3079 = vadd.f32 %v2989, %v3037
        %v3080 = vadd.f32 %v2990, %v3041
        %v3081 = vadd.f32 %v2991, %v3045
        %v3082 = vadd.f32 %v2992, %v3033
        %v3083 = vadd.f32 %v2993, %v3037
        %v3084 = vadd.f32 %v2994, %v3041
        %v3085 = vadd.f32 %v2995, %v3045
        %v3086 = vadd.f32 %v2996, %v3033
        %v3087 = vadd.f32 %v2997, %v3037
        %v3088 = vadd.f32 %v2998, %v3041
        %v3089 = vadd.f32 %v2999, %v3045
        %v3090 = vadd.f32 %v3000, %v3033
        %v3091 = vadd.f32 %v3001, %v3037
        %v3092 = vadd.f32 %v3002, %v3041
        %v3093 = vadd.f32 %v3003, %v3045
        %v3094 = vadd.f32 %v3004, %v3033
        %v3095 = vadd.f32 %v3005, %v3037
        %v3096 = vadd.f32 %v3006, %v3041
        %v3097 = vadd.f32 %v3007, %v3045
        %v3098 = vadd.f32 %v3008, %v3033
        %v3099 = vadd.f32 %v3009, %v3037
        %v3100 = vadd.f32 %v3010, %v3041
        %v3101 = vadd.f32 %v3011, %v3045
        %v3102 = vadd.f32 %v3012, %v3033
        %v3103 = vadd.f32 %v3013, %v3037
        %v3104 = vadd.f32 %v3014, %v3041
        %v3105 = vadd.f32 %v3015, %v3045
        %v3106 = vadd.f32 %v3016, %v3033
        %v3107 = vadd.f32 %v3017, %v3037
        %v3108 = vadd.f32 %v3018, %v3041
        %v3109 = vadd.f32 %v3019, %v3045
        %v3110 = vadd.f32 %v3020, %v3033
        %v3111 = vadd.f32 %v3021, %v3037
        %v3112 = vadd.f32 %v3022, %v3041
        %v3113 = vadd.f32 %v3023, %v3045
        %v3114 = vadd.f32 %v3024, %v3033
        %v3115 = vadd.f32 %v3025, %v3037
        %v3116 = vadd.f32 %v3026, %v3041
        %v3117 = vadd.f32 %v3027, %v3045
        %s3118 = sld [smem:[#allocation4]]
        %vm3119 = vcmp.ge.f32.partialorder %v3050, 0.0
        %vm3120 = vcmp.ge.f32.partialorder %v3051, 0.0
        %vm3121 = vcmp.ge.f32.partialorder %v3052, 0.0
        %vm3122 = vcmp.ge.f32.partialorder %v3053, 0.0
        %vm3123 = vcmp.ge.f32.partialorder %v3054, 0.0
        %vm3124 = vcmp.ge.f32.partialorder %v3055, 0.0
        %vm3125 = vcmp.ge.f32.partialorder %v3056, 0.0
        %vm3126 = vcmp.ge.f32.partialorder %v3057, 0.0
        %vm3127 = vcmp.ge.f32.partialorder %v3058, 0.0
        %vm3128 = vcmp.ge.f32.partialorder %v3059, 0.0
        %vm3129 = vcmp.ge.f32.partialorder %v3060, 0.0
        %vm3130 = vcmp.ge.f32.partialorder %v3061, 0.0
        %vm3131 = vcmp.ge.f32.partialorder %v3062, 0.0
        %vm3132 = vcmp.ge.f32.partialorder %v3063, 0.0
        %vm3133 = vcmp.ge.f32.partialorder %v3064, 0.0
        %vm3134 = vcmp.ge.f32.partialorder %v3065, 0.0
        %vm3135 = vcmp.ge.f32.partialorder %v3066, 0.0
        %vm3136 = vcmp.ge.f32.partialorder %v3067, 0.0
        %vm3137 = vcmp.ge.f32.partialorder %v3068, 0.0
        %vm3138 = vcmp.ge.f32.partialorder %v3069, 0.0
        %vm3139 = vcmp.ge.f32.partialorder %v3070, 0.0
        %vm3140 = vcmp.ge.f32.partialorder %v3071, 0.0
        %vm3141 = vcmp.ge.f32.partialorder %v3072, 0.0
        %vm3142 = vcmp.ge.f32.partialorder %v3073, 0.0
        %vm3143 = vcmp.ge.f32.partialorder %v3074, 0.0
        %vm3144 = vcmp.ge.f32.partialorder %v3075, 0.0
        %vm3145 = vcmp.ge.f32.partialorder %v3076, 0.0
        %vm3146 = vcmp.ge.f32.partialorder %v3077, 0.0
        %vm3147 = vcmp.ge.f32.partialorder %v3078, 0.0
        %vm3148 = vcmp.ge.f32.partialorder %v3079, 0.0
        %vm3149 = vcmp.ge.f32.partialorder %v3080, 0.0
        %vm3150 = vcmp.ge.f32.partialorder %v3081, 0.0
        %vm3151 = vcmp.ge.f32.partialorder %v3082, 0.0
        %vm3152 = vcmp.ge.f32.partialorder %v3083, 0.0
        %vm3153 = vcmp.ge.f32.partialorder %v3084, 0.0
        %vm3154 = vcmp.ge.f32.partialorder %v3085, 0.0
        %vm3155 = vcmp.ge.f32.partialorder %v3086, 0.0
        %vm3156 = vcmp.ge.f32.partialorder %v3087, 0.0
        %vm3157 = vcmp.ge.f32.partialorder %v3088, 0.0
        %vm3158 = vcmp.ge.f32.partialorder %v3089, 0.0
        %vm3159 = vcmp.ge.f32.partialorder %v3090, 0.0
        %vm3160 = vcmp.ge.f32.partialorder %v3091, 0.0
        %vm3161 = vcmp.ge.f32.partialorder %v3092, 0.0
        %vm3162 = vcmp.ge.f32.partialorder %v3093, 0.0
        %vm3163 = vcmp.ge.f32.partialorder %v3094, 0.0
        %vm3164 = vcmp.ge.f32.partialorder %v3095, 0.0
        %vm3165 = vcmp.ge.f32.partialorder %v3096, 0.0
        %vm3166 = vcmp.ge.f32.partialorder %v3097, 0.0
        %vm3167 = vcmp.ge.f32.partialorder %v3098, 0.0
        %vm3168 = vcmp.ge.f32.partialorder %v3099, 0.0
        %vm3169 = vcmp.ge.f32.partialorder %v3100, 0.0
        %vm3170 = vcmp.ge.f32.partialorder %v3101, 0.0
        %vm3171 = vcmp.ge.f32.partialorder %v3102, 0.0
        %vm3172 = vcmp.ge.f32.partialorder %v3103, 0.0
        %vm3173 = vcmp.ge.f32.partialorder %v3104, 0.0
        %vm3174 = vcmp.ge.f32.partialorder %v3105, 0.0
        %vm3175 = vcmp.ge.f32.partialorder %v3106, 0.0
        %vm3176 = vcmp.ge.f32.partialorder %v3107, 0.0
        %vm3177 = vcmp.ge.f32.partialorder %v3108, 0.0
        %vm3178 = vcmp.ge.f32.partialorder %v3109, 0.0
        %vm3179 = vcmp.ge.f32.partialorder %v3110, 0.0
        %vm3180 = vcmp.ge.f32.partialorder %v3111, 0.0
        %vm3181 = vcmp.ge.f32.partialorder %v3112, 0.0
        %vm3182 = vcmp.ge.f32.partialorder %v3113, 0.0
        %vm3183 = vcmp.ge.f32.partialorder %v3114, 0.0
        %vm3184 = vcmp.ge.f32.partialorder %v3115, 0.0
        %vm3185 = vcmp.ge.f32.partialorder %v3116, 0.0
        %vm3186 = vcmp.ge.f32.partialorder %v3117, 0.0
        %v3187 = vstv %s3118
        %v3188 = vmul.f32 %v3187, %v3050
        %v3189 = vmul.f32 %v3187, %v3051
        %v3190 = vmul.f32 %v3187, %v3052
        %v3191 = vmul.f32 %v3187, %v3053
        %v3192 = vmul.f32 %v3187, %v3054
        %v3193 = vmul.f32 %v3187, %v3055
        %v3194 = vmul.f32 %v3187, %v3056
        %v3195 = vmul.f32 %v3187, %v3057
        %v3196 = vmul.f32 %v3187, %v3058
        %v3197 = vmul.f32 %v3187, %v3059
        %v3198 = vmul.f32 %v3187, %v3060
        %v3199 = vmul.f32 %v3187, %v3061
        %v3200 = vmul.f32 %v3187, %v3062
        %v3201 = vmul.f32 %v3187, %v3063
        %v3202 = vmul.f32 %v3187, %v3064
        %v3203 = vmul.f32 %v3187, %v3065
        %v3204 = vmul.f32 %v3187, %v3066
        %v3205 = vmul.f32 %v3187, %v3067
        %v3206 = vmul.f32 %v3187, %v3068
        %v3207 = vmul.f32 %v3187, %v3069
        %v3208 = vmul.f32 %v3187, %v3070
        %v3209 = vmul.f32 %v3187, %v3071
        %v3210 = vmul.f32 %v3187, %v3072
        %v3211 = vmul.f32 %v3187, %v3073
        %v3212 = vmul.f32 %v3187, %v3074
        %v3213 = vmul.f32 %v3187, %v3075
        %v3214 = vmul.f32 %v3187, %v3076
        %v3215 = vmul.f32 %v3187, %v3077
        %v3216 = vmul.f32 %v3187, %v3078
        %v3217 = vmul.f32 %v3187, %v3079
        %v3218 = vmul.f32 %v3187, %v3080
        %v3219 = vmul.f32 %v3187, %v3081
        %v3220 = vmul.f32 %v3187, %v3082
        %v3221 = vmul.f32 %v3187, %v3083
        %v3222 = vmul.f32 %v3187, %v3084
        %v3223 = vmul.f32 %v3187, %v3085
        %v3224 = vmul.f32 %v3187, %v3086
        %v3225 = vmul.f32 %v3187, %v3087
        %v3226 = vmul.f32 %v3187, %v3088
        %v3227 = vmul.f32 %v3187, %v3089
        %v3228 = vmul.f32 %v3187, %v3090
        %v3229 = vmul.f32 %v3187, %v3091
        %v3230 = vmul.f32 %v3187, %v3092
        %v3231 = vmul.f32 %v3187, %v3093
        %v3232 = vmul.f32 %v3187, %v3094
        %v3233 = vmul.f32 %v3187, %v3095
        %v3234 = vmul.f32 %v3187, %v3096
        %v3235 = vmul.f32 %v3187, %v3097
        %v3236 = vmul.f32 %v3187, %v3098
        %v3237 = vmul.f32 %v3187, %v3099
        %v3238 = vmul.f32 %v3187, %v3100
        %v3239 = vmul.f32 %v3187, %v3101
        %v3240 = vmul.f32 %v3187, %v3102
        %v3241 = vmul.f32 %v3187, %v3103
        %v3242 = vmul.f32 %v3187, %v3104
        %v3243 = vmul.f32 %v3187, %v3105
        %v3244 = vmul.f32 %v3187, %v3106
        %v3245 = vmul.f32 %v3187, %v3107
        %v3246 = vmul.f32 %v3187, %v3108
        %v3247 = vmul.f32 %v3187, %v3109
        %v3248 = vmul.f32 %v3187, %v3110
        %v3249 = vmul.f32 %v3187, %v3111
        %v3250 = vmul.f32 %v3187, %v3112
        %v3251 = vmul.f32 %v3187, %v3113
        %v3252 = vmul.f32 %v3187, %v3114
        %v3253 = vmul.f32 %v3187, %v3115
        %v3254 = vmul.f32 %v3187, %v3116
        %v3255 = vmul.f32 %v3187, %v3117
        %v3256 = vsel %vm3119, %v3050, %v3188
        %v3257 = vsel %vm3120, %v3051, %v3189
        %v3258 = vsel %vm3121, %v3052, %v3190
        %v3259 = vsel %vm3122, %v3053, %v3191
        %v3260 = vsel %vm3123, %v3054, %v3192
        %v3261 = vsel %vm3124, %v3055, %v3193
        %v3262 = vsel %vm3125, %v3056, %v3194
        %v3263 = vsel %vm3126, %v3057, %v3195
        %v3264 = vsel %vm3127, %v3058, %v3196
        %v3265 = vsel %vm3128, %v3059, %v3197
        %v3266 = vsel %vm3129, %v3060, %v3198
        %v3267 = vsel %vm3130, %v3061, %v3199
        %v3268 = vsel %vm3131, %v3062, %v3200
        %v3269 = vsel %vm3132, %v3063, %v3201
        %v3270 = vsel %vm3133, %v3064, %v3202
        %v3271 = vsel %vm3134, %v3065, %v3203
        %v3272 = vsel %vm3135, %v3066, %v3204
        %v3273 = vsel %vm3136, %v3067, %v3205
        %v3274 = vsel %vm3137, %v3068, %v3206
        %v3275 = vsel %vm3138, %v3069, %v3207
        %v3276 = vsel %vm3139, %v3070, %v3208
        %v3277 = vsel %vm3140, %v3071, %v3209
        %v3278 = vsel %vm3141, %v3072, %v3210
        %v3279 = vsel %vm3142, %v3073, %v3211
        %v3280 = vsel %vm3143, %v3074, %v3212
        %v3281 = vsel %vm3144, %v3075, %v3213
        %v3282 = vsel %vm3145, %v3076, %v3214
        %v3283 = vsel %vm3146, %v3077, %v3215
        %v3284 = vsel %vm3147, %v3078, %v3216
        %v3285 = vsel %vm3148, %v3079, %v3217
        %v3286 = vsel %vm3149, %v3080, %v3218
        %v3287 = vsel %vm3150, %v3081, %v3219
        %v3288 = vsel %vm3151, %v3082, %v3220
        %v3289 = vsel %vm3152, %v3083, %v3221
        %v3290 = vsel %vm3153, %v3084, %v3222
        %v3291 = vsel %vm3154, %v3085, %v3223
        %v3292 = vsel %vm3155, %v3086, %v3224
        %v3293 = vsel %vm3156, %v3087, %v3225
        %v3294 = vsel %vm3157, %v3088, %v3226
        %v3295 = vsel %vm3158, %v3089, %v3227
        %v3296 = vsel %vm3159, %v3090, %v3228
        %v3297 = vsel %vm3160, %v3091, %v3229
        %v3298 = vsel %vm3161, %v3092, %v3230
        %v3299 = vsel %vm3162, %v3093, %v3231
        %v3300 = vsel %vm3163, %v3094, %v3232
        %v3301 = vsel %vm3164, %v3095, %v3233
        %v3302 = vsel %vm3165, %v3096, %v3234
        %v3303 = vsel %vm3166, %v3097, %v3235
        %v3304 = vsel %vm3167, %v3098, %v3236
        %v3305 = vsel %vm3168, %v3099, %v3237
        %v3306 = vsel %vm3169, %v3100, %v3238
        %v3307 = vsel %vm3170, %v3101, %v3239
        %v3308 = vsel %vm3171, %v3102, %v3240
        %v3309 = vsel %vm3172, %v3103, %v3241
        %v3310 = vsel %vm3173, %v3104, %v3242
        %v3311 = vsel %vm3174, %v3105, %v3243
        %v3312 = vsel %vm3175, %v3106, %v3244
        %v3313 = vsel %vm3176, %v3107, %v3245
        %v3314 = vsel %vm3177, %v3108, %v3246
        %v3315 = vsel %vm3178, %v3109, %v3247
        %v3316 = vsel %vm3179, %v3110, %v3248
        %v3317 = vsel %vm3180, %v3111, %v3249
        %v3318 = vsel %vm3181, %v3112, %v3250
        %v3319 = vsel %vm3182, %v3113, %v3251
        %v3320 = vsel %vm3183, %v3114, %v3252
        %v3321 = vsel %vm3184, %v3115, %v3253
        %v3322 = vsel %vm3185, %v3116, %v3254
        %v3323 = vsel %vm3186, %v3117, %v3255
        %vm3392 = vcmask 1040384
        %v3393 = vrot.slane %v3256, 7
        %v3394 = vrot.slane %v3260, 7
        %v3395 = vsel %vm3392, %v3393, %v3394
        %v3396 = vrot.slane %v3257, 7
        %v3397 = vrot.slane %v3261, 7
        %v3398 = vsel %vm3392, %v3396, %v3397
        %v3399 = vrot.slane %v3258, 7
        %v3400 = vrot.slane %v3262, 7
        %v3401 = vsel %vm3392, %v3399, %v3400
        %v3402 = vrot.slane %v3259, 7
        %v3403 = vrot.slane %v3263, 7
        %v3404 = vsel %vm3392, %v3402, %v3403
        %v3405 = vrot.slane %v3264, 7
        %v3406 = vsel %vm3392, %v3394, %v3405
        %v3407 = vrot.slane %v3265, 7
        %v3408 = vsel %vm3392, %v3397, %v3407
        %v3409 = vrot.slane %v3266, 7
        %v3410 = vsel %vm3392, %v3400, %v3409
        %v3411 = vrot.slane %v3267, 7
        %v3412 = vsel %vm3392, %v3403, %v3411
        %v3413 = vrot.slane %v3268, 7
        %v3414 = vsel %vm3392, %v3405, %v3413
        %v3415 = vrot.slane %v3269, 7
        %v3416 = vsel %vm3392, %v3407, %v3415
        %v3417 = vrot.slane %v3270, 7
        %v3418 = vsel %vm3392, %v3409, %v3417
        %v3419 = vrot.slane %v3271, 7
        %v3420 = vsel %vm3392, %v3411, %v3419
        %v3421 = vrot.slane %v3272, 7
        %v3422 = vsel %vm3392, %v3413, %v3421
        %v3423 = vrot.slane %v3273, 7
        %v3424 = vsel %vm3392, %v3415, %v3423
        %v3425 = vrot.slane %v3274, 7
        %v3426 = vsel %vm3392, %v3417, %v3425
        %v3427 = vrot.slane %v3275, 7
        %v3428 = vsel %vm3392, %v3419, %v3427
        %v3429 = vrot.slane %v3276, 7
        %v3430 = vsel %vm3392, %v3421, %v3429
        %v3431 = vrot.slane %v3277, 7
        %v3432 = vsel %vm3392, %v3423, %v3431
        %v3433 = vrot.slane %v3278, 7
        %v3434 = vsel %vm3392, %v3425, %v3433
        %v3435 = vrot.slane %v3279, 7
        %v3436 = vsel %vm3392, %v3427, %v3435
        %v3437 = vrot.slane %v3280, 7
        %v3438 = vsel %vm3392, %v3429, %v3437
        %v3439 = vrot.slane %v3281, 7
        %v3440 = vsel %vm3392, %v3431, %v3439
        %v3441 = vrot.slane %v3282, 7
        %v3442 = vsel %vm3392, %v3433, %v3441
        %v3443 = vrot.slane %v3283, 7
        %v3444 = vsel %vm3392, %v3435, %v3443
        %v3445 = vrot.slane %v3284, 7
        %v3446 = vsel %vm3392, %v3437, %v3445
        %v3447 = vrot.slane %v3285, 7
        %v3448 = vsel %vm3392, %v3439, %v3447
        %v3449 = vrot.slane %v3286, 7
        %v3450 = vsel %vm3392, %v3441, %v3449
        %v3451 = vrot.slane %v3287, 7
        %v3452 = vsel %vm3392, %v3443, %v3451
        %v3453 = vrot.slane %v3288, 7
        %v3454 = vsel %vm3392, %v3445, %v3453
        %v3455 = vrot.slane %v3289, 7
        %v3456 = vsel %vm3392, %v3447, %v3455
        %v3457 = vrot.slane %v3290, 7
        %v3458 = vsel %vm3392, %v3449, %v3457
        %v3459 = vrot.slane %v3291, 7
        %v3460 = vsel %vm3392, %v3451, %v3459
        %v3461 = vrot.slane %v3292, 7
        %v3462 = vsel %vm3392, %v3453, %v3461
        %v3463 = vrot.slane %v3293, 7
        %v3464 = vsel %vm3392, %v3455, %v3463
        %v3465 = vrot.slane %v3294, 7
        %v3466 = vsel %vm3392, %v3457, %v3465
        %v3467 = vrot.slane %v3295, 7
        %v3468 = vsel %vm3392, %v3459, %v3467
        %v3469 = vrot.slane %v3296, 7
        %v3470 = vsel %vm3392, %v3461, %v3469
        %v3471 = vrot.slane %v3297, 7
        %v3472 = vsel %vm3392, %v3463, %v3471
        %v3473 = vrot.slane %v3298, 7
        %v3474 = vsel %vm3392, %v3465, %v3473
        %v3475 = vrot.slane %v3299, 7
        %v3476 = vsel %vm3392, %v3467, %v3475
        %v3477 = vrot.slane %v3300, 7
        %v3478 = vsel %vm3392, %v3469, %v3477
        %v3479 = vrot.slane %v3301, 7
        %v3480 = vsel %vm3392, %v3471, %v3479
        %v3481 = vrot.slane %v3302, 7
        %v3482 = vsel %vm3392, %v3473, %v3481
        %v3483 = vrot.slane %v3303, 7
        %v3484 = vsel %vm3392, %v3475, %v3483
        %v3485 = vrot.slane %v3304, 7
        %v3486 = vsel %vm3392, %v3477, %v3485
        %v3487 = vrot.slane %v3305, 7
        %v3488 = vsel %vm3392, %v3479, %v3487
        %v3489 = vrot.slane %v3306, 7
        %v3490 = vsel %vm3392, %v3481, %v3489
        %v3491 = vrot.slane %v3307, 7
        %v3492 = vsel %vm3392, %v3483, %v3491
        %v3493 = vrot.slane %v3308, 7
        %v3494 = vsel %vm3392, %v3485, %v3493
        %v3495 = vrot.slane %v3309, 7
        %v3496 = vsel %vm3392, %v3487, %v3495
        %v3497 = vrot.slane %v3310, 7
        %v3498 = vsel %vm3392, %v3489, %v3497
        %v3499 = vrot.slane %v3311, 7
        %v3500 = vsel %vm3392, %v3491, %v3499
        %v3501 = vrot.slane %v3312, 7
        %v3502 = vsel %vm3392, %v3493, %v3501
        %v3503 = vrot.slane %v3313, 7
        %v3504 = vsel %vm3392, %v3495, %v3503
        %v3505 = vrot.slane %v3314, 7
        %v3506 = vsel %vm3392, %v3497, %v3505
        %v3507 = vrot.slane %v3315, 7
        %v3508 = vsel %vm3392, %v3499, %v3507
        %v3509 = vrot.slane %v3316, 7
        %v3510 = vsel %vm3392, %v3501, %v3509
        %v3511 = vrot.slane %v3317, 7
        %v3512 = vsel %vm3392, %v3503, %v3511
        %v3513 = vrot.slane %v3318, 7
        %v3514 = vsel %vm3392, %v3505, %v3513
        %v3515 = vrot.slane %v3319, 7
        %v3516 = vsel %vm3392, %v3507, %v3515
        %v3517 = vrot.slane %v3320, 7
        %v3518 = vsel %vm3392, %v3509, %v3517
        %v3519 = vrot.slane %v3321, 7
        %v3520 = vsel %vm3392, %v3511, %v3519
        %v3521 = vrot.slane %v3322, 7
        %v3522 = vsel %vm3392, %v3513, %v3521
        %v3523 = vrot.slane %v3323, 7
        %v3524 = vsel %vm3392, %v3515, %v3523
        %v3589 = vadd.f32 %v3395, %v3398
        %v3590 = vadd.f32 %v3589, %v3401
        %v3591 = vadd.f32 %v3590, %v3404
        %v3592 = vadd.f32 %v3591, %v3406
        %v3593 = vadd.f32 %v3592, %v3408
        %v3594 = vadd.f32 %v3593, %v3410
        %v3595 = vadd.f32 %v3594, %v3412
        %v3596 = vadd.f32 %v3595, %v3414
        %v3597 = vadd.f32 %v3596, %v3416
        %v3598 = vadd.f32 %v3597, %v3418
        %v3599 = vadd.f32 %v3598, %v3420
        %v3600 = vadd.f32 %v3599, %v3422
        %v3601 = vadd.f32 %v3600, %v3424
        %v3602 = vadd.f32 %v3601, %v3426
        %v3603 = vadd.f32 %v3602, %v3428
        %v3604 = vadd.f32 %v3603, %v3430
        %v3605 = vadd.f32 %v3604, %v3432
        %v3606 = vadd.f32 %v3605, %v3434
        %v3607 = vadd.f32 %v3606, %v3436
        %v3608 = vadd.f32 %v3607, %v3438
        %v3609 = vadd.f32 %v3608, %v3440
        %v3610 = vadd.f32 %v3609, %v3442
        %v3611 = vadd.f32 %v3610, %v3444
        %v3612 = vadd.f32 %v3611, %v3446
        %v3613 = vadd.f32 %v3612, %v3448
        %v3614 = vadd.f32 %v3613, %v3450
        %v3615 = vadd.f32 %v3614, %v3452
        %v3616 = vadd.f32 %v3615, %v3454
        %v3617 = vadd.f32 %v3616, %v3456
        %v3618 = vadd.f32 %v3617, %v3458
        %v3619 = vadd.f32 %v3618, %v3460
        %v3620 = vadd.f32 %v3619, %v3462
        %v3621 = vadd.f32 %v3620, %v3464
        %v3622 = vadd.f32 %v3621, %v3466
        %v3623 = vadd.f32 %v3622, %v3468
        %v3624 = vadd.f32 %v3623, %v3470
        %v3625 = vadd.f32 %v3624, %v3472
        %v3626 = vadd.f32 %v3625, %v3474
        %v3627 = vadd.f32 %v3626, %v3476
        %v3628 = vadd.f32 %v3627, %v3478
        %v3629 = vadd.f32 %v3628, %v3480
        %v3630 = vadd.f32 %v3629, %v3482
        %v3631 = vadd.f32 %v3630, %v3484
        %v3632 = vadd.f32 %v3631, %v3486
        %v3633 = vadd.f32 %v3632, %v3488
        %v3634 = vadd.f32 %v3633, %v3490
        %v3635 = vadd.f32 %v3634, %v3492
        %v3636 = vadd.f32 %v3635, %v3494
        %v3637 = vadd.f32 %v3636, %v3496
        %v3638 = vadd.f32 %v3637, %v3498
        %v3639 = vadd.f32 %v3638, %v3500
        %v3640 = vadd.f32 %v3639, %v3502
        %v3641 = vadd.f32 %v3640, %v3504
        %v3642 = vadd.f32 %v3641, %v3506
        %v3643 = vadd.f32 %v3642, %v3508
        %v3644 = vadd.f32 %v3643, %v3510
        %v3645 = vadd.f32 %v3644, %v3512
        %v3646 = vadd.f32 %v3645, %v3514
        %v3647 = vadd.f32 %v3646, %v3516
        %v3648 = vadd.f32 %v3647, %v3518
        %v3649 = vadd.f32 %v3648, %v3520
        %v3650 = vadd.f32 %v3649, %v3522
        %v3651 = vadd.f32 %v3650, %v3524
        %3652 = vadd.xlane.f32.xlu0 %v3651
        %v3653 = vpop.xlane.xlu0 %3652
        %v3654 = vrot.slane %v3653, 4
        %v3655 = vadd.f32 %v3653, %v3654
        %v3656 = vrot.slane %v3655, 2
        %v3657 = vadd.f32 %v3655, %v3656
        %v3658 = vrot.slane %v3657, 1
        %v3659 = vadd.f32 %v3657, %v3658
        %s3660 = vtos %v3659
        %v3661 = vmul.f32 %v3256, %v3256
        %v3662 = vmul.f32 %v3257, %v3257
        %v3663 = vmul.f32 %v3258, %v3258
        %v3664 = vmul.f32 %v3259, %v3259
        %v3665 = vmul.f32 %v3260, %v3260
        %v3666 = vmul.f32 %v3261, %v3261
        %v3667 = vmul.f32 %v3262, %v3262
        %v3668 = vmul.f32 %v3263, %v3263
        %v3669 = vmul.f32 %v3264, %v3264
        %v3670 = vmul.f32 %v3265, %v3265
        %v3671 = vmul.f32 %v3266, %v3266
        %v3672 = vmul.f32 %v3267, %v3267
        %v3673 = vmul.f32 %v3268, %v3268
        %v3674 = vmul.f32 %v3269, %v3269
        %v3675 = vmul.f32 %v3270, %v3270
        %v3676 = vmul.f32 %v3271, %v3271
        %v3677 = vmul.f32 %v3272, %v3272
        %v3678 = vmul.f32 %v3273, %v3273
        %v3679 = vmul.f32 %v3274, %v3274
        %v3680 = vmul.f32 %v3275, %v3275
        %v3681 = vmul.f32 %v3276, %v3276
        %v3682 = vmul.f32 %v3277, %v3277
        %v3683 = vmul.f32 %v3278, %v3278
        %v3684 = vmul.f32 %v3279, %v3279
        %v3685 = vmul.f32 %v3280, %v3280
        %v3686 = vmul.f32 %v3281, %v3281
        %v3687 = vmul.f32 %v3282, %v3282
        %v3688 = vmul.f32 %v3283, %v3283
        %v3689 = vmul.f32 %v3284, %v3284
        %v3690 = vmul.f32 %v3285, %v3285
        %v3691 = vmul.f32 %v3286, %v3286
        %v3692 = vmul.f32 %v3287, %v3287
        %v3693 = vmul.f32 %v3288, %v3288
        %v3694 = vmul.f32 %v3289, %v3289
        %v3695 = vmul.f32 %v3290, %v3290
        %v3696 = vmul.f32 %v3291, %v3291
        %v3697 = vmul.f32 %v3292, %v3292
        %v3698 = vmul.f32 %v3293, %v3293
        %v3699 = vmul.f32 %v3294, %v3294
        %v3700 = vmul.f32 %v3295, %v3295
        %v3701 = vmul.f32 %v3296, %v3296
        %v3702 = vmul.f32 %v3297, %v3297
        %v3703 = vmul.f32 %v3298, %v3298
        %v3704 = vmul.f32 %v3299, %v3299
        %v3705 = vmul.f32 %v3300, %v3300
        %v3706 = vmul.f32 %v3301, %v3301
        %v3707 = vmul.f32 %v3302, %v3302
        %v3708 = vmul.f32 %v3303, %v3303
        %v3709 = vmul.f32 %v3304, %v3304
        %v3710 = vmul.f32 %v3305, %v3305
        %v3711 = vmul.f32 %v3306, %v3306
        %v3712 = vmul.f32 %v3307, %v3307
        %v3713 = vmul.f32 %v3308, %v3308
        %v3714 = vmul.f32 %v3309, %v3309
        %v3715 = vmul.f32 %v3310, %v3310
        %v3716 = vmul.f32 %v3311, %v3311
        %v3717 = vmul.f32 %v3312, %v3312
        %v3718 = vmul.f32 %v3313, %v3313
        %v3719 = vmul.f32 %v3314, %v3314
        %v3720 = vmul.f32 %v3315, %v3315
        %v3721 = vmul.f32 %v3316, %v3316
        %v3722 = vmul.f32 %v3317, %v3317
        %v3723 = vmul.f32 %v3318, %v3318
        %v3724 = vmul.f32 %v3319, %v3319
        %v3725 = vmul.f32 %v3320, %v3320
        %v3726 = vmul.f32 %v3321, %v3321
        %v3727 = vmul.f32 %v3322, %v3322
        %v3728 = vmul.f32 %v3323, %v3323
        %v3797 = vrot.slane %v3661, 7
        %v3798 = vrot.slane %v3665, 7
        %v3799 = vsel %vm3392, %v3797, %v3798
        %v3800 = vrot.slane %v3662, 7
        %v3801 = vrot.slane %v3666, 7
        %v3802 = vsel %vm3392, %v3800, %v3801
        %v3803 = vrot.slane %v3663, 7
        %v3804 = vrot.slane %v3667, 7
        %v3805 = vsel %vm3392, %v3803, %v3804
        %v3806 = vrot.slane %v3664, 7
        %v3807 = vrot.slane %v3668, 7
        %v3808 = vsel %vm3392, %v3806, %v3807
        %v3809 = vrot.slane %v3669, 7
        %v3810 = vsel %vm3392, %v3798, %v3809
        %v3811 = vrot.slane %v3670, 7
        %v3812 = vsel %vm3392, %v3801, %v3811
        %v3813 = vrot.slane %v3671, 7
        %v3814 = vsel %vm3392, %v3804, %v3813
        %v3815 = vrot.slane %v3672, 7
        %v3816 = vsel %vm3392, %v3807, %v3815
        %v3817 = vrot.slane %v3673, 7
        %v3818 = vsel %vm3392, %v3809, %v3817
        %v3819 = vrot.slane %v3674, 7
        %v3820 = vsel %vm3392, %v3811, %v3819
        %v3821 = vrot.slane %v3675, 7
        %v3822 = vsel %vm3392, %v3813, %v3821
        %v3823 = vrot.slane %v3676, 7
        %v3824 = vsel %vm3392, %v3815, %v3823
        %v3825 = vrot.slane %v3677, 7
        %v3826 = vsel %vm3392, %v3817, %v3825
        %v3827 = vrot.slane %v3678, 7
        %v3828 = vsel %vm3392, %v3819, %v3827
        %v3829 = vrot.slane %v3679, 7
        %v3830 = vsel %vm3392, %v3821, %v3829
        %v3831 = vrot.slane %v3680, 7
        %v3832 = vsel %vm3392, %v3823, %v3831
        %v3833 = vrot.slane %v3681, 7
        %v3834 = vsel %vm3392, %v3825, %v3833
        %v3835 = vrot.slane %v3682, 7
        %v3836 = vsel %vm3392, %v3827, %v3835
        %v3837 = vrot.slane %v3683, 7
        %v3838 = vsel %vm3392, %v3829, %v3837
        %v3839 = vrot.slane %v3684, 7
        %v3840 = vsel %vm3392, %v3831, %v3839
        %v3841 = vrot.slane %v3685, 7
        %v3842 = vsel %vm3392, %v3833, %v3841
        %v3843 = vrot.slane %v3686, 7
        %v3844 = vsel %vm3392, %v3835, %v3843
        %v3845 = vrot.slane %v3687, 7
        %v3846 = vsel %vm3392, %v3837, %v3845
        %v3847 = vrot.slane %v3688, 7
        %v3848 = vsel %vm3392, %v3839, %v3847
        %v3849 = vrot.slane %v3689, 7
        %v3850 = vsel %vm3392, %v3841, %v3849
        %v3851 = vrot.slane %v3690, 7
        %v3852 = vsel %vm3392, %v3843, %v3851
        %v3853 = vrot.slane %v3691, 7
        %v3854 = vsel %vm3392, %v3845, %v3853
        %v3855 = vrot.slane %v3692, 7
        %v3856 = vsel %vm3392, %v3847, %v3855
        %v3857 = vrot.slane %v3693, 7
        %v3858 = vsel %vm3392, %v3849, %v3857
        %v3859 = vrot.slane %v3694, 7
        %v3860 = vsel %vm3392, %v3851, %v3859
        %v3861 = vrot.slane %v3695, 7
        %v3862 = vsel %vm3392, %v3853, %v3861
        %v3863 = vrot.slane %v3696, 7
        %v3864 = vsel %vm3392, %v3855, %v3863
        %v3865 = vrot.slane %v3697, 7
        %v3866 = vsel %vm3392, %v3857, %v3865
        %v3867 = vrot.slane %v3698, 7
        %v3868 = vsel %vm3392, %v3859, %v3867
        %v3869 = vrot.slane %v3699, 7
        %v3870 = vsel %vm3392, %v3861, %v3869
        %v3871 = vrot.slane %v3700, 7
        %v3872 = vsel %vm3392, %v3863, %v3871
        %v3873 = vrot.slane %v3701, 7
        %v3874 = vsel %vm3392, %v3865, %v3873
        %v3875 = vrot.slane %v3702, 7
        %v3876 = vsel %vm3392, %v3867, %v3875
        %v3877 = vrot.slane %v3703, 7
        %v3878 = vsel %vm3392, %v3869, %v3877
        %v3879 = vrot.slane %v3704, 7
        %v3880 = vsel %vm3392, %v3871, %v3879
        %v3881 = vrot.slane %v3705, 7
        %v3882 = vsel %vm3392, %v3873, %v3881
        %v3883 = vrot.slane %v3706, 7
        %v3884 = vsel %vm3392, %v3875, %v3883
        %v3885 = vrot.slane %v3707, 7
        %v3886 = vsel %vm3392, %v3877, %v3885
        %v3887 = vrot.slane %v3708, 7
        %v3888 = vsel %vm3392, %v3879, %v3887
        %v3889 = vrot.slane %v3709, 7
        %v3890 = vsel %vm3392, %v3881, %v3889
        %v3891 = vrot.slane %v3710, 7
        %v3892 = vsel %vm3392, %v3883, %v3891
        %v3893 = vrot.slane %v3711, 7
        %v3894 = vsel %vm3392, %v3885, %v3893
        %v3895 = vrot.slane %v3712, 7
        %v3896 = vsel %vm3392, %v3887, %v3895
        %v3897 = vrot.slane %v3713, 7
        %v3898 = vsel %vm3392, %v3889, %v3897
        %v3899 = vrot.slane %v3714, 7
        %v3900 = vsel %vm3392, %v3891, %v3899
        %v3901 = vrot.slane %v3715, 7
        %v3902 = vsel %vm3392, %v3893, %v3901
        %v3903 = vrot.slane %v3716, 7
        %v3904 = vsel %vm3392, %v3895, %v3903
        %v3905 = vrot.slane %v3717, 7
        %v3906 = vsel %vm3392, %v3897, %v3905
        %v3907 = vrot.slane %v3718, 7
        %v3908 = vsel %vm3392, %v3899, %v3907
        %v3909 = vrot.slane %v3719, 7
        %v3910 = vsel %vm3392, %v3901, %v3909
        %v3911 = vrot.slane %v3720, 7
        %v3912 = vsel %vm3392, %v3903, %v3911
        %v3913 = vrot.slane %v3721, 7
        %v3914 = vsel %vm3392, %v3905, %v3913
        %v3915 = vrot.slane %v3722, 7
        %v3916 = vsel %vm3392, %v3907, %v3915
        %v3917 = vrot.slane %v3723, 7
        %v3918 = vsel %vm3392, %v3909, %v3917
        %v3919 = vrot.slane %v3724, 7
        %v3920 = vsel %vm3392, %v3911, %v3919
        %v3921 = vrot.slane %v3725, 7
        %v3922 = vsel %vm3392, %v3913, %v3921
        %v3923 = vrot.slane %v3726, 7
        %v3924 = vsel %vm3392, %v3915, %v3923
        %v3925 = vrot.slane %v3727, 7
        %v3926 = vsel %vm3392, %v3917, %v3925
        %v3927 = vrot.slane %v3728, 7
        %v3928 = vsel %vm3392, %v3919, %v3927
        %v3993 = vadd.f32 %v3799, %v3802
        %v3994 = vadd.f32 %v3993, %v3805
        %v3995 = vadd.f32 %v3994, %v3808
        %v3996 = vadd.f32 %v3995, %v3810
        %v3997 = vadd.f32 %v3996, %v3812
        %v3998 = vadd.f32 %v3997, %v3814
        %v3999 = vadd.f32 %v3998, %v3816
        %v4000 = vadd.f32 %v3999, %v3818
        %v4001 = vadd.f32 %v4000, %v3820
        %v4002 = vadd.f32 %v4001, %v3822
        %v4003 = vadd.f32 %v4002, %v3824
        %v4004 = vadd.f32 %v4003, %v3826
        %v4005 = vadd.f32 %v4004, %v3828
        %v4006 = vadd.f32 %v4005, %v3830
        %v4007 = vadd.f32 %v4006, %v3832
        %v4008 = vadd.f32 %v4007, %v3834
        %v4009 = vadd.f32 %v4008, %v3836
        %v4010 = vadd.f32 %v4009, %v3838
        %v4011 = vadd.f32 %v4010, %v3840
        %v4012 = vadd.f32 %v4011, %v3842
        %v4013 = vadd.f32 %v4012, %v3844
        %v4014 = vadd.f32 %v4013, %v3846
        %v4015 = vadd.f32 %v4014, %v3848
        %v4016 = vadd.f32 %v4015, %v3850
        %v4017 = vadd.f32 %v4016, %v3852
        %v4018 = vadd.f32 %v4017, %v3854
        %v4019 = vadd.f32 %v4018, %v3856
        %v4020 = vadd.f32 %v4019, %v3858
        %v4021 = vadd.f32 %v4020, %v3860
        %v4022 = vadd.f32 %v4021, %v3862
        %v4023 = vadd.f32 %v4022, %v3864
        %v4024 = vadd.f32 %v4023, %v3866
        %v4025 = vadd.f32 %v4024, %v3868
        %v4026 = vadd.f32 %v4025, %v3870
        %v4027 = vadd.f32 %v4026, %v3872
        %v4028 = vadd.f32 %v4027, %v3874
        %v4029 = vadd.f32 %v4028, %v3876
        %v4030 = vadd.f32 %v4029, %v3878
        %v4031 = vadd.f32 %v4030, %v3880
        %v4032 = vadd.f32 %v4031, %v3882
        %v4033 = vadd.f32 %v4032, %v3884
        %v4034 = vadd.f32 %v4033, %v3886
        %v4035 = vadd.f32 %v4034, %v3888
        %v4036 = vadd.f32 %v4035, %v3890
        %v4037 = vadd.f32 %v4036, %v3892
        %v4038 = vadd.f32 %v4037, %v3894
        %v4039 = vadd.f32 %v4038, %v3896
        %v4040 = vadd.f32 %v4039, %v3898
        %v4041 = vadd.f32 %v4040, %v3900
        %v4042 = vadd.f32 %v4041, %v3902
        %v4043 = vadd.f32 %v4042, %v3904
        %v4044 = vadd.f32 %v4043, %v3906
        %v4045 = vadd.f32 %v4044, %v3908
        %v4046 = vadd.f32 %v4045, %v3910
        %v4047 = vadd.f32 %v4046, %v3912
        %v4048 = vadd.f32 %v4047, %v3914
        %v4049 = vadd.f32 %v4048, %v3916
        %v4050 = vadd.f32 %v4049, %v3918
        %v4051 = vadd.f32 %v4050, %v3920
        %v4052 = vadd.f32 %v4051, %v3922
        %v4053 = vadd.f32 %v4052, %v3924
        %v4054 = vadd.f32 %v4053, %v3926
        %v4055 = vadd.f32 %v4054, %v3928
        %4056 = vadd.xlane.f32.xlu0 %v4055
        %v4057 = vpop.xlane.xlu0 %4056
        %v4058 = vrot.slane %v4057, 4
        %v4059 = vadd.f32 %v4057, %v4058
        %v4060 = vrot.slane %v4059, 2
        %v4061 = vadd.f32 %v4059, %v4060
        %v4062 = vrot.slane %v4061, 1
        %v4063 = vadd.f32 %v4061, %v4062
        %s4064 = vtos %v4063
        %s4065 = smul.f32 %s3660, 1.5258789e-05
        %s4066 = smul.f32 %s4064, 1.5258789e-05
        %s4067 = smul.f32 %s4065, %s4065
        %s4068 = ssub.f32 %s4066, %s4067
        %s4069 = smax.f32 %s4068, 0.0
        %v4070 = vld [vmem:[%s9] sm:$0xf]
        %v4071 = vstv %s4065
        %v4072 = vsub.f32 %v3256, %v4071
        %v4073 = vsub.f32 %v3257, %v4071
        %v4074 = vsub.f32 %v3258, %v4071
        %v4075 = vsub.f32 %v3259, %v4071
        %v4076 = vsub.f32 %v3260, %v4071
        %v4077 = vsub.f32 %v3261, %v4071
        %v4078 = vsub.f32 %v3262, %v4071
        %v4079 = vsub.f32 %v3263, %v4071
        %v4080 = vsub.f32 %v3264, %v4071
        %v4081 = vsub.f32 %v3265, %v4071
        %v4082 = vsub.f32 %v3266, %v4071
        %v4083 = vsub.f32 %v3267, %v4071
        %v4084 = vsub.f32 %v3268, %v4071
        %v4085 = vsub.f32 %v3269, %v4071
        %v4086 = vsub.f32 %v3270, %v4071
        %v4087 = vsub.f32 %v3271, %v4071
        %v4088 = vsub.f32 %v3272, %v4071
        %v4089 = vsub.f32 %v3273, %v4071
        %v4090 = vsub.f32 %v3274, %v4071
        %v4091 = vsub.f32 %v3275, %v4071
        %v4092 = vsub.f32 %v3276, %v4071
        %v4093 = vsub.f32 %v3277, %v4071
        %v4094 = vsub.f32 %v3278, %v4071
        %v4095 = vsub.f32 %v3279, %v4071
        %v4096 = vsub.f32 %v3280, %v4071
        %v4097 = vsub.f32 %v3281, %v4071
        %v4098 = vsub.f32 %v3282, %v4071
        %v4099 = vsub.f32 %v3283, %v4071
        %v4100 = vsub.f32 %v3284, %v4071
        %v4101 = vsub.f32 %v3285, %v4071
        %v4102 = vsub.f32 %v3286, %v4071
        %v4103 = vsub.f32 %v3287, %v4071
        %v4104 = vsub.f32 %v3288, %v4071
        %v4105 = vsub.f32 %v3289, %v4071
        %v4106 = vsub.f32 %v3290, %v4071
        %v4107 = vsub.f32 %v3291, %v4071
        %v4108 = vsub.f32 %v3292, %v4071
        %v4109 = vsub.f32 %v3293, %v4071
        %v4110 = vsub.f32 %v3294, %v4071
        %v4111 = vsub.f32 %v3295, %v4071
        %v4112 = vsub.f32 %v3296, %v4071
        %v4113 = vsub.f32 %v3297, %v4071
        %v4114 = vsub.f32 %v3298, %v4071
        %v4115 = vsub.f32 %v3299, %v4071
        %v4116 = vsub.f32 %v3300, %v4071
        %v4117 = vsub.f32 %v3301, %v4071
        %v4118 = vsub.f32 %v3302, %v4071
        %v4119 = vsub.f32 %v3303, %v4071
        %v4120 = vsub.f32 %v3304, %v4071
        %v4121 = vsub.f32 %v3305, %v4071
        %v4122 = vsub.f32 %v3306, %v4071
        %v4123 = vsub.f32 %v3307, %v4071
        %v4124 = vsub.f32 %v3308, %v4071
        %v4125 = vsub.f32 %v3309, %v4071
        %v4126 = vsub.f32 %v3310, %v4071
        %v4127 = vsub.f32 %v3311, %v4071
        %v4128 = vsub.f32 %v3312, %v4071
        %v4129 = vsub.f32 %v3313, %v4071
        %v4130 = vsub.f32 %v3314, %v4071
        %v4131 = vsub.f32 %v3315, %v4071
        %v4132 = vsub.f32 %v3316, %v4071
        %v4133 = vsub.f32 %v3317, %v4071
        %v4134 = vsub.f32 %v3318, %v4071
        %v4135 = vsub.f32 %v3319, %v4071
        %v4136 = vsub.f32 %v3320, %v4071
        %v4137 = vsub.f32 %v3321, %v4071
        %v4138 = vsub.f32 %v3322, %v4071
        %v4139 = vsub.f32 %v3323, %v4071
        %v4141 = vlaneseq
        %v4142 = vshrl.u32 %v4141, 7
        %v4143 = vsub.s32 0, %v4142
        %v4144 = vrot.slane %v4070, %v4143
        %v4145 = vlaneseq
        %v4146 = vshrl.u32 %v4145, 7
        %v4147 = vsub.s32 1, %v4146
        %v4148 = vrot.slane %v4070, %v4147
        %v4149 = vlaneseq
        %v4150 = vshrl.u32 %v4149, 7
        %v4151 = vsub.s32 2, %v4150
        %v4152 = vrot.slane %v4070, %v4151
        %v4153 = vlaneseq
        %v4154 = vshrl.u32 %v4153, 7
        %v4155 = vsub.s32 3, %v4154
        %v4156 = vrot.slane %v4070, %v4155
        %v4161 = vmul.f32 %v4144, %v4072
        %v4162 = vmul.f32 %v4148, %v4073
        %v4163 = vmul.f32 %v4152, %v4074
        %v4164 = vmul.f32 %v4156, %v4075
        %v4165 = vmul.f32 %v4144, %v4076
        %v4166 = vmul.f32 %v4148, %v4077
        %v4167 = vmul.f32 %v4152, %v4078
        %v4168 = vmul.f32 %v4156, %v4079
        %v4169 = vmul.f32 %v4144, %v4080
        %v4170 = vmul.f32 %v4148, %v4081
        %v4171 = vmul.f32 %v4152, %v4082
        %v4172 = vmul.f32 %v4156, %v4083
        %v4173 = vmul.f32 %v4144, %v4084
        %v4174 = vmul.f32 %v4148, %v4085
        %v4175 = vmul.f32 %v4152, %v4086
        %v4176 = vmul.f32 %v4156, %v4087
        %v4177 = vmul.f32 %v4144, %v4088
        %v4178 = vmul.f32 %v4148, %v4089
        %v4179 = vmul.f32 %v4152, %v4090
        %v4180 = vmul.f32 %v4156, %v4091
        %v4181 = vmul.f32 %v4144, %v4092
        %v4182 = vmul.f32 %v4148, %v4093
        %v4183 = vmul.f32 %v4152, %v4094
        %v4184 = vmul.f32 %v4156, %v4095
        %v4185 = vmul.f32 %v4144, %v4096
        %v4186 = vmul.f32 %v4148, %v4097
        %v4187 = vmul.f32 %v4152, %v4098
        %v4188 = vmul.f32 %v4156, %v4099
        %v4189 = vmul.f32 %v4144, %v4100
        %v4190 = vmul.f32 %v4148, %v4101
        %v4191 = vmul.f32 %v4152, %v4102
        %v4192 = vmul.f32 %v4156, %v4103
        %v4193 = vmul.f32 %v4144, %v4104
        %v4194 = vmul.f32 %v4148, %v4105
        %v4195 = vmul.f32 %v4152, %v4106
        %v4196 = vmul.f32 %v4156, %v4107
        %v4197 = vmul.f32 %v4144, %v4108
        %v4198 = vmul.f32 %v4148, %v4109
        %v4199 = vmul.f32 %v4152, %v4110
        %v4200 = vmul.f32 %v4156, %v4111
        %v4201 = vmul.f32 %v4144, %v4112
        %v4202 = vmul.f32 %v4148, %v4113
        %v4203 = vmul.f32 %v4152, %v4114
        %v4204 = vmul.f32 %v4156, %v4115
        %v4205 = vmul.f32 %v4144, %v4116
        %v4206 = vmul.f32 %v4148, %v4117
        %v4207 = vmul.f32 %v4152, %v4118
        %v4208 = vmul.f32 %v4156, %v4119
        %v4209 = vmul.f32 %v4144, %v4120
        %v4210 = vmul.f32 %v4148, %v4121
        %v4211 = vmul.f32 %v4152, %v4122
        %v4212 = vmul.f32 %v4156, %v4123
        %v4213 = vmul.f32 %v4144, %v4124
        %v4214 = vmul.f32 %v4148, %v4125
        %v4215 = vmul.f32 %v4152, %v4126
        %v4216 = vmul.f32 %v4156, %v4127
        %v4217 = vmul.f32 %v4144, %v4128
        %v4218 = vmul.f32 %v4148, %v4129
        %v4219 = vmul.f32 %v4152, %v4130
        %v4220 = vmul.f32 %v4156, %v4131
        %v4221 = vmul.f32 %v4144, %v4132
        %v4222 = vmul.f32 %v4148, %v4133
        %v4223 = vmul.f32 %v4152, %v4134
        %v4224 = vmul.f32 %v4156, %v4135
        %v4225 = vmul.f32 %v4144, %v4136
        %v4226 = vmul.f32 %v4148, %v4137
        %v4227 = vmul.f32 %v4152, %v4138
        %v4228 = vmul.f32 %v4156, %v4139
        %s4229 = sadd.f32 %s4069, 1e-08
        %v4230 = vstv %s4229
        %v4231 = vrsqrt.pop %v4230
        %s4232 = vtos %v4231
        %v4233 = vstv %s4232
        %v4234 = vmul.f32 %v4161, %v4233
        %v4235 = vmul.f32 %v4162, %v4233
        %v4236 = vmul.f32 %v4163, %v4233
        %v4237 = vmul.f32 %v4164, %v4233
        %v4238 = vmul.f32 %v4165, %v4233
        %v4239 = vmul.f32 %v4166, %v4233
        %v4240 = vmul.f32 %v4167, %v4233
        %v4241 = vmul.f32 %v4168, %v4233
        %v4242 = vmul.f32 %v4169, %v4233
        %v4243 = vmul.f32 %v4170, %v4233
        %v4244 = vmul.f32 %v4171, %v4233
        %v4245 = vmul.f32 %v4172, %v4233
        %v4246 = vmul.f32 %v4173, %v4233
        %v4247 = vmul.f32 %v4174, %v4233
        %v4248 = vmul.f32 %v4175, %v4233
        %v4249 = vmul.f32 %v4176, %v4233
        %v4250 = vmul.f32 %v4177, %v4233
        %v4251 = vmul.f32 %v4178, %v4233
        %v4252 = vmul.f32 %v4179, %v4233
        %v4253 = vmul.f32 %v4180, %v4233
        %v4254 = vmul.f32 %v4181, %v4233
        %v4255 = vmul.f32 %v4182, %v4233
        %v4256 = vmul.f32 %v4183, %v4233
        %v4257 = vmul.f32 %v4184, %v4233
        %v4258 = vmul.f32 %v4185, %v4233
        %v4259 = vmul.f32 %v4186, %v4233
        %v4260 = vmul.f32 %v4187, %v4233
        %v4261 = vmul.f32 %v4188, %v4233
        %v4262 = vmul.f32 %v4189, %v4233
        %v4263 = vmul.f32 %v4190, %v4233
        %v4264 = vmul.f32 %v4191, %v4233
        %v4265 = vmul.f32 %v4192, %v4233
        %v4266 = vmul.f32 %v4193, %v4233
        %v4267 = vmul.f32 %v4194, %v4233
        %v4268 = vmul.f32 %v4195, %v4233
        %v4269 = vmul.f32 %v4196, %v4233
        %v4270 = vmul.f32 %v4197, %v4233
        %v4271 = vmul.f32 %v4198, %v4233
        %v4272 = vmul.f32 %v4199, %v4233
        %v4273 = vmul.f32 %v4200, %v4233
        %v4274 = vmul.f32 %v4201, %v4233
        %v4275 = vmul.f32 %v4202, %v4233
        %v4276 = vmul.f32 %v4203, %v4233
        %v4277 = vmul.f32 %v4204, %v4233
        %v4278 = vmul.f32 %v4205, %v4233
        %v4279 = vmul.f32 %v4206, %v4233
        %v4280 = vmul.f32 %v4207, %v4233
        %v4281 = vmul.f32 %v4208, %v4233
        %v4282 = vmul.f32 %v4209, %v4233
        %v4283 = vmul.f32 %v4210, %v4233
        %v4284 = vmul.f32 %v4211, %v4233
        %v4285 = vmul.f32 %v4212, %v4233
        %v4286 = vmul.f32 %v4213, %v4233
        %v4287 = vmul.f32 %v4214, %v4233
        %v4288 = vmul.f32 %v4215, %v4233
        %v4289 = vmul.f32 %v4216, %v4233
        %v4290 = vmul.f32 %v4217, %v4233
        %v4291 = vmul.f32 %v4218, %v4233
        %v4292 = vmul.f32 %v4219, %v4233
        %v4293 = vmul.f32 %v4220, %v4233
        %v4294 = vmul.f32 %v4221, %v4233
        %v4295 = vmul.f32 %v4222, %v4233
        %v4296 = vmul.f32 %v4223, %v4233
        %v4297 = vmul.f32 %v4224, %v4233
        %v4298 = vmul.f32 %v4225, %v4233
        %v4299 = vmul.f32 %v4226, %v4233
        %v4300 = vmul.f32 %v4227, %v4233
        %v4301 = vmul.f32 %v4228, %v4233
        %v4302 = vld [vmem:[%s10] sm:$0xf]
        %v4304 = vlaneseq
        %v4305 = vshrl.u32 %v4304, 7
        %v4306 = vsub.s32 0, %v4305
        %v4307 = vrot.slane %v4302, %v4306
        %v4308 = vlaneseq
        %v4309 = vshrl.u32 %v4308, 7
        %v4310 = vsub.s32 1, %v4309
        %v4311 = vrot.slane %v4302, %v4310
        %v4312 = vlaneseq
        %v4313 = vshrl.u32 %v4312, 7
        %v4314 = vsub.s32 2, %v4313
        %v4315 = vrot.slane %v4302, %v4314
        %v4316 = vlaneseq
        %v4317 = vshrl.u32 %v4316, 7
        %v4318 = vsub.s32 3, %v4317
        %v4319 = vrot.slane %v4302, %v4318
        %v4324 = vadd.f32 %v4234, %v4307
        %v4325 = vadd.f32 %v4235, %v4311
        %v4326 = vadd.f32 %v4236, %v4315
        %v4327 = vadd.f32 %v4237, %v4319
        %v4328 = vadd.f32 %v4238, %v4307
        %v4329 = vadd.f32 %v4239, %v4311
        %v4330 = vadd.f32 %v4240, %v4315
        %v4331 = vadd.f32 %v4241, %v4319
        %v4332 = vadd.f32 %v4242, %v4307
        %v4333 = vadd.f32 %v4243, %v4311
        %v4334 = vadd.f32 %v4244, %v4315
        %v4335 = vadd.f32 %v4245, %v4319
        %v4336 = vadd.f32 %v4246, %v4307
        %v4337 = vadd.f32 %v4247, %v4311
        %v4338 = vadd.f32 %v4248, %v4315
        %v4339 = vadd.f32 %v4249, %v4319
        %v4340 = vadd.f32 %v4250, %v4307
        %v4341 = vadd.f32 %v4251, %v4311
        %v4342 = vadd.f32 %v4252, %v4315
        %v4343 = vadd.f32 %v4253, %v4319
        %v4344 = vadd.f32 %v4254, %v4307
        %v4345 = vadd.f32 %v4255, %v4311
        %v4346 = vadd.f32 %v4256, %v4315
        %v4347 = vadd.f32 %v4257, %v4319
        %v4348 = vadd.f32 %v4258, %v4307
        %v4349 = vadd.f32 %v4259, %v4311
        %v4350 = vadd.f32 %v4260, %v4315
        %v4351 = vadd.f32 %v4261, %v4319
        %v4352 = vadd.f32 %v4262, %v4307
        %v4353 = vadd.f32 %v4263, %v4311
        %v4354 = vadd.f32 %v4264, %v4315
        %v4355 = vadd.f32 %v4265, %v4319
        %v4356 = vadd.f32 %v4266, %v4307
        %v4357 = vadd.f32 %v4267, %v4311
        %v4358 = vadd.f32 %v4268, %v4315
        %v4359 = vadd.f32 %v4269, %v4319
        %v4360 = vadd.f32 %v4270, %v4307
        %v4361 = vadd.f32 %v4271, %v4311
        %v4362 = vadd.f32 %v4272, %v4315
        %v4363 = vadd.f32 %v4273, %v4319
        %v4364 = vadd.f32 %v4274, %v4307
        %v4365 = vadd.f32 %v4275, %v4311
        %v4366 = vadd.f32 %v4276, %v4315
        %v4367 = vadd.f32 %v4277, %v4319
        %v4368 = vadd.f32 %v4278, %v4307
        %v4369 = vadd.f32 %v4279, %v4311
        %v4370 = vadd.f32 %v4280, %v4315
        %v4371 = vadd.f32 %v4281, %v4319
        %v4372 = vadd.f32 %v4282, %v4307
        %v4373 = vadd.f32 %v4283, %v4311
        %v4374 = vadd.f32 %v4284, %v4315
        %v4375 = vadd.f32 %v4285, %v4319
        %v4376 = vadd.f32 %v4286, %v4307
        %v4377 = vadd.f32 %v4287, %v4311
        %v4378 = vadd.f32 %v4288, %v4315
        %v4379 = vadd.f32 %v4289, %v4319
        %v4380 = vadd.f32 %v4290, %v4307
        %v4381 = vadd.f32 %v4291, %v4311
        %v4382 = vadd.f32 %v4292, %v4315
        %v4383 = vadd.f32 %v4293, %v4319
        %v4384 = vadd.f32 %v4294, %v4307
        %v4385 = vadd.f32 %v4295, %v4311
        %v4386 = vadd.f32 %v4296, %v4315
        %v4387 = vadd.f32 %v4297, %v4319
        %v4388 = vadd.f32 %v4298, %v4307
        %v4389 = vadd.f32 %v4299, %v4311
        %v4390 = vadd.f32 %v4300, %v4315
        %v4391 = vadd.f32 %v4301, %v4319
        %v4392 = vpack.c.bf16 %v4328, %v4324
        %v4393 = vpack.c.bf16 %v4329, %v4325
        %v4394 = vpack.c.bf16 %v4330, %v4326
        %v4395 = vpack.c.bf16 %v4331, %v4327
        %v4396 = vpack.c.bf16 %v4336, %v4332
        %v4397 = vpack.c.bf16 %v4337, %v4333
        %v4398 = vpack.c.bf16 %v4338, %v4334
        %v4399 = vpack.c.bf16 %v4339, %v4335
        %v4400 = vpack.c.bf16 %v4344, %v4340
        %v4401 = vpack.c.bf16 %v4345, %v4341
        %v4402 = vpack.c.bf16 %v4346, %v4342
        %v4403 = vpack.c.bf16 %v4347, %v4343
        %v4404 = vpack.c.bf16 %v4352, %v4348
        %v4405 = vpack.c.bf16 %v4353, %v4349
        %v4406 = vpack.c.bf16 %v4354, %v4350
        %v4407 = vpack.c.bf16 %v4355, %v4351
        %v4408 = vpack.c.bf16 %v4360, %v4356
        %v4409 = vpack.c.bf16 %v4361, %v4357
        %v4410 = vpack.c.bf16 %v4362, %v4358
        %v4411 = vpack.c.bf16 %v4363, %v4359
        %v4412 = vpack.c.bf16 %v4368, %v4364
        %v4413 = vpack.c.bf16 %v4369, %v4365
        %v4414 = vpack.c.bf16 %v4370, %v4366
        %v4415 = vpack.c.bf16 %v4371, %v4367
        %v4416 = vpack.c.bf16 %v4376, %v4372
        %v4417 = vpack.c.bf16 %v4377, %v4373
        %v4418 = vpack.c.bf16 %v4378, %v4374
        %v4419 = vpack.c.bf16 %v4379, %v4375
        %v4420 = vpack.c.bf16 %v4384, %v4380
        %v4421 = vpack.c.bf16 %v4385, %v4381
        %v4422 = vpack.c.bf16 %v4386, %v4382
        %v4423 = vpack.c.bf16 %v4387, %v4383
        %v4424 = vpack.c.bf16 %v4388, %v4388
        %v4425 = vpack.c.bf16 %v4389, %v4389
        %v4426 = vpack.c.bf16 %v4390, %v4390
        %v4427 = vpack.c.bf16 %v4391, %v4391
        %v4428 = vld [vmem:[#allocation11] sm:$0xff]
        %v4429 = vld [vmem:[#allocation11 + $0x8] sm:$0xff]
        %v4430 = vld [vmem:[#allocation11 + $0x10] sm:$0xff]
        %v4431 = vld [vmem:[#allocation11 + $0x18] sm:$0xff]
        %v4432 = vld [vmem:[#allocation11 + $0x20] sm:$0xff]
        %v4433 = vld [vmem:[#allocation11 + $0x28] sm:$0xff]
        %v4434 = vld [vmem:[#allocation11 + $0x30] sm:$0xff]
        %v4435 = vld [vmem:[#allocation11 + $0x38] sm:$0xff]
        %v4436 = vld [vmem:[#allocation11 + $0x40] sm:$0xff]
        %v4437 = vld [vmem:[#allocation11 + $0x48] sm:$0xff]
        %v4438 = vld [vmem:[#allocation11 + $0x50] sm:$0xff]
        %v4439 = vld [vmem:[#allocation11 + $0x58] sm:$0xff]
        %v4440 = vld [vmem:[#allocation11 + $0x60] sm:$0xff]
        %v4441 = vld [vmem:[#allocation11 + $0x68] sm:$0xff]
        %v4442 = vld [vmem:[#allocation11 + $0x70] sm:$0xff]
        %v4443 = vld [vmem:[#allocation11 + $0x78] sm:$0xff]
        %v4444 = vld [vmem:[#allocation11 + $0x80] sm:$0xff]
        %v4445 = vld [vmem:[#allocation11 + $0x88] sm:$0xff]
        %v4446 = vld [vmem:[#allocation11 + $0x90] sm:$0xff]
        %v4447 = vld [vmem:[#allocation11 + $0x98] sm:$0xff]
        %v4448 = vld [vmem:[#allocation11 + $0xa0] sm:$0xff]
        %v4449 = vld [vmem:[#allocation11 + $0xa8] sm:$0xff]
        %v4450 = vld [vmem:[#allocation11 + $0xb0] sm:$0xff]
        %v4451 = vld [vmem:[#allocation11 + $0xb8] sm:$0xff]
        %v4452 = vld [vmem:[#allocation11 + $0xc0] sm:$0xff]
        %v4453 = vld [vmem:[#allocation11 + $0xc8] sm:$0xff]
        %v4454 = vld [vmem:[#allocation11 + $0xd0] sm:$0xff]
        %v4455 = vld [vmem:[#allocation11 + $0xd8] sm:$0xff]
        %v4456 = vld [vmem:[#allocation11 + $0xe0] sm:$0xff]
        %v4457 = vld [vmem:[#allocation11 + $0xe8] sm:$0xff]
        %v4458 = vld [vmem:[#allocation11 + $0xf0] sm:$0xff]
        %v4459 = vld [vmem:[#allocation11 + $0xf8] sm:$0xff]
        %v4460 = vld [vmem:[#allocation11 + $0x100] sm:$0xff]
        %v4461 = vld [vmem:[#allocation11 + $0x108] sm:$0xff]
        %v4462 = vld [vmem:[#allocation11 + $0x110] sm:$0xff]
        %v4463 = vld [vmem:[#allocation11 + $0x118] sm:$0xff]
        %v4464 = vld [vmem:[#allocation11 + $0x120] sm:$0xff]
        %v4465 = vld [vmem:[#allocation11 + $0x128] sm:$0xff]
        %v4466 = vld [vmem:[#allocation11 + $0x130] sm:$0xff]
        %v4467 = vld [vmem:[#allocation11 + $0x138] sm:$0xff]
        %v4468 = vld [vmem:[#allocation11 + $0x140] sm:$0xff]
        %v4469 = vld [vmem:[#allocation11 + $0x148] sm:$0xff]
        %v4470 = vld [vmem:[#allocation11 + $0x150] sm:$0xff]
        %v4471 = vld [vmem:[#allocation11 + $0x158] sm:$0xff]
        %v4472 = vld [vmem:[#allocation11 + $0x160] sm:$0xff]
        %v4473 = vld [vmem:[#allocation11 + $0x168] sm:$0xff]
        %v4474 = vld [vmem:[#allocation11 + $0x170] sm:$0xff]
        %v4475 = vld [vmem:[#allocation11 + $0x178] sm:$0xff]
        %v4476 = vld [vmem:[#allocation11 + $0x180] sm:$0xff]
        %v4477 = vld [vmem:[#allocation11 + $0x188] sm:$0xff]
        %v4478 = vld [vmem:[#allocation11 + $0x190] sm:$0xff]
        %v4479 = vld [vmem:[#allocation11 + $0x198] sm:$0xff]
        %v4480 = vld [vmem:[#allocation11 + $0x1a0] sm:$0xff]
        %v4481 = vld [vmem:[#allocation11 + $0x1a8] sm:$0xff]
        %v4482 = vld [vmem:[#allocation11 + $0x1b0] sm:$0xff]
        %v4483 = vld [vmem:[#allocation11 + $0x1b8] sm:$0xff]
        %v4484 = vld [vmem:[#allocation11 + $0x1c0] sm:$0xff]
        %v4485 = vld [vmem:[#allocation11 + $0x1c8] sm:$0xff]
        %v4486 = vld [vmem:[#allocation11 + $0x1d0] sm:$0xff]
        %v4487 = vld [vmem:[#allocation11 + $0x1d8] sm:$0xff]
        %v4488 = vld [vmem:[#allocation11 + $0x1e0] sm:$0xff]
        %v4489 = vld [vmem:[#allocation11 + $0x1e8] sm:$0xff]
        %v4490 = vld [vmem:[#allocation11 + $0x1f0] sm:$0xff]
        %v4491 = vld [vmem:[#allocation11 + $0x1f8] sm:$0xff]
        %v4492 = vld [vmem:[%s12] sm:$0x3]
        %v4494 = vlaneseq
        %v4495 = vshrl.u32 %v4494, 7
        %v4496 = vsub.s32 0, %v4495
        %v4497 = vrot.slane %v4492, %v4496
        %v4498 = vlaneseq
        %v4499 = vshrl.u32 %v4498, 7
        %v4500 = vsub.s32 1, %v4499
        %v4501 = vrot.slane %v4492, %v4500
        %vm4504 = vsmask.f32 4352
        %v4506 = vshrl.u32 %v4392, 16
        %v4508 = vrot.slane %v4506, 3
        %v4509 = vshll.u32 %v4392, 16
        %v4511 = vrot.slane %v4509, 4
        %v4512 = vor.u32 %v4508, %v4511
        %v4514 = vshrl.u32 %v4396, 16
        %v4516 = vrot.slane %v4514, 3
        %v4517 = vshll.u32 %v4396, 16
        %v4519 = vrot.slane %v4517, 4
        %v4520 = vor.u32 %v4516, %v4519
        %v4521 = vsel %vm4504, %v4512, %v4520
        %v4523 = vshrl.u32 %v4393, 16
        %v4525 = vrot.slane %v4523, 3
        %v4526 = vshll.u32 %v4393, 16
        %v4528 = vrot.slane %v4526, 4
        %v4529 = vor.u32 %v4525, %v4528
        %v4531 = vshrl.u32 %v4397, 16
        %v4533 = vrot.slane %v4531, 3
        %v4534 = vshll.u32 %v4397, 16
        %v4536 = vrot.slane %v4534, 4
        %v4537 = vor.u32 %v4533, %v4536
        %v4538 = vsel %vm4504, %v4529, %v4537
        %v4540 = vshrl.u32 %v4394, 16
        %v4542 = vrot.slane %v4540, 3
        %v4543 = vshll.u32 %v4394, 16
        %v4545 = vrot.slane %v4543, 4
        %v4546 = vor.u32 %v4542, %v4545
        %v4548 = vshrl.u32 %v4398, 16
        %v4550 = vrot.slane %v4548, 3
        %v4551 = vshll.u32 %v4398, 16
        %v4553 = vrot.slane %v4551, 4
        %v4554 = vor.u32 %v4550, %v4553
        %v4555 = vsel %vm4504, %v4546, %v4554
        %v4557 = vshrl.u32 %v4395, 16
        %v4559 = vrot.slane %v4557, 3
        %v4560 = vshll.u32 %v4395, 16
        %v4562 = vrot.slane %v4560, 4
        %v4563 = vor.u32 %v4559, %v4562
        %v4565 = vshrl.u32 %v4399, 16
        %v4567 = vrot.slane %v4565, 3
        %v4568 = vshll.u32 %v4399, 16
        %v4570 = vrot.slane %v4568, 4
        %v4571 = vor.u32 %v4567, %v4570
        %v4572 = vsel %vm4504, %v4563, %v4571
        %v4574 = vshrl.u32 %v4400, 16
        %v4576 = vrot.slane %v4574, 3
        %v4577 = vshll.u32 %v4400, 16
        %v4579 = vrot.slane %v4577, 4
        %v4580 = vor.u32 %v4576, %v4579
        %v4581 = vsel %vm4504, %v4520, %v4580
        %v4583 = vshrl.u32 %v4401, 16
        %v4585 = vrot.slane %v4583, 3
        %v4586 = vshll.u32 %v4401, 16
        %v4588 = vrot.slane %v4586, 4
        %v4589 = vor.u32 %v4585, %v4588
        %v4590 = vsel %vm4504, %v4537, %v4589
        %v4592 = vshrl.u32 %v4402, 16
        %v4594 = vrot.slane %v4592, 3
        %v4595 = vshll.u32 %v4402, 16
        %v4597 = vrot.slane %v4595, 4
        %v4598 = vor.u32 %v4594, %v4597
        %v4599 = vsel %vm4504, %v4554, %v4598
        %v4601 = vshrl.u32 %v4403, 16
        %v4603 = vrot.slane %v4601, 3
        %v4604 = vshll.u32 %v4403, 16
        %v4606 = vrot.slane %v4604, 4
        %v4607 = vor.u32 %v4603, %v4606
        %v4608 = vsel %vm4504, %v4571, %v4607
        %v4610 = vshrl.u32 %v4404, 16
        %v4612 = vrot.slane %v4610, 3
        %v4613 = vshll.u32 %v4404, 16
        %v4615 = vrot.slane %v4613, 4
        %v4616 = vor.u32 %v4612, %v4615
        %v4617 = vsel %vm4504, %v4580, %v4616
        %v4619 = vshrl.u32 %v4405, 16
        %v4621 = vrot.slane %v4619, 3
        %v4622 = vshll.u32 %v4405, 16
        %v4624 = vrot.slane %v4622, 4
        %v4625 = vor.u32 %v4621, %v4624
        %v4626 = vsel %vm4504, %v4589, %v4625
        %v4628 = vshrl.u32 %v4406, 16
        %v4630 = vrot.slane %v4628, 3
        %v4631 = vshll.u32 %v4406, 16
        %v4633 = vrot.slane %v4631, 4
        %v4634 = vor.u32 %v4630, %v4633
        %v4635 = vsel %vm4504, %v4598, %v4634
        %v4637 = vshrl.u32 %v4407, 16
        %v4639 = vrot.slane %v4637, 3
        %v4640 = vshll.u32 %v4407, 16
        %v4642 = vrot.slane %v4640, 4
        %v4643 = vor.u32 %v4639, %v4642
        %v4644 = vsel %vm4504, %v4607, %v4643
        %v4646 = vshrl.u32 %v4408, 16
        %v4648 = vrot.slane %v4646, 3
        %v4649 = vshll.u32 %v4408, 16
        %v4651 = vrot.slane %v4649, 4
        %v4652 = vor.u32 %v4648, %v4651
        %v4653 = vsel %vm4504, %v4616, %v4652
        %v4655 = vshrl.u32 %v4409, 16
        %v4657 = vrot.slane %v4655, 3
        %v4658 = vshll.u32 %v4409, 16
        %v4660 = vrot.slane %v4658, 4
        %v4661 = vor.u32 %v4657, %v4660
        %v4662 = vsel %vm4504, %v4625, %v4661
        %v4664 = vshrl.u32 %v4410, 16
        %v4666 = vrot.slane %v4664, 3
        %v4667 = vshll.u32 %v4410, 16
        %v4669 = vrot.slane %v4667, 4
        %v4670 = vor.u32 %v4666, %v4669
        %v4671 = vsel %vm4504, %v4634, %v4670
        %v4673 = vshrl.u32 %v4411, 16
        %v4675 = vrot.slane %v4673, 3
        %v4676 = vshll.u32 %v4411, 16
        %v4678 = vrot.slane %v4676, 4
        %v4679 = vor.u32 %v4675, %v4678
        %v4680 = vsel %vm4504, %v4643, %v4679
        %v4682 = vshrl.u32 %v4412, 16
        %v4684 = vrot.slane %v4682, 3
        %v4685 = vshll.u32 %v4412, 16
        %v4687 = vrot.slane %v4685, 4
        %v4688 = vor.u32 %v4684, %v4687
        %v4689 = vsel %vm4504, %v4652, %v4688
        %v4691 = vshrl.u32 %v4413, 16
        %v4693 = vrot.slane %v4691, 3
        %v4694 = vshll.u32 %v4413, 16
        %v4696 = vrot.slane %v4694, 4
        %v4697 = vor.u32 %v4693, %v4696
        %v4698 = vsel %vm4504, %v4661, %v4697
        %v4700 = vshrl.u32 %v4414, 16
        %v4702 = vrot.slane %v4700, 3
        %v4703 = vshll.u32 %v4414, 16
        %v4705 = vrot.slane %v4703, 4
        %v4706 = vor.u32 %v4702, %v4705
        %v4707 = vsel %vm4504, %v4670, %v4706
        %v4709 = vshrl.u32 %v4415, 16
        %v4711 = vrot.slane %v4709, 3
        %v4712 = vshll.u32 %v4415, 16
        %v4714 = vrot.slane %v4712, 4
        %v4715 = vor.u32 %v4711, %v4714
        %v4716 = vsel %vm4504, %v4679, %v4715
        %v4718 = vshrl.u32 %v4416, 16
        %v4720 = vrot.slane %v4718, 3
        %v4721 = vshll.u32 %v4416, 16
        %v4723 = vrot.slane %v4721, 4
        %v4724 = vor.u32 %v4720, %v4723
        %v4725 = vsel %vm4504, %v4688, %v4724
        %v4727 = vshrl.u32 %v4417, 16
        %v4729 = vrot.slane %v4727, 3
        %v4730 = vshll.u32 %v4417, 16
        %v4732 = vrot.slane %v4730, 4
        %v4733 = vor.u32 %v4729, %v4732
        %v4734 = vsel %vm4504, %v4697, %v4733
        %v4736 = vshrl.u32 %v4418, 16
        %v4738 = vrot.slane %v4736, 3
        %v4739 = vshll.u32 %v4418, 16
        %v4741 = vrot.slane %v4739, 4
        %v4742 = vor.u32 %v4738, %v4741
        %v4743 = vsel %vm4504, %v4706, %v4742
        %v4745 = vshrl.u32 %v4419, 16
        %v4747 = vrot.slane %v4745, 3
        %v4748 = vshll.u32 %v4419, 16
        %v4750 = vrot.slane %v4748, 4
        %v4751 = vor.u32 %v4747, %v4750
        %v4752 = vsel %vm4504, %v4715, %v4751
        %v4754 = vshrl.u32 %v4420, 16
        %v4756 = vrot.slane %v4754, 3
        %v4757 = vshll.u32 %v4420, 16
        %v4759 = vrot.slane %v4757, 4
        %v4760 = vor.u32 %v4756, %v4759
        %v4761 = vsel %vm4504, %v4724, %v4760
        %v4763 = vshrl.u32 %v4421, 16
        %v4765 = vrot.slane %v4763, 3
        %v4766 = vshll.u32 %v4421, 16
        %v4768 = vrot.slane %v4766, 4
        %v4769 = vor.u32 %v4765, %v4768
        %v4770 = vsel %vm4504, %v4733, %v4769
        %v4772 = vshrl.u32 %v4422, 16
        %v4774 = vrot.slane %v4772, 3
        %v4775 = vshll.u32 %v4422, 16
        %v4777 = vrot.slane %v4775, 4
        %v4778 = vor.u32 %v4774, %v4777
        %v4779 = vsel %vm4504, %v4742, %v4778
        %v4781 = vshrl.u32 %v4423, 16
        %v4783 = vrot.slane %v4781, 3
        %v4784 = vshll.u32 %v4423, 16
        %v4786 = vrot.slane %v4784, 4
        %v4787 = vor.u32 %v4783, %v4786
        %v4788 = vsel %vm4504, %v4751, %v4787
        %v4790 = vshrl.u32 %v4424, 16
        %v4792 = vrot.slane %v4790, 3
        %v4793 = vshll.u32 %v4424, 16
        %v4795 = vrot.slane %v4793, 4
        %v4796 = vor.u32 %v4792, %v4795
        %v4797 = vsel %vm4504, %v4760, %v4796
        %v4799 = vshrl.u32 %v4425, 16
        %v4801 = vrot.slane %v4799, 3
        %v4802 = vshll.u32 %v4425, 16
        %v4804 = vrot.slane %v4802, 4
        %v4805 = vor.u32 %v4801, %v4804
        %v4806 = vsel %vm4504, %v4769, %v4805
        %v4808 = vshrl.u32 %v4426, 16
        %v4810 = vrot.slane %v4808, 3
        %v4811 = vshll.u32 %v4426, 16
        %v4813 = vrot.slane %v4811, 4
        %v4814 = vor.u32 %v4810, %v4813
        %v4815 = vsel %vm4504, %v4778, %v4814
        %v4817 = vshrl.u32 %v4427, 16
        %v4819 = vrot.slane %v4817, 3
        %v4820 = vshll.u32 %v4427, 16
        %v4822 = vrot.slane %v4820, 4
        %v4823 = vor.u32 %v4819, %v4822
        %v4824 = vsel %vm4504, %v4787, %v4823
        %v4921 = vunpack.c.l.b16 %v4428
        %v4922 = vunpack.c.h.b16 %v4428
        %v4923 = vunpack.c.l.b16 %v4429
        %v4924 = vunpack.c.h.b16 %v4429
        %v4925 = vunpack.c.l.b16 %v4430
        %v4926 = vunpack.c.h.b16 %v4430
        %v4927 = vunpack.c.l.b16 %v4431
        %v4928 = vunpack.c.h.b16 %v4431
        %v4929 = vunpack.c.l.b16 %v4432
        %v4930 = vunpack.c.h.b16 %v4432
        %v4931 = vunpack.c.l.b16 %v4433
        %v4932 = vunpack.c.h.b16 %v4433
        %v4933 = vunpack.c.l.b16 %v4434
        %v4934 = vunpack.c.h.b16 %v4434
        %v4935 = vunpack.c.l.b16 %v4435
        %v4936 = vunpack.c.h.b16 %v4435
        %v4937 = vunpack.c.l.b16 %v4436
        %v4938 = vunpack.c.h.b16 %v4436
        %v4939 = vunpack.c.l.b16 %v4437
        %v4940 = vunpack.c.h.b16 %v4437
        %v4941 = vunpack.c.l.b16 %v4438
        %v4942 = vunpack.c.h.b16 %v4438
        %v4943 = vunpack.c.l.b16 %v4439
        %v4944 = vunpack.c.h.b16 %v4439
        %v4945 = vunpack.c.l.b16 %v4440
        %v4946 = vunpack.c.h.b16 %v4440
        %v4947 = vunpack.c.l.b16 %v4441
        %v4948 = vunpack.c.h.b16 %v4441
        %v4949 = vunpack.c.l.b16 %v4442
        %v4950 = vunpack.c.h.b16 %v4442
        %v4951 = vunpack.c.l.b16 %v4443
        %v4952 = vunpack.c.h.b16 %v4443
        %v4953 = vunpack.c.l.b16 %v4444
        %v4954 = vunpack.c.h.b16 %v4444
        %v4955 = vunpack.c.l.b16 %v4445
        %v4956 = vunpack.c.h.b16 %v4445
        %v4957 = vunpack.c.l.b16 %v4446
        %v4958 = vunpack.c.h.b16 %v4446
        %v4959 = vunpack.c.l.b16 %v4447
        %v4960 = vunpack.c.h.b16 %v4447
        %v4961 = vunpack.c.l.b16 %v4448
        %v4962 = vunpack.c.h.b16 %v4448
        %v4963 = vunpack.c.l.b16 %v4449
        %v4964 = vunpack.c.h.b16 %v4449
        %v4965 = vunpack.c.l.b16 %v4450
        %v4966 = vunpack.c.h.b16 %v4450
        %v4967 = vunpack.c.l.b16 %v4451
        %v4968 = vunpack.c.h.b16 %v4451
        %v4969 = vunpack.c.l.b16 %v4452
        %v4970 = vunpack.c.h.b16 %v4452
        %v4971 = vunpack.c.l.b16 %v4453
        %v4972 = vunpack.c.h.b16 %v4453
        %v4973 = vunpack.c.l.b16 %v4454
        %v4974 = vunpack.c.h.b16 %v4454
        %v4975 = vunpack.c.l.b16 %v4455
        %v4976 = vunpack.c.h.b16 %v4455
        %v4977 = vunpack.c.l.b16 %v4456
        %v4978 = vunpack.c.h.b16 %v4456
        %v4979 = vunpack.c.l.b16 %v4457
        %v4980 = vunpack.c.h.b16 %v4457
        %v4981 = vunpack.c.l.b16 %v4458
        %v4982 = vunpack.c.h.b16 %v4458
        %v4983 = vunpack.c.l.b16 %v4459
        %v4984 = vunpack.c.h.b16 %v4459
        %v4985 = vunpack.c.l.b16 %v4460
        %v4986 = vunpack.c.h.b16 %v4460
        %v4987 = vunpack.c.l.b16 %v4461
        %v4988 = vunpack.c.h.b16 %v4461
        %v4989 = vunpack.c.l.b16 %v4462
        %v4990 = vunpack.c.h.b16 %v4462
        %v4991 = vunpack.c.l.b16 %v4463
        %v4992 = vunpack.c.h.b16 %v4463
        %v4993 = vunpack.c.l.b16 %v4464
        %v4994 = vunpack.c.h.b16 %v4464
        %v4995 = vunpack.c.l.b16 %v4465
        %v4996 = vunpack.c.h.b16 %v4465
        %v4997 = vunpack.c.l.b16 %v4466
        %v4998 = vunpack.c.h.b16 %v4466
        %v4999 = vunpack.c.l.b16 %v4467
        %v5000 = vunpack.c.h.b16 %v4467
        %v5001 = vunpack.c.l.b16 %v4468
        %v5002 = vunpack.c.h.b16 %v4468
        %v5003 = vunpack.c.l.b16 %v4469
        %v5004 = vunpack.c.h.b16 %v4469
        %v5005 = vunpack.c.l.b16 %v4470
        %v5006 = vunpack.c.h.b16 %v4470
        %v5007 = vunpack.c.l.b16 %v4471
        %v5008 = vunpack.c.h.b16 %v4471
        %v5009 = vunpack.c.l.b16 %v4472
        %v5010 = vunpack.c.h.b16 %v4472
        %v5011 = vunpack.c.l.b16 %v4473
        %v5012 = vunpack.c.h.b16 %v4473
        %v5013 = vunpack.c.l.b16 %v4474
        %v5014 = vunpack.c.h.b16 %v4474
        %v5015 = vunpack.c.l.b16 %v4475
        %v5016 = vunpack.c.h.b16 %v4475
        %v5017 = vunpack.c.l.b16 %v4476
        %v5018 = vunpack.c.h.b16 %v4476
        %v5019 = vunpack.c.l.b16 %v4477
        %v5020 = vunpack.c.h.b16 %v4477
        %v5021 = vunpack.c.l.b16 %v4478
        %v5022 = vunpack.c.h.b16 %v4478
        %v5023 = vunpack.c.l.b16 %v4479
        %v5024 = vunpack.c.h.b16 %v4479
        %v5025 = vunpack.c.l.b16 %v4480
        %v5026 = vunpack.c.h.b16 %v4480
        %v5027 = vunpack.c.l.b16 %v4481
        %v5028 = vunpack.c.h.b16 %v4481
        %v5029 = vunpack.c.l.b16 %v4482
        %v5030 = vunpack.c.h.b16 %v4482
        %v5031 = vunpack.c.l.b16 %v4483
        %v5032 = vunpack.c.h.b16 %v4483
        %v5033 = vunpack.c.l.b16 %v4484
        %v5034 = vunpack.c.h.b16 %v4484
        %v5035 = vunpack.c.l.b16 %v4485
        %v5036 = vunpack.c.h.b16 %v4485
        %v5037 = vunpack.c.l.b16 %v4486
        %v5038 = vunpack.c.h.b16 %v4486
        %v5039 = vunpack.c.l.b16 %v4487
        %v5040 = vunpack.c.h.b16 %v4487
        %v5041 = vunpack.c.l.b16 %v4488
        %v5042 = vunpack.c.h.b16 %v4488
        %v5043 = vunpack.c.l.b16 %v4489
        %v5044 = vunpack.c.h.b16 %v4489
        %v5045 = vunpack.c.l.b16 %v4490
        %v5046 = vunpack.c.h.b16 %v4490
        %v5047 = vunpack.c.l.b16 %v4491
        %v5048 = vunpack.c.h.b16 %v4491
        %v5049 = vpack.c.b16 %v4923, %v4921
        %v5050 = vpack.c.b16 %v4924, %v4922
        %v5051 = vpack.c.b16 %v4927, %v4925
        %v5052 = vpack.c.b16 %v4928, %v4926
        %v5053 = vpack.c.b16 %v4931, %v4929
        %v5054 = vpack.c.b16 %v4932, %v4930
        %v5055 = vpack.c.b16 %v4935, %v4933
        %v5056 = vpack.c.b16 %v4936, %v4934
        %v5057 = vpack.c.b16 %v4939, %v4937
        %v5058 = vpack.c.b16 %v4940, %v4938
        %v5059 = vpack.c.b16 %v4943, %v4941
        %v5060 = vpack.c.b16 %v4944, %v4942
        %v5061 = vpack.c.b16 %v4947, %v4945
        %v5062 = vpack.c.b16 %v4948, %v4946
        %v5063 = vpack.c.b16 %v4951, %v4949
        %v5064 = vpack.c.b16 %v4952, %v4950
        %v5065 = vpack.c.b16 %v4955, %v4953
        %v5066 = vpack.c.b16 %v4956, %v4954
        %v5067 = vpack.c.b16 %v4959, %v4957
        %v5068 = vpack.c.b16 %v4960, %v4958
        %v5069 = vpack.c.b16 %v4963, %v4961
        %v5070 = vpack.c.b16 %v4964, %v4962
        %v5071 = vpack.c.b16 %v4967, %v4965
        %v5072 = vpack.c.b16 %v4968, %v4966
        %v5073 = vpack.c.b16 %v4971, %v4969
        %v5074 = vpack.c.b16 %v4972, %v4970
        %v5075 = vpack.c.b16 %v4975, %v4973
        %v5076 = vpack.c.b16 %v4976, %v4974
        %v5077 = vpack.c.b16 %v4979, %v4977
        %v5078 = vpack.c.b16 %v4980, %v4978
        %v5079 = vpack.c.b16 %v4983, %v4981
        %v5080 = vpack.c.b16 %v4984, %v4982
        %v5081 = vpack.c.b16 %v4987, %v4985
        %v5082 = vpack.c.b16 %v4988, %v4986
        %v5083 = vpack.c.b16 %v4991, %v4989
        %v5084 = vpack.c.b16 %v4992, %v4990
        %v5085 = vpack.c.b16 %v4995, %v4993
        %v5086 = vpack.c.b16 %v4996, %v4994
        %v5087 = vpack.c.b16 %v4999, %v4997
        %v5088 = vpack.c.b16 %v5000, %v4998
        %v5089 = vpack.c.b16 %v5003, %v5001
        %v5090 = vpack.c.b16 %v5004, %v5002
        %v5091 = vpack.c.b16 %v5007, %v5005
        %v5092 = vpack.c.b16 %v5008, %v5006
        %v5093 = vpack.c.b16 %v5011, %v5009
        %v5094 = vpack.c.b16 %v5012, %v5010
        %v5095 = vpack.c.b16 %v5015, %v5013
        %v5096 = vpack.c.b16 %v5016, %v5014
        %v5097 = vpack.c.b16 %v5019, %v5017
        %v5098 = vpack.c.b16 %v5020, %v5018
        %v5099 = vpack.c.b16 %v5023, %v5021
        %v5100 = vpack.c.b16 %v5024, %v5022
        %v5101 = vpack.c.b16 %v5027, %v5025
        %v5102 = vpack.c.b16 %v5028, %v5026
        %v5103 = vpack.c.b16 %v5031, %v5029
        %v5104 = vpack.c.b16 %v5032, %v5030
        %v5105 = vpack.c.b16 %v5035, %v5033
        %v5106 = vpack.c.b16 %v5036, %v5034
        %v5107 = vpack.c.b16 %v5039, %v5037
        %v5108 = vpack.c.b16 %v5040, %v5038
        %v5109 = vpack.c.b16 %v5043, %v5041
        %v5110 = vpack.c.b16 %v5044, %v5042
        %v5111 = vpack.c.b16 %v5047, %v5045
        %v5112 = vpack.c.b16 %v5048, %v5046
        %5177 = vmatprep.subr.bf16.mxu0 %v5050
        %5178 = vmatpush1.bf16.msra.mxu0 %v5049
        %5179 = vmatprep.subr.bf16.mxu0 %v5052
        %5180 = vmatpush1.bf16.msra.mxu0 %v5051
        %5181 = vmatprep.subr.bf16.mxu0 %v5054
        %5182 = vmatpush1.bf16.msra.mxu0 %v5053
        %5183 = vmatprep.subr.bf16.mxu0 %v5056
        %5184 = vmatpush1.bf16.msra.mxu0 %v5055
        %5185 = vmatprep.subr.bf16.mxu0 %v5058
        %5186 = vmatpush1.bf16.msra.mxu0 %v5057
        %5187 = vmatprep.subr.bf16.mxu0 %v5060
        %5188 = vmatpush1.bf16.msra.mxu0 %v5059
        %5189 = vmatprep.subr.bf16.mxu0 %v5062
        %5190 = vmatpush1.bf16.msra.mxu0 %v5061
        %5191 = vmatprep.subr.bf16.mxu0 %v5064
        %5192 = vmatpush1.bf16.msra.mxu0 %v5063
        %5193 = vmatprep.subr.bf16.mxu0 %v5066
        %5194 = vmatpush1.bf16.msra.mxu0 %v5065
        %5195 = vmatprep.subr.bf16.mxu0 %v5068
        %5196 = vmatpush1.bf16.msra.mxu0 %v5067
        %5197 = vmatprep.subr.bf16.mxu0 %v5070
        %5198 = vmatpush1.bf16.msra.mxu0 %v5069
        %5199 = vmatprep.subr.bf16.mxu0 %v5072
        %5200 = vmatpush1.bf16.msra.mxu0 %v5071
        %5201 = vmatprep.subr.bf16.mxu0 %v5074
        %5202 = vmatpush1.bf16.msra.mxu0 %v5073
        %5203 = vmatprep.subr.bf16.mxu0 %v5076
        %5204 = vmatpush1.bf16.msra.mxu0 %v5075
        %5205 = vmatprep.subr.bf16.mxu0 %v5078
        %5206 = vmatpush1.bf16.msra.mxu0 %v5077
        %5207 = vmatprep.subr.bf16.mxu0 %v5080
        %5208 = vmatpush1.bf16.msra.mxu0 %v5079
        %5209 = vmatprep.mubr.bf16.mxu0 %v4538
        %5210 = vmatmul.mubr.bf16.gmra.mrb[0].mxu0 %v4521
        %v5211 = vpop.f32.mrb[0].mxu0
        %v5212 = vadd.f32 %v4497, %v5211
        %v5213 = vpop.f32.mrb[0].mxu0
        %v5214 = vadd.f32 %v4501, %v5213
        %v5215 = vpop.f32.mrb[0].mxu0
        %v5216 = vadd.f32 %v4497, %v5215
        %v5217 = vpop.f32.mrb[0].mxu0
        %v5218 = vadd.f32 %v4501, %v5217
        %5219 = vmatprep.mubr.bf16.mxu0 %v4590
        %5220 = vmatmul.mubr.bf16.gmra.mrb[0].mxu0 %v4581
        %v5221 = vpop.f32.mrb[0].mxu0
        %v5222 = vadd.f32 %v4497, %v5221
        %v5223 = vpop.f32.mrb[0].mxu0
        %v5224 = vadd.f32 %v4501, %v5223
        %v5225 = vpop.f32.mrb[0].mxu0
        %v5226 = vadd.f32 %v4497, %v5225
        %v5227 = vpop.f32.mrb[0].mxu0
        %v5228 = vadd.f32 %v4501, %v5227
        %5229 = vmatprep.mubr.bf16.mxu0 %v4626
        %5230 = vmatmul.mubr.bf16.gmra.mrb[0].mxu0 %v4617
        %v5231 = vpop.f32.mrb[0].mxu0
        %v5232 = vadd.f32 %v4497, %v5231
        %v5233 = vpop.f32.mrb[0].mxu0
        %v5234 = vadd.f32 %v4501, %v5233
        %v5235 = vpop.f32.mrb[0].mxu0
        %v5236 = vadd.f32 %v4497, %v5235
        %v5237 = vpop.f32.mrb[0].mxu0
        %v5238 = vadd.f32 %v4501, %v5237
        %5239 = vmatprep.mubr.bf16.mxu0 %v4662
        %5240 = vmatmul.mubr.bf16.gmra.mrb[0].mxu0 %v4653
        %v5241 = vpop.f32.mrb[0].mxu0
        %v5242 = vadd.f32 %v4497, %v5241
        %v5243 = vpop.f32.mrb[0].mxu0
        %v5244 = vadd.f32 %v4501, %v5243
        %v5245 = vpop.f32.mrb[0].mxu0
        %v5246 = vadd.f32 %v4497, %v5245
        %v5247 = vpop.f32.mrb[0].mxu0
        %v5248 = vadd.f32 %v4501, %v5247
        %5249 = vmatprep.mubr.bf16.mxu0 %v4698
        %5250 = vmatmul.mubr.bf16.gmra.mrb[0].mxu0 %v4689
        %v5251 = vpop.f32.mrb[0].mxu0
        %v5252 = vadd.f32 %v4497, %v5251
        %v5253 = vpop.f32.mrb[0].mxu0
        %v5254 = vadd.f32 %v4501, %v5253
        %v5255 = vpop.f32.mrb[0].mxu0
        %v5256 = vadd.f32 %v4497, %v5255
        %v5257 = vpop.f32.mrb[0].mxu0
        %v5258 = vadd.f32 %v4501, %v5257
        %5259 = vmatprep.mubr.bf16.mxu0 %v4734
        %5260 = vmatmul.mubr.bf16.gmra.mrb[0].mxu0 %v4725
        %v5261 = vpop.f32.mrb[0].mxu0
        %v5262 = vadd.f32 %v4497, %v5261
        %v5263 = vpop.f32.mrb[0].mxu0
        %v5264 = vadd.f32 %v4501, %v5263
        %v5265 = vpop.f32.mrb[0].mxu0
        %v5266 = vadd.f32 %v4497, %v5265
        %v5267 = vpop.f32.mrb[0].mxu0
        %v5268 = vadd.f32 %v4501, %v5267
        %5269 = vmatprep.mubr.bf16.mxu0 %v4770
        %5270 = vmatmul.mubr.bf16.gmra.mrb[0].mxu0 %v4761
        %v5271 = vpop.f32.mrb[0].mxu0
        %v5272 = vadd.f32 %v4497, %v5271
        %v5273 = vpop.f32.mrb[0].mxu0
        %v5274 = vadd.f32 %v4501, %v5273
        %v5275 = vpop.f32.mrb[0].mxu0
        %v5276 = vadd.f32 %v4497, %v5275
        %v5277 = vpop.f32.mrb[0].mxu0
        %v5278 = vadd.f32 %v4501, %v5277
        %5279 = vmatprep.mubr.bf16.mxu0 %v4806
        %5280 = vmatmul.mubr.bf16.gmra.mrb[0].mxu0 %v4797
        %v5281 = vpop.f32.mrb[0].mxu0
        %v5282 = vadd.f32 %v4497, %v5281
        %v5283 = vpop.f32.mrb[0].mxu0
        %v5284 = vadd.f32 %v4501, %v5283
        %v5285 = vpop.f32.mrb[0].mxu0
        %v5286 = vadd.f32 %v4497, %v5285
        %v5287 = vpop.f32.mrb[0].mxu0
        %v5288 = vadd.f32 %v4501, %v5287
        %5289 = vdwg.mxu0
        %5290 = vmatprep.subr.bf16.mxu0 %v5082
        %5291 = vmatpush1.bf16.msra.mxu0 %v5081
        %5292 = vmatprep.subr.bf16.mxu0 %v5084
        %5293 = vmatpush1.bf16.msra.mxu0 %v5083
        %5294 = vmatprep.subr.bf16.mxu0 %v5086
        %5295 = vmatpush1.bf16.msra.mxu0 %v5085
        %5296 = vmatprep.subr.bf16.mxu0 %v5088
        %5297 = vmatpush1.bf16.msra.mxu0 %v5087
        %5298 = vmatprep.subr.bf16.mxu0 %v5090
        %5299 = vmatpush1.bf16.msra.mxu0 %v5089
        %5300 = vmatprep.subr.bf16.mxu0 %v5092
        %5301 = vmatpush1.bf16.msra.mxu0 %v5091
        %5302 = vmatprep.subr.bf16.mxu0 %v5094
        %5303 = vmatpush1.bf16.msra.mxu0 %v5093
        %5304 = vmatprep.subr.bf16.mxu0 %v5096
        %5305 = vmatpush1.bf16.msra.mxu0 %v5095
        %5306 = vmatprep.subr.bf16.mxu0 %v5098
        %5307 = vmatpush1.bf16.msra.mxu0 %v5097
        %5308 = vmatprep.subr.bf16.mxu0 %v5100
        %5309 = vmatpush1.bf16.msra.mxu0 %v5099
        %5310 = vmatprep.subr.bf16.mxu0 %v5102
        %5311 = vmatpush1.bf16.msra.mxu0 %v5101
        %5312 = vmatprep.subr.bf16.mxu0 %v5104
        %5313 = vmatpush1.bf16.msra.mxu0 %v5103
        %5314 = vmatprep.subr.bf16.mxu0 %v5106
        %5315 = vmatpush1.bf16.msra.mxu0 %v5105
        %5316 = vmatprep.subr.bf16.mxu0 %v5108
        %5317 = vmatpush1.bf16.msra.mxu0 %v5107
        %5318 = vmatprep.subr.bf16.mxu0 %v5110
        %5319 = vmatpush1.bf16.msra.mxu0 %v5109
        %5320 = vmatprep.subr.bf16.mxu0 %v5112
        %5321 = vmatpush1.bf16.msra.mxu0 %v5111
        %5322 = vmatprep.mubr.bf16.mxu0 %v4572
        %5323 = vmatmul.mubr.bf16.gmra.mrb[0].mxu0 %v4555
        %v5324 = vpop.f32.mrb[0].mxu0
        %v5325 = vadd.f32 %v5212, %v5324
        %v5326 = vpop.f32.mrb[0].mxu0
        %v5327 = vadd.f32 %v5214, %v5326
        %v5328 = vpop.f32.mrb[0].mxu0
        %v5329 = vadd.f32 %v5216, %v5328
        %v5330 = vpop.f32.mrb[0].mxu0
        %v5331 = vadd.f32 %v5218, %v5330
        %5332 = vmatprep.mubr.bf16.mxu0 %v4608
        %5333 = vmatmul.mubr.bf16.gmra.mrb[0].mxu0 %v4599
        %v5334 = vpop.f32.mrb[0].mxu0
        %v5335 = vadd.f32 %v5222, %v5334
        %v5336 = vpop.f32.mrb[0].mxu0
        %v5337 = vadd.f32 %v5224, %v5336
        %v5338 = vpop.f32.mrb[0].mxu0
        %v5339 = vadd.f32 %v5226, %v5338
        %v5340 = vpop.f32.mrb[0].mxu0
        %v5341 = vadd.f32 %v5228, %v5340
        %5342 = vmatprep.mubr.bf16.mxu0 %v4644
        %5343 = vmatmul.mubr.bf16.gmra.mrb[0].mxu0 %v4635
        %v5344 = vpop.f32.mrb[0].mxu0
        %v5345 = vadd.f32 %v5232, %v5344
        %v5346 = vpop.f32.mrb[0].mxu0
        %v5347 = vadd.f32 %v5234, %v5346
        %v5348 = vpop.f32.mrb[0].mxu0
        %v5349 = vadd.f32 %v5236, %v5348
        %v5350 = vpop.f32.mrb[0].mxu0
        %v5351 = vadd.f32 %v5238, %v5350
        %5352 = vmatprep.mubr.bf16.mxu0 %v4680
        %5353 = vmatmul.mubr.bf16.gmra.mrb[0].mxu0 %v4671
        %v5354 = vpop.f32.mrb[0].mxu0
        %v5355 = vadd.f32 %v5242, %v5354
        %v5356 = vpop.f32.mrb[0].mxu0
        %v5357 = vadd.f32 %v5244, %v5356
        %v5358 = vpop.f32.mrb[0].mxu0
        %v5359 = vadd.f32 %v5246, %v5358
        %v5360 = vpop.f32.mrb[0].mxu0
        %v5361 = vadd.f32 %v5248, %v5360
        %5362 = vmatprep.mubr.bf16.mxu0 %v4716
        %5363 = vmatmul.mubr.bf16.gmra.mrb[0].mxu0 %v4707
        %v5364 = vpop.f32.mrb[0].mxu0
        %v5365 = vadd.f32 %v5252, %v5364
        %v5366 = vpop.f32.mrb[0].mxu0
        %v5367 = vadd.f32 %v5254, %v5366
        %v5368 = vpop.f32.mrb[0].mxu0
        %v5369 = vadd.f32 %v5256, %v5368
        %v5370 = vpop.f32.mrb[0].mxu0
        %v5371 = vadd.f32 %v5258, %v5370
        %5372 = vmatprep.mubr.bf16.mxu0 %v4752
        %5373 = vmatmul.mubr.bf16.gmra.mrb[0].mxu0 %v4743
        %v5374 = vpop.f32.mrb[0].mxu0
        %v5375 = vadd.f32 %v5262, %v5374
        %v5376 = vpop.f32.mrb[0].mxu0
        %v5377 = vadd.f32 %v5264, %v5376
        %v5378 = vpop.f32.mrb[0].mxu0
        %v5379 = vadd.f32 %v5266, %v5378
        %v5380 = vpop.f32.mrb[0].mxu0
        %v5381 = vadd.f32 %v5268, %v5380
        %5382 = vmatprep.mubr.bf16.mxu0 %v4788
        %5383 = vmatmul.mubr.bf16.gmra.mrb[0].mxu0 %v4779
        %v5384 = vpop.f32.mrb[0].mxu0
        %v5385 = vadd.f32 %v5272, %v5384
        %v5386 = vpop.f32.mrb[0].mxu0
        %v5387 = vadd.f32 %v5274, %v5386
        %v5388 = vpop.f32.mrb[0].mxu0
        %v5389 = vadd.f32 %v5276, %v5388
        %v5390 = vpop.f32.mrb[0].mxu0
        %v5391 = vadd.f32 %v5278, %v5390
        %5392 = vmatprep.mubr.bf16.mxu0 %v4824
        %5393 = vmatmul.mubr.bf16.gmra.mrb[0].mxu0 %v4815
        %v5394 = vpop.f32.mrb[0].mxu0
        %v5395 = vadd.f32 %v5282, %v5394
        %v5396 = vpop.f32.mrb[0].mxu0
        %v5397 = vadd.f32 %v5284, %v5396
        %v5398 = vpop.f32.mrb[0].mxu0
        %v5399 = vadd.f32 %v5286, %v5398
        %v5400 = vpop.f32.mrb[0].mxu0
        %v5401 = vadd.f32 %v5288, %v5400
        %5402 = vdwg.mxu0
        %v5403 = vadd.f32 %v503, %v5325
        %v5404 = vadd.f32 %v504, %v5327
        %v5405 = vadd.f32 %v505, %v5329
        %v5406 = vadd.f32 %v506, %v5331
        %v5407 = vadd.f32 %v507, %v5335
        %v5408 = vadd.f32 %v508, %v5337
        %v5409 = vadd.f32 %v509, %v5339
        %v5410 = vadd.f32 %v510, %v5341
        %v5411 = vadd.f32 %v511, %v5345
        %v5412 = vadd.f32 %v512, %v5347
        %v5413 = vadd.f32 %v513, %v5349
        %v5414 = vadd.f32 %v514, %v5351
        %v5415 = vadd.f32 %v515, %v5355
        %v5416 = vadd.f32 %v516, %v5357
        %v5417 = vadd.f32 %v517, %v5359
        %v5418 = vadd.f32 %v518, %v5361
        %v5419 = vadd.f32 %v519, %v5365
        %v5420 = vadd.f32 %v520, %v5367
        %v5421 = vadd.f32 %v521, %v5369
        %v5422 = vadd.f32 %v522, %v5371
        %v5423 = vadd.f32 %v523, %v5375
        %v5424 = vadd.f32 %v524, %v5377
        %v5425 = vadd.f32 %v525, %v5379
        %v5426 = vadd.f32 %v526, %v5381
        %v5427 = vadd.f32 %v527, %v5385
        %v5428 = vadd.f32 %v528, %v5387
        %v5429 = vadd.f32 %v529, %v5389
        %v5430 = vadd.f32 %v530, %v5391
        %v5431 = vadd.f32 %v531, %v5395
        %v5432 = vadd.f32 %v532, %v5397
        %v5433 = vadd.f32 %v533, %v5399
        %v5434 = vadd.f32 %v534, %v5401
        %5435 = vst [vmem:[%s502] sm:$0xff] %v5403
        %5436 = vst [vmem:[%s502 + $0x8] sm:$0xff] %v5404
        %5437 = vst [vmem:[%s502 + $0x10] sm:$0xff] %v5405
        %5438 = vst [vmem:[%s502 + $0x18] sm:$0xff] %v5406
        %5439 = vst [vmem:[%s502 + $0x20] sm:$0xff] %v5407
        %5440 = vst [vmem:[%s502 + $0x28] sm:$0xff] %v5408
        %5441 = vst [vmem:[%s502 + $0x30] sm:$0xff] %v5409
        %5442 = vst [vmem:[%s502 + $0x38] sm:$0xff] %v5410
        %5443 = vst [vmem:[%s502 + $0x40] sm:$0xff] %v5411
        %5444 = vst [vmem:[%s502 + $0x48] sm:$0xff] %v5412
        %5445 = vst [vmem:[%s502 + $0x50] sm:$0xff] %v5413
        %5446 = vst [vmem:[%s502 + $0x58] sm:$0xff] %v5414
        %5447 = vst [vmem:[%s502 + $0x60] sm:$0xff] %v5415
        %5448 = vst [vmem:[%s502 + $0x68] sm:$0xff] %v5416
        %5449 = vst [vmem:[%s502 + $0x70] sm:$0xff] %v5417
        %5450 = vst [vmem:[%s502 + $0x78] sm:$0xff] %v5418
        %5451 = vst [vmem:[%s502 + $0x80] sm:$0xff] %v5419
        %5452 = vst [vmem:[%s502 + $0x88] sm:$0xff] %v5420
        %5453 = vst [vmem:[%s502 + $0x90] sm:$0xff] %v5421
        %5454 = vst [vmem:[%s502 + $0x98] sm:$0xff] %v5422
        %5455 = vst [vmem:[%s502 + $0xa0] sm:$0xff] %v5423
        %5456 = vst [vmem:[%s502 + $0xa8] sm:$0xff] %v5424
        %5457 = vst [vmem:[%s502 + $0xb0] sm:$0xff] %v5425
        %5458 = vst [vmem:[%s502 + $0xb8] sm:$0xff] %v5426
        %5459 = vst [vmem:[%s502 + $0xc0] sm:$0xff] %v5427
        %5460 = vst [vmem:[%s502 + $0xc8] sm:$0xff] %v5428
        %5461 = vst [vmem:[%s502 + $0xd0] sm:$0xff] %v5429
        %5462 = vst [vmem:[%s502 + $0xd8] sm:$0xff] %v5430
        %5463 = vst [vmem:[%s502 + $0xe0] sm:$0xff] %v5431
        %5464 = vst [vmem:[%s502 + $0xe8] sm:$0xff] %v5432
        %5465 = vst [vmem:[%s502 + $0xf0] sm:$0xff] %v5433
        %5466 = vst [vmem:[%s502 + $0xf8] sm:$0xff] %v5434
        %s5467 = sand.u32 %s320, 1
        %s5468 = scalar_lea.sflag [#allocation7], %s5467
        %s5469 = sand.u32 %s320, 1
        %s5470 = smul.addr %s5469, 256
        %s5471 = scalar_lea.vmem [#allocation13], %s5470
        // Predicated region
        $region93: #{tpu_custom_call.1} parent=71 // pred_check
          %p5472 = pneg %p330
        $region94: #{tpu_custom_call.1} parent=71 // pred_check_branch
          %5474 = sbr.rel (%p5472) target = $region96
        $region95: #{tpu_custom_call.1} parent=71 // pred_region
          %s5476 = ssub.s32 4096, 4096
          %5477 = vsyncadd %s5468, %s5476
          %s5478 = smul.addr %s34, 32
          %s5479 = smul.addr %s5478, 128
          %s5480 = scalar_lea.hbm %s13, %s5479
          %s5481 = sshll.u32 %s5471, 4
          %s5482 = int_to_ptr.vmem [resolvable:$true] %s5481
          %5487 = dma.vmem_to_hbm [thread:$0]  %s5482, 4096, %s5480, %s5468, 256, 256, 16
        $region96: #{tpu_custom_call.1} parent=71 // pred_fallthru
          _
      $region72: #{tpu_custom_call.1} parent=5 // pred_fallthru
        _
      %p5488 = scmp.le.s32.totalorder 2, %s29
      // Predicated region
      $region97: #{tpu_custom_call.1} parent=5 // pred_check
        %p5489 = pneg %p5488
      $region98: #{tpu_custom_call.1} parent=5 // pred_check_branch
        %5491 = sbr.rel (%p5489) target = $region100
      $region99: #{tpu_custom_call.1} parent=5 // pred_region
        %s5492 = ssub.s32 %s29, 2
        // Predicated region
        $region101: #{tpu_custom_call.1} parent=99 // pred_check
          %p5493 = pneg %p336
        $region102: #{tpu_custom_call.1} parent=99 // pred_check_branch
          %5495 = sbr.rel (%p5493) target = $region104
        $region103: #{tpu_custom_call.1} parent=99 // pred_region
          %s5496 = sand.u32 %s321, 1
          %s5497 = scalar_lea.sflag [#allocation7], %s5496
          %s5498 = sand.u32 %s321, 1
          %s5499 = smul.addr %s5498, 256
          %s5500 = scalar_lea.vmem [#allocation13], %s5499
          %5501 = dma.done %s5497, 4096
        $region104: #{tpu_custom_call.1} parent=99 // pred_fallthru
          _
      $region100: #{tpu_custom_call.1} parent=5 // pred_fallthru
        _
    $region6: #{tpu_custom_call.1} parent=1 // loop_footer
      %s33 = sadd.s32 1, %s29
    $region7: #{tpu_custom_call.1} parent=1 // loop_footer_branch
      %28 = sbr.rel target = $region3
    $region8: #{tpu_custom_call.1} parent=1 // loop_exit
      _
    %5502 = vsyncpa [#allocation6], 1
    %s5503 = scalar_lea.sflag [#allocation6], 1
    %5504 = vsyncpa %s5503, 1
    %5505 = vsyncpa [#allocation9], 1
    %5506 = vsyncpa [#allocation12], 1
    %5507 = vsyncpa [#allocation7], 1
    %s5508 = scalar_lea.sflag [#allocation7], 1
    %5509 = vsyncpa %s5508, 1

</llo_original>
